<compile_context>
chip_gen: v5e
topology: v5e:2x2
jax: 0.10.0
libtpu: 0.0.40
codegen_flags: <defaults>
</compile_context>

<pallas_src>
import functools

import jax
import jax.numpy as jnp
from jax import lax
from jax.experimental import pallas as pl
from jax.experimental.pallas import tpu as pltpu


# ----------------------------------------------------------------------------
# Fused kernel: max_unpool2x2 -> conv3x3+BN+ReLU -> conv3x3+BN+ReLU
# ----------------------------------------------------------------------------
def _decoder_fused_kernel(x_ref, idx_ref, w1_ref, b1_ref, w2_ref, b2_ref,
                          o_ref, up_ref, mid_ref, *,
                          H, W, Cin, Cmid, Cout, W2):
    # x_ref/idx_ref: (1, H, W, Cin)   pooled activations + unpool indices
    # w1_ref: (9*Cin, Cmid)  b1_ref: (1, Cmid)   (BN-folded, im2col layout)
    # w2_ref: (9*Cmid, Cout) b2_ref: (1, Cout)
    # o_ref : (1, H, 2, W, 2*Cout)    phase-packed output (free reshape outside)
    # up_ref : (4, H+2, W+2, Cin)     zero-padded unpool phases   (VMEM scratch)
    # mid_ref: (4, H+2, W+2, Cmid)    zero-padded conv1 phases    (VMEM scratch)

    w1 = w1_ref[...]
    b1 = b1_ref[...]
    w2 = w2_ref[...]
    b2 = b2_ref[...]

    # ---- stage 1: unpool into zero-padded phase planes ----------------------
    up_ref[...] = jnp.zeros_like(up_ref)
    mid_ref[...] = jnp.zeros_like(mid_ref)
    x = x_ref[0]
    idx = idx_ref[0]
    h_ids = lax.broadcasted_iota(jnp.int32, x.shape, 0)
    w_ids = lax.broadcasted_iota(jnp.int32, x.shape, 1)
    for r in range(2):
        for s in range(2):
            # phase (r, s): unpooled[2i+r, 2j+s] = x[i,j] iff idx hits it.
            tgt = (2 * h_ids + r) * W2 + (2 * w_ids + s)
            up_ref[2 * r + s, pl.ds(1, H), pl.ds(1, W), :] = jnp.where(
                idx == tgt, x, jnp.zeros_like(x))

    # ---- 3x3 "SAME" conv on phase planes via single-matmul im2col ----------
    def conv_phase(src_ref, w_mat, b_vec, a, b, cin):
        # output phase (a, b): out[2i+a, 2j+b] = sum_{dy,dx} in[2i+a+dy-1, ...]
        taps = []
        for dy in range(3):
            qy, ry = divmod(a + dy - 1, 2)      # full-res row = 2*(i+qy) + ry
            for dx in range(3):
                qx, rx = divmod(b + dx - 1, 2)  # full-res col = 2*(j+qx) + rx
                taps.append(src_ref[2 * ry + rx,
                                    pl.ds(1 + qy, H),
                                    pl.ds(1 + qx, W), :])
        patch = jnp.concatenate(taps, axis=-1).reshape(H * W, 9 * cin)
        acc = jnp.dot(patch, w_mat, preferred_element_type=jnp.float32)
        return jnp.maximum(acc + b_vec, 0.0)

    # ---- stage 2: conv1 + BN + ReLU (phases stored padded for conv2) -------
    for a in range(2):
        for b in range(2):
            y = conv_phase(up_ref, w1, b1, a, b, Cin)
            mid_ref[2 * a + b, pl.ds(1, H), pl.ds(1, W), :] = y.reshape(H, W, Cmid)

    # ---- stage 3: conv2 + BN + ReLU, lane-packed output ---------------------
    for a in range(2):
        cols = [conv_phase(mid_ref, w2, b2, a, b, Cmid).reshape(H, W, Cout)
                for b in range(2)]
        o_ref[0, :, a, :, :] = jnp.concatenate(cols, axis=-1).astype(o_ref.dtype)


def _decoder_fused(x, idx, w1m, b1, w2m, b2):
    # x, idx: (N, H, W, Cin) NHWC ; weights in im2col layout.
    N, H, W, Cin = x.shape
    Cmid = w1m.shape[-1]
    Cout = w2m.shape[-1]
    H2, W2 = 2 * H, 2 * W
    kernel = functools.partial(_decoder_fused_kernel,
                               H=H, W=W, Cin=Cin, Cmid=Cmid, Cout=Cout, W2=W2)
    packed = pl.pallas_call(
        kernel,
        out_shape=jax.ShapeDtypeStruct((N, H, 2, W, 2 * Cout), x.dtype),
        grid_spec=pltpu.PrefetchScalarGridSpec(
            num_scalar_prefetch=0,
            grid=(N,),
            in_specs=[
                pl.BlockSpec((1, H, W, Cin), lambda n: (n, 0, 0, 0)),
                pl.BlockSpec((1, H, W, Cin), lambda n: (n, 0, 0, 0)),
                pl.BlockSpec((9 * Cin, Cmid), lambda n: (0, 0)),
                pl.BlockSpec((1, Cmid), lambda n: (0, 0)),
                pl.BlockSpec((9 * Cmid, Cout), lambda n: (0, 0)),
                pl.BlockSpec((1, Cout), lambda n: (0, 0)),
            ],
            out_specs=pl.BlockSpec((1, H, 2, W, 2 * Cout),
                                   lambda n: (n, 0, 0, 0, 0)),
            scratch_shapes=[
                pltpu.VMEM((4, H + 2, W + 2, Cin), jnp.float32),
                pltpu.VMEM((4, H + 2, W + 2, Cmid), jnp.float32),
            ],
        ),
        compiler_params=pltpu.CompilerParams(dimension_semantics=("parallel",)),
    )(x, idx, w1m, b1, w2m, b2)
    # Free row-major reshape: (N, H, 2, W, 2, Cout) interleave == (N, 2H, 2W, Cout).
    return packed.reshape(N, H2, W2, Cout)


# ----------------------------------------------------------------------------
# Parameter init (matches the PyTorch module's layer shapes) and BN folding.
# ----------------------------------------------------------------------------
def init_decoder_params(key, in_channels, out_channels):
    ks = jax.random.split(key, 4)

    def conv_init(k, cin, cout):
        kw, kb = jax.random.split(k)
        w = 0.1 * jax.random.normal(kw, (cout, cin, 3, 3), jnp.float32)  # OIHW
        b = 0.1 * jax.random.normal(kb, (cout,), jnp.float32)
        return w, b

    def bn_init(k, c):
        kg, kb = jax.random.split(k)
        gamma = 1.0 + 0.1 * jax.random.normal(kg, (c,), jnp.float32)
        beta = 0.1 * jax.random.normal(kb, (c,), jnp.float32)
        return gamma, beta, jnp.zeros((c,), jnp.float32), jnp.ones((c,), jnp.float32)

    w1, b1 = conv_init(ks[0], in_channels, in_channels)
    w2, b2 = conv_init(ks[2], in_channels, out_channels)
    return dict(w1=w1, b1=b1, bn1=bn_init(ks[1], in_channels),
                w2=w2, b2=b2, bn2=bn_init(ks[3], out_channels))


def _fold_conv_bn(w_oihw, b, bn, eps=1e-5):
    gamma, beta, rmean, rvar = bn
    scale = gamma / jnp.sqrt(rvar + eps)                 # (Cout,)
    w_hwio = jnp.transpose(w_oihw, (2, 3, 1, 0))         # OIHW -> HWIO
    w_eff = w_hwio * scale[None, None, None, :]
    b_eff = (b - rmean) * scale + beta
    return w_eff, b_eff.reshape(1, -1)


def decoder_forward(params, x_nchw, indices_nchw, size):
    """Decoder.forward(x, indices, size) — BN in eval mode (running stats)."""
    H2, W2 = size[-2], size[-1]
    x = jnp.transpose(x_nchw, (0, 2, 3, 1))
    idx = jnp.transpose(indices_nchw, (0, 2, 3, 1)).astype(jnp.int32)
    N, H, W, Cin = x.shape
    # TODO(synk): only output_size == (2H, 2W) supported (the SegNet case).
    assert (H2, W2) == (2 * H, 2 * W)

    w1, b1 = _fold_conv_bn(params["w1"], params["b1"], params["bn1"])
    w2, b2 = _fold_conv_bn(params["w2"], params["b2"], params["bn2"])
    Cmid = w1.shape[-1]
    Cout = w2.shape[-1]
    w1m = w1.reshape(9 * Cin, Cmid)     # im2col layout: row = (dy*3+dx)*Cin + ci
    w2m = w2.reshape(9 * Cmid, Cout)

    y = _decoder_fused(x, idx, w1m, b1, w2m, b2)
    return jnp.transpose(y, (0, 3, 1, 2))  # back to NCHW


# ----------------------------------------------------------------------------
# Pure-JAX reference (for a correctness assert).
# ----------------------------------------------------------------------------
def _ref_forward(params, x, indices, size):
    N, C, H, W = x.shape
    H2, W2 = size[-2], size[-1]
    flat = jnp.zeros((N, C, H2 * W2), jnp.float32)
    nn_ = jnp.arange(N)[:, None, None, None]
    cc_ = jnp.arange(C)[None, :, None, None]
    flat = flat.at[nn_, cc_, indices].set(x)
    u = jnp.transpose(flat.reshape(N, C, H2, W2), (0, 2, 3, 1))

    def block(z, w_oihw, b, bn):
        w_eff, b_eff = _fold_conv_bn(w_oihw, b, bn)
        y = lax.conv_general_dilated(z, w_eff, (1, 1), "SAME",
                                     dimension_numbers=("NHWC", "HWIO", "NHWC"))
        return jnp.maximum(y + b_eff.reshape(1, 1, 1, -1), 0.0)

    y = block(u, params["w1"], params["b1"], params["bn1"])
    y = block(y, params["w2"], params["b2"], params["bn2"])
    return jnp.transpose(y, (0, 3, 1, 2))


if __name__ == "__main__":
    N, Cin, Cout = 2, 8, 4
    H2, W2 = 16, 16            # unpooled spatial size
    H, W = H2 // 2, W2 // 2    # pooled (decoder input) spatial size

    key = jax.random.PRNGKey(0)
    k_e, k_p = jax.random.split(key)
    params = init_decoder_params(k_p, Cin, Cout)

    # Build (x, indices) exactly as torch max_pool2d(2, 2, return_indices=True) would.
    e = jax.random.normal(k_e, (N, Cin, H2, W2), jnp.float32)
    win = (e.reshape(N, Cin, H, 2, W, 2)
             .transpose(0, 1, 2, 4, 3, 5)
             .reshape(N, Cin, H, W, 4))
    amax = jnp.argmax(win, axis=-1)
    x = jnp.max(win, axis=-1)                               # (N, Cin, H, W)
    hh = jnp.arange(H)[None, None, :, None]
    ww = jnp.arange(W)[None, None, None, :]
    indices = ((2 * hh + amax // 2) * W2 + (2 * ww + amax % 2)).astype(jnp.int32)

    size = (N, Cin, H2, W2)
    fwd = jax.jit(decoder_forward, static_argnums=(3,))
    out = jax.block_until_ready(fwd(params, x, indices, size))

    ref = _ref_forward(params, x, indices, size)
    assert out.shape == (N, Cout, H2, W2), out.shape
    assert jnp.allclose(out, ref, atol=1e-3, rtol=1e-3), float(jnp.max(jnp.abs(out - ref)))

    print("KERNEL_OK")
</pallas_src>

<mosaic_0001>
module attributes {stable_mosaic.version = 11 : i64} {
  func.func @_decoder_fused_kernel(%arg0: i32, %arg1: memref<1x8x8x8xf32, #tpu.memory_space<vmem>>, %arg2: memref<1x8x8x8xi32, #tpu.memory_space<vmem>>, %arg3: memref<72x8xf32, #tpu.memory_space<vmem>>, %arg4: memref<1x8xf32, #tpu.memory_space<vmem>>, %arg5: memref<72x4xf32, #tpu.memory_space<vmem>>, %arg6: memref<1x4xf32, #tpu.memory_space<vmem>>, %arg7: memref<1x8x2x8x8xf32, #tpu.memory_space<vmem>>, %arg8: memref<4x10x10x8xf32, #tpu.memory_space<vmem>>, %arg9: memref<4x10x10x8xf32, #tpu.memory_space<vmem>>) attributes {dimension_semantics = [#tpu.dimension_semantics<parallel>], iteration_bounds = array<i64: 2>, scalar_prefetch = 0 : i64, scratch_operands = 2 : i64, tpu.core_type = #tpu.core_type<tc>, window_params = [{transform_indices = @transform_0, window_bounds = array<i64: 1, 8, 8, 8>}, {transform_indices = @transform_1, window_bounds = array<i64: 1, 8, 8, 8>}, {pipeline_mode = #tpu.pipeline_mode<synchronous>, transform_indices = @transform_2, window_bounds = array<i64: 72, 8>}, {pipeline_mode = #tpu.pipeline_mode<synchronous>, transform_indices = @transform_3, window_bounds = array<i64: 1, 8>}, {pipeline_mode = #tpu.pipeline_mode<synchronous>, transform_indices = @transform_4, window_bounds = array<i64: 72, 4>}, {pipeline_mode = #tpu.pipeline_mode<synchronous>, transform_indices = @transform_5, window_bounds = array<i64: 1, 4>}, {transform_indices = @transform_6, window_bounds = array<i64: 1, 8, 2, 8, 8>}]} {
    %c0 = arith.constant 0 : index
    %c0_0 = arith.constant 0 : index
    %0 = vector.load %arg3[%c0, %c0_0] : memref<72x8xf32, #tpu.memory_space<vmem>>, vector<72x8xf32>
    %c0_1 = arith.constant 0 : index
    %c0_2 = arith.constant 0 : index
    %1 = vector.load %arg4[%c0_1, %c0_2] : memref<1x8xf32, #tpu.memory_space<vmem>>, vector<1x8xf32>
    %c0_3 = arith.constant 0 : index
    %c0_4 = arith.constant 0 : index
    %2 = vector.load %arg5[%c0_3, %c0_4] : memref<72x4xf32, #tpu.memory_space<vmem>>, vector<72x4xf32>
    %c0_5 = arith.constant 0 : index
    %c0_6 = arith.constant 0 : index
    %3 = vector.load %arg6[%c0_5, %c0_6] : memref<1x4xf32, #tpu.memory_space<vmem>>, vector<1x4xf32>
    %cst = arith.constant 0.000000e+00 : f32
    %4 = vector.broadcast %cst : f32 to vector<4x10x10x8xf32>
    %c0_7 = arith.constant 0 : index
    %c0_8 = arith.constant 0 : index
    %c0_9 = arith.constant 0 : index
    %c0_10 = arith.constant 0 : index
    %5 = vector.load %arg8[%c0_7, %c0_8, %c0_9, %c0_10] : memref<4x10x10x8xf32, #tpu.memory_space<vmem>>, vector<4x10x10x8xf32>
    tpu.vector_store %arg8[%c0_7, %c0_8, %c0_9, %c0_10], %4 {strides = array<i32>} : memref<4x10x10x8xf32, #tpu.memory_space<vmem>>, vector<4x10x10x8xf32>,
    %cst_11 = arith.constant 0.000000e+00 : f32
    %6 = vector.broadcast %cst_11 : f32 to vector<4x10x10x8xf32>
    %c0_12 = arith.constant 0 : index
    %c0_13 = arith.constant 0 : index
    %c0_14 = arith.constant 0 : index
    %c0_15 = arith.constant 0 : index
    %7 = vector.load %arg9[%c0_12, %c0_13, %c0_14, %c0_15] : memref<4x10x10x8xf32, #tpu.memory_space<vmem>>, vector<4x10x10x8xf32>
    tpu.vector_store %arg9[%c0_12, %c0_13, %c0_14, %c0_15], %6 {strides = array<i32>} : memref<4x10x10x8xf32, #tpu.memory_space<vmem>>, vector<4x10x10x8xf32>,
    %c0_16 = arith.constant 0 : index
    %c0_17 = arith.constant 0 : index
    %c0_18 = arith.constant 0 : index
    %c0_19 = arith.constant 0 : index
    %8 = vector.load %arg1[%c0_16, %c0_17, %c0_18, %c0_19] : memref<1x8x8x8xf32, #tpu.memory_space<vmem>>, vector<1x8x8x8xf32>
    %9 = vector.shape_cast %8 : vector<1x8x8x8xf32> to vector<8x8x8xf32>
    %c0_20 = arith.constant 0 : index
    %c0_21 = arith.constant 0 : index
    %c0_22 = arith.constant 0 : index
    %c0_23 = arith.constant 0 : index
    %10 = vector.load %arg2[%c0_20, %c0_21, %c0_22, %c0_23] : memref<1x8x8x8xi32, #tpu.memory_space<vmem>>, vector<1x8x8x8xi32>
    %11 = vector.shape_cast %10 : vector<1x8x8x8xi32> to vector<8x8x8xi32>
    %12 = tpu.iota {dimensions = array<i32: 0>} : vector<8x8x8xi32>
    %13 = tpu.iota {dimensions = array<i32: 1>} : vector<8x8x8xi32>
    %c2_i32 = arith.constant 2 : i32
    %14 = vector.broadcast %c2_i32 : i32 to vector<8x8x8xi32>
    %15 = arith.muli %14, %12 : vector<8x8x8xi32>
    %c0_i32 = arith.constant 0 : i32
    %16 = vector.broadcast %c0_i32 : i32 to vector<8x8x8xi32>
    %17 = arith.addi %15, %16 : vector<8x8x8xi32>
    %c16_i32 = arith.constant 16 : i32
    %18 = vector.broadcast %c16_i32 : i32 to vector<8x8x8xi32>
    %19 = arith.muli %17, %18 : vector<8x8x8xi32>
    %c2_i32_24 = arith.constant 2 : i32
    %20 = vector.broadcast %c2_i32_24 : i32 to vector<8x8x8xi32>
    %21 = arith.muli %20, %13 : vector<8x8x8xi32>
    %c0_i32_25 = arith.constant 0 : i32
    %22 = vector.broadcast %c0_i32_25 : i32 to vector<8x8x8xi32>
    %23 = arith.addi %21, %22 : vector<8x8x8xi32>
    %24 = arith.addi %19, %23 : vector<8x8x8xi32>
    %25 = arith.cmpi eq, %11, %24 : vector<8x8x8xi32>
    %cst_26 = arith.constant 0.000000e+00 : f32
    %26 = vector.broadcast %cst_26 : f32 to vector<8x8x8xf32>
    %27 = arith.select %25, %9, %26 : vector<8x8x8xi1>, vector<8x8x8xf32>
    %c0_27 = arith.constant 0 : index
    %c1 = arith.constant 1 : index
    %c1_28 = arith.constant 1 : index
    %c0_29 = arith.constant 0 : index
    %28 = vector.load %arg8[%c0_27, %c1, %c1_28, %c0_29] : memref<4x10x10x8xf32, #tpu.memory_space<vmem>>, vector<1x8x8x8xf32>
    %29 = vector.shape_cast %28 : vector<1x8x8x8xf32> to vector<8x8x8xf32>
    %30 = vector.shape_cast %27 : vector<8x8x8xf32> to vector<1x8x8x8xf32>
    tpu.vector_store %arg8[%c0_27, %c1, %c1_28, %c0_29], %30 {strides = array<i32>} : memref<4x10x10x8xf32, #tpu.memory_space<vmem>>, vector<1x8x8x8xf32>,
    %c2_i32_30 = arith.constant 2 : i32
    %31 = vector.broadcast %c2_i32_30 : i32 to vector<8x8x8xi32>
    %32 = arith.muli %31, %12 : vector<8x8x8xi32>
    %c0_i32_31 = arith.constant 0 : i32
    %33 = vector.broadcast %c0_i32_31 : i32 to vector<8x8x8xi32>
    %34 = arith.addi %32, %33 : vector<8x8x8xi32>
    %c16_i32_32 = arith.constant 16 : i32
    %35 = vector.broadcast %c16_i32_32 : i32 to vector<8x8x8xi32>
    %36 = arith.muli %34, %35 : vector<8x8x8xi32>
    %c2_i32_33 = arith.constant 2 : i32
    %37 = vector.broadcast %c2_i32_33 : i32 to vector<8x8x8xi32>
    %38 = arith.muli %37, %13 : vector<8x8x8xi32>
    %c1_i32 = arith.constant 1 : i32
    %39 = vector.broadcast %c1_i32 : i32 to vector<8x8x8xi32>
    %40 = arith.addi %38, %39 : vector<8x8x8xi32>
    %41 = arith.addi %36, %40 : vector<8x8x8xi32>
    %42 = arith.cmpi eq, %11, %41 : vector<8x8x8xi32>
    %cst_34 = arith.constant 0.000000e+00 : f32
    %43 = vector.broadcast %cst_34 : f32 to vector<8x8x8xf32>
    %44 = arith.select %42, %9, %43 : vector<8x8x8xi1>, vector<8x8x8xf32>
    %c1_35 = arith.constant 1 : index
    %c1_36 = arith.constant 1 : index
    %c1_37 = arith.constant 1 : index
    %c0_38 = arith.constant 0 : index
    %45 = vector.load %arg8[%c1_35, %c1_36, %c1_37, %c0_38] : memref<4x10x10x8xf32, #tpu.memory_space<vmem>>, vector<1x8x8x8xf32>
    %46 = vector.shape_cast %45 : vector<1x8x8x8xf32> to vector<8x8x8xf32>
    %47 = vector.shape_cast %44 : vector<8x8x8xf32> to vector<1x8x8x8xf32>
    tpu.vector_store %arg8[%c1_35, %c1_36, %c1_37, %c0_38], %47 {strides = array<i32>} : memref<4x10x10x8xf32, #tpu.memory_space<vmem>>, vector<1x8x8x8xf32>,
    %c2_i32_39 = arith.constant 2 : i32
    %48 = vector.broadcast %c2_i32_39 : i32 to vector<8x8x8xi32>
    %49 = arith.muli %48, %12 : vector<8x8x8xi32>
    %c1_i32_40 = arith.constant 1 : i32
    %50 = vector.broadcast %c1_i32_40 : i32 to vector<8x8x8xi32>
    %51 = arith.addi %49, %50 : vector<8x8x8xi32>
    %c16_i32_41 = arith.constant 16 : i32
    %52 = vector.broadcast %c16_i32_41 : i32 to vector<8x8x8xi32>
    %53 = arith.muli %51, %52 : vector<8x8x8xi32>
    %c2_i32_42 = arith.constant 2 : i32
    %54 = vector.broadcast %c2_i32_42 : i32 to vector<8x8x8xi32>
    %55 = arith.muli %54, %13 : vector<8x8x8xi32>
    %c0_i32_43 = arith.constant 0 : i32
    %56 = vector.broadcast %c0_i32_43 : i32 to vector<8x8x8xi32>
    %57 = arith.addi %55, %56 : vector<8x8x8xi32>
    %58 = arith.addi %53, %57 : vector<8x8x8xi32>
    %59 = arith.cmpi eq, %11, %58 : vector<8x8x8xi32>
    %cst_44 = arith.constant 0.000000e+00 : f32
    %60 = vector.broadcast %cst_44 : f32 to vector<8x8x8xf32>
    %61 = arith.select %59, %9, %60 : vector<8x8x8xi1>, vector<8x8x8xf32>
    %c2 = arith.constant 2 : index
    %c1_45 = arith.constant 1 : index
    %c1_46 = arith.constant 1 : index
    %c0_47 = arith.constant 0 : index
    %62 = vector.load %arg8[%c2, %c1_45, %c1_46, %c0_47] : memref<4x10x10x8xf32, #tpu.memory_space<vmem>>, vector<1x8x8x8xf32>
    %63 = vector.shape_cast %62 : vector<1x8x8x8xf32> to vector<8x8x8xf32>
    %64 = vector.shape_cast %61 : vector<8x8x8xf32> to vector<1x8x8x8xf32>
    tpu.vector_store %arg8[%c2, %c1_45, %c1_46, %c0_47], %64 {strides = array<i32>} : memref<4x10x10x8xf32, #tpu.memory_space<vmem>>, vector<1x8x8x8xf32>,
    %c2_i32_48 = arith.constant 2 : i32
    %65 = vector.broadcast %c2_i32_48 : i32 to vector<8x8x8xi32>
    %66 = arith.muli %65, %12 : vector<8x8x8xi32>
    %c1_i32_49 = arith.constant 1 : i32
    %67 = vector.broadcast %c1_i32_49 : i32 to vector<8x8x8xi32>
    %68 = arith.addi %66, %67 : vector<8x8x8xi32>
    %c16_i32_50 = arith.constant 16 : i32
    %69 = vector.broadcast %c16_i32_50 : i32 to vector<8x8x8xi32>
    %70 = arith.muli %68, %69 : vector<8x8x8xi32>
    %c2_i32_51 = arith.constant 2 : i32
    %71 = vector.broadcast %c2_i32_51 : i32 to vector<8x8x8xi32>
    %72 = arith.muli %71, %13 : vector<8x8x8xi32>
    %c1_i32_52 = arith.constant 1 : i32
    %73 = vector.broadcast %c1_i32_52 : i32 to vector<8x8x8xi32>
    %74 = arith.addi %72, %73 : vector<8x8x8xi32>
    %75 = arith.addi %70, %74 : vector<8x8x8xi32>
    %76 = arith.cmpi eq, %11, %75 : vector<8x8x8xi32>
    %cst_53 = arith.constant 0.000000e+00 : f32
    %77 = vector.broadcast %cst_53 : f32 to vector<8x8x8xf32>
    %78 = arith.select %76, %9, %77 : vector<8x8x8xi1>, vector<8x8x8xf32>
    %c3 = arith.constant 3 : index
    %c1_54 = arith.constant 1 : index
    %c1_55 = arith.constant 1 : index
    %c0_56 = arith.constant 0 : index
    %79 = vector.load %arg8[%c3, %c1_54, %c1_55, %c0_56] : memref<4x10x10x8xf32, #tpu.memory_space<vmem>>, vector<1x8x8x8xf32>
    %80 = vector.shape_cast %79 : vector<1x8x8x8xf32> to vector<8x8x8xf32>
    %81 = vector.shape_cast %78 : vector<8x8x8xf32> to vector<1x8x8x8xf32>
    tpu.vector_store %arg8[%c3, %c1_54, %c1_55, %c0_56], %81 {strides = array<i32>} : memref<4x10x10x8xf32, #tpu.memory_space<vmem>>, vector<1x8x8x8xf32>,
    %c3_57 = arith.constant 3 : index
    %c0_58 = arith.constant 0 : index
    %c0_59 = arith.constant 0 : index
    %c0_60 = arith.constant 0 : index
    %82 = vector.load %arg8[%c3_57, %c0_58, %c0_59, %c0_60] : memref<4x10x10x8xf32, #tpu.memory_space<vmem>>, vector<1x8x8x8xf32>
    %83 = vector.shape_cast %82 : vector<1x8x8x8xf32> to vector<8x8x8xf32>
    %c2_61 = arith.constant 2 : index
    %c0_62 = arith.constant 0 : index
    %c1_63 = arith.constant 1 : index
    %c0_64 = arith.constant 0 : index
    %84 = vector.load %arg8[%c2_61, %c0_62, %c1_63, %c0_64] : memref<4x10x10x8xf32, #tpu.memory_space<vmem>>, vector<1x8x8x8xf32>
    %85 = vector.shape_cast %84 : vector<1x8x8x8xf32> to vector<8x8x8xf32>
    %c3_65 = arith.constant 3 : index
    %c0_66 = arith.constant 0 : index
    %c1_67 = arith.constant 1 : index
    %c0_68 = arith.constant 0 : index
    %86 = vector.load %arg8[%c3_65, %c0_66, %c1_67, %c0_68] : memref<4x10x10x8xf32, #tpu.memory_space<vmem>>, vector<1x8x8x8xf32>
    %87 = vector.shape_cast %86 : vector<1x8x8x8xf32> to vector<8x8x8xf32>
    %c1_69 = arith.constant 1 : index
    %c1_70 = arith.constant 1 : index
    %c0_71 = arith.constant 0 : index
    %c0_72 = arith.constant 0 : index
    %88 = vector.load %arg8[%c1_69, %c1_70, %c0_71, %c0_72] : memref<4x10x10x8xf32, #tpu.memory_space<vmem>>, vector<1x8x8x8xf32>
    %89 = vector.shape_cast %88 : vector<1x8x8x8xf32> to vector<8x8x8xf32>
    %c0_73 = arith.constant 0 : index
    %c1_74 = arith.constant 1 : index
    %c1_75 = arith.constant 1 : index
    %c0_76 = arith.constant 0 : index
    %90 = vector.load %arg8[%c0_73, %c1_74, %c1_75, %c0_76] : memref<4x10x10x8xf32, #tpu.memory_space<vmem>>, vector<1x8x8x8xf32>
    %91 = vector.shape_cast %90 : vector<1x8x8x8xf32> to vector<8x8x8xf32>
    %c1_77 = arith.constant 1 : index
    %c1_78 = arith.constant 1 : index
    %c1_79 = arith.constant 1 : index
    %c0_80 = arith.constant 0 : index
    %92 = vector.load %arg8[%c1_77, %c1_78, %c1_79, %c0_80] : memref<4x10x10x8xf32, #tpu.memory_space<vmem>>, vector<1x8x8x8xf32>
    %93 = vector.shape_cast %92 : vector<1x8x8x8xf32> to vector<8x8x8xf32>
    %c3_81 = arith.constant 3 : index
    %c1_82 = arith.constant 1 : index
    %c0_83 = arith.constant 0 : index
    %c0_84 = arith.constant 0 : index
    %94 = vector.load %arg8[%c3_81, %c1_82, %c0_83, %c0_84] : memref<4x10x10x8xf32, #tpu.memory_space<vmem>>, vector<1x8x8x8xf32>
    %95 = vector.shape_cast %94 : vector<1x8x8x8xf32> to vector<8x8x8xf32>
    %c2_85 = arith.constant 2 : index
    %c1_86 = arith.constant 1 : index
    %c1_87 = arith.constant 1 : index
    %c0_88 = arith.constant 0 : index
    %96 = vector.load %arg8[%c2_85, %c1_86, %c1_87, %c0_88] : memref<4x10x10x8xf32, #tpu.memory_space<vmem>>, vector<1x8x8x8xf32>
    %97 = vector.shape_cast %96 : vector<1x8x8x8xf32> to vector<8x8x8xf32>
    %c3_89 = arith.constant 3 : index
    %c1_90 = arith.constant 1 : index
    %c1_91 = arith.constant 1 : index
    %c0_92 = arith.constant 0 : index
    %98 = vector.load %arg8[%c3_89, %c1_90, %c1_91, %c0_92] : memref<4x10x10x8xf32, #tpu.memory_space<vmem>>, vector<1x8x8x8xf32>
    %99 = vector.shape_cast %98 : vector<1x8x8x8xf32> to vector<8x8x8xf32>
    %100 = tpu.concatenate %83, %85, %87, %89, %91, %93, %95, %97, %99 in 2 : vector<8x8x8xf32>, vector<8x8x8xf32>, vector<8x8x8xf32>, vector<8x8x8xf32>, vector<8x8x8xf32>, vector<8x8x8xf32>, vector<8x8x8xf32>, vector<8x8x8xf32>, vector<8x8x8xf32> -> vector<8x8x72xf32>
    %101 = vector.shape_cast %100 : vector<8x8x72xf32> to vector<64x72xf32>
    %cst_93 = arith.constant dense<0.000000e+00> : vector<64x8xf32>
    %102 = tpu.matmul %101, %0, %cst_93 {dimension_numbers = #tpu.dot_dimension_numbers<[1], [0], [0], [1], [0, 0, 1, 1], [], []>} : vector<64x72xf32>, vector<72x8xf32>, vector<64x8xf32> -> vector<64x8xf32>
    %103 = vector.broadcast %1 : vector<1x8xf32> to vector<64x8xf32>
    %104 = arith.addf %102, %103 : vector<64x8xf32>
    %cst_94 = arith.constant 0.000000e+00 : f32
    %105 = vector.broadcast %cst_94 : f32 to vector<64x8xf32>
    %106 = arith.maximumf %104, %105 : vector<64x8xf32>
    %107 = vector.shape_cast %106 : vector<64x8xf32> to vector<8x8x8xf32>
    %c0_95 = arith.constant 0 : index
    %c1_96 = arith.constant 1 : index
    %c1_97 = arith.constant 1 : index
    %c0_98 = arith.constant 0 : index
    %108 = vector.load %arg9[%c0_95, %c1_96, %c1_97, %c0_98] : memref<4x10x10x8xf32, #tpu.memory_space<vmem>>, vector<1x8x8x8xf32>
    %109 = vector.shape_cast %108 : vector<1x8x8x8xf32> to vector<8x8x8xf32>
    %110 = vector.shape_cast %107 : vector<8x8x8xf32> to vector<1x8x8x8xf32>
    tpu.vector_store %arg9[%c0_95, %c1_96, %c1_97, %c0_98], %110 {strides = array<i32>} : memref<4x10x10x8xf32, #tpu.memory_space<vmem>>, vector<1x8x8x8xf32>,
    %c2_99 = arith.constant 2 : index
    %c0_100 = arith.constant 0 : index
    %c1_101 = arith.constant 1 : index
    %c0_102 = arith.constant 0 : index
    %111 = vector.load %arg8[%c2_99, %c0_100, %c1_101, %c0_102] : memref<4x10x10x8xf32, #tpu.memory_space<vmem>>, vector<1x8x8x8xf32>
    %112 = vector.shape_cast %111 : vector<1x8x8x8xf32> to vector<8x8x8xf32>
    %c3_103 = arith.constant 3 : index
    %c0_104 = arith.constant 0 : index
    %c1_105 = arith.constant 1 : index
    %c0_106 = arith.constant 0 : index
    %113 = vector.load %arg8[%c3_103, %c0_104, %c1_105, %c0_106] : memref<4x10x10x8xf32, #tpu.memory_space<vmem>>, vector<1x8x8x8xf32>
    %114 = vector.shape_cast %113 : vector<1x8x8x8xf32> to vector<8x8x8xf32>
    %c2_107 = arith.constant 2 : index
    %c0_108 = arith.constant 0 : index
    %c2_109 = arith.constant 2 : index
    %c0_110 = arith.constant 0 : index
    %115 = vector.load %arg8[%c2_107, %c0_108, %c2_109, %c0_110] : memref<4x10x10x8xf32, #tpu.memory_space<vmem>>, vector<1x8x8x8xf32>
    %116 = vector.shape_cast %115 : vector<1x8x8x8xf32> to vector<8x8x8xf32>
    %c0_111 = arith.constant 0 : index
    %c1_112 = arith.constant 1 : index
    %c1_113 = arith.constant 1 : index
    %c0_114 = arith.constant 0 : index
    %117 = vector.load %arg8[%c0_111, %c1_112, %c1_113, %c0_114] : memref<4x10x10x8xf32, #tpu.memory_space<vmem>>, vector<1x8x8x8xf32>
    %118 = vector.shape_cast %117 : vector<1x8x8x8xf32> to vector<8x8x8xf32>
    %c1_115 = arith.constant 1 : index
    %c1_116 = arith.constant 1 : index
    %c1_117 = arith.constant 1 : index
    %c0_118 = arith.constant 0 : index
    %119 = vector.load %arg8[%c1_115, %c1_116, %c1_117, %c0_118] : memref<4x10x10x8xf32, #tpu.memory_space<vmem>>, vector<1x8x8x8xf32>
    %120 = vector.shape_cast %119 : vector<1x8x8x8xf32> to vector<8x8x8xf32>
    %c0_119 = arith.constant 0 : index
    %c1_120 = arith.constant 1 : index
    %c2_121 = arith.constant 2 : index
    %c0_122 = arith.constant 0 : index
    %121 = vector.load %arg8[%c0_119, %c1_120, %c2_121, %c0_122] : memref<4x10x10x8xf32, #tpu.memory_space<vmem>>, vector<1x8x8x8xf32>
    %122 = vector.shape_cast %121 : vector<1x8x8x8xf32> to vector<8x8x8xf32>
    %c2_123 = arith.constant 2 : index
    %c1_124 = arith.constant 1 : index
    %c1_125 = arith.constant 1 : index
    %c0_126 = arith.constant 0 : index
    %123 = vector.load %arg8[%c2_123, %c1_124, %c1_125, %c0_126] : memref<4x10x10x8xf32, #tpu.memory_space<vmem>>, vector<1x8x8x8xf32>
    %124 = vector.shape_cast %123 : vector<1x8x8x8xf32> to vector<8x8x8xf32>
    %c3_127 = arith.constant 3 : index
    %c1_128 = arith.constant 1 : index
    %c1_129 = arith.constant 1 : index
    %c0_130 = arith.constant 0 : index
    %125 = vector.load %arg8[%c3_127, %c1_128, %c1_129, %c0_130] : memref<4x10x10x8xf32, #tpu.memory_space<vmem>>, vector<1x8x8x8xf32>
    %126 = vector.shape_cast %125 : vector<1x8x8x8xf32> to vector<8x8x8xf32>
    %c2_131 = arith.constant 2 : index
    %c1_132 = arith.constant 1 : index
    %c2_133 = arith.constant 2 : index
    %c0_134 = arith.constant 0 : index
    %127 = vector.load %arg8[%c2_131, %c1_132, %c2_133, %c0_134] : memref<4x10x10x8xf32, #tpu.memory_space<vmem>>, vector<1x8x8x8xf32>
    %128 = vector.shape_cast %127 : vector<1x8x8x8xf32> to vector<8x8x8xf32>
    %129 = tpu.concatenate %112, %114, %116, %118, %120, %122, %124, %126, %128 in 2 : vector<8x8x8xf32>, vector<8x8x8xf32>, vector<8x8x8xf32>, vector<8x8x8xf32>, vector<8x8x8xf32>, vector<8x8x8xf32>, vector<8x8x8xf32>, vector<8x8x8xf32>, vector<8x8x8xf32> -> vector<8x8x72xf32>
    %130 = vector.shape_cast %129 : vector<8x8x72xf32> to vector<64x72xf32>
    %cst_135 = arith.constant dense<0.000000e+00> : vector<64x8xf32>
    %131 = tpu.matmul %130, %0, %cst_135 {dimension_numbers = #tpu.dot_dimension_numbers<[1], [0], [0], [1], [0, 0, 1, 1], [], []>} : vector<64x72xf32>, vector<72x8xf32>, vector<64x8xf32> -> vector<64x8xf32>
    %132 = vector.broadcast %1 : vector<1x8xf32> to vector<64x8xf32>
    %133 = arith.addf %131, %132 : vector<64x8xf32>
    %cst_136 = arith.constant 0.000000e+00 : f32
    %134 = vector.broadcast %cst_136 : f32 to vector<64x8xf32>
    %135 = arith.maximumf %133, %134 : vector<64x8xf32>
    %136 = vector.shape_cast %135 : vector<64x8xf32> to vector<8x8x8xf32>
    %c1_137 = arith.constant 1 : index
    %c1_138 = arith.constant 1 : index
    %c1_139 = arith.constant 1 : index
    %c0_140 = arith.constant 0 : index
    %137 = vector.load %arg9[%c1_137, %c1_138, %c1_139, %c0_140] : memref<4x10x10x8xf32, #tpu.memory_space<vmem>>, vector<1x8x8x8xf32>
    %138 = vector.shape_cast %137 : vector<1x8x8x8xf32> to vector<8x8x8xf32>
    %139 = vector.shape_cast %136 : vector<8x8x8xf32> to vector<1x8x8x8xf32>
    tpu.vector_store %arg9[%c1_137, %c1_138, %c1_139, %c0_140], %139 {strides = array<i32>} : memref<4x10x10x8xf32, #tpu.memory_space<vmem>>, vector<1x8x8x8xf32>,
    %c1_141 = arith.constant 1 : index
    %c1_142 = arith.constant 1 : index
    %c0_143 = arith.constant 0 : index
    %c0_144 = arith.constant 0 : index
    %140 = vector.load %arg8[%c1_141, %c1_142, %c0_143, %c0_144] : memref<4x10x10x8xf32, #tpu.memory_space<vmem>>, vector<1x8x8x8xf32>
    %141 = vector.shape_cast %140 : vector<1x8x8x8xf32> to vector<8x8x8xf32>
    %c0_145 = arith.constant 0 : index
    %c1_146 = arith.constant 1 : index
    %c1_147 = arith.constant 1 : index
    %c0_148 = arith.constant 0 : index
    %142 = vector.load %arg8[%c0_145, %c1_146, %c1_147, %c0_148] : memref<4x10x10x8xf32, #tpu.memory_space<vmem>>, vector<1x8x8x8xf32>
    %143 = vector.shape_cast %142 : vector<1x8x8x8xf32> to vector<8x8x8xf32>
    %c1_149 = arith.constant 1 : index
    %c1_150 = arith.constant 1 : index
    %c1_151 = arith.constant 1 : index
    %c0_152 = arith.constant 0 : index
    %144 = vector.load %arg8[%c1_149, %c1_150, %c1_151, %c0_152] : memref<4x10x10x8xf32, #tpu.memory_space<vmem>>, vector<1x8x8x8xf32>
    %145 = vector.shape_cast %144 : vector<1x8x8x8xf32> to vector<8x8x8xf32>
    %c3_153 = arith.constant 3 : index
    %c1_154 = arith.constant 1 : index
    %c0_155 = arith.constant 0 : index
    %c0_156 = arith.constant 0 : index
    %146 = vector.load %arg8[%c3_153, %c1_154, %c0_155, %c0_156] : memref<4x10x10x8xf32, #tpu.memory_space<vmem>>, vector<1x8x8x8xf32>
    %147 = vector.shape_cast %146 : vector<1x8x8x8xf32> to vector<8x8x8xf32>
    %c2_157 = arith.constant 2 : index
    %c1_158 = arith.constant 1 : index
    %c1_159 = arith.constant 1 : index
    %c0_160 = arith.constant 0 : index
    %148 = vector.load %arg8[%c2_157, %c1_158, %c1_159, %c0_160] : memref<4x10x10x8xf32, #tpu.memory_space<vmem>>, vector<1x8x8x8xf32>
    %149 = vector.shape_cast %148 : vector<1x8x8x8xf32> to vector<8x8x8xf32>
    %c3_161 = arith.constant 3 : index
    %c1_162 = arith.constant 1 : index
    %c1_163 = arith.constant 1 : index
    %c0_164 = arith.constant 0 : index
    %150 = vector.load %arg8[%c3_161, %c1_162, %c1_163, %c0_164] : memref<4x10x10x8xf32, #tpu.memory_space<vmem>>, vector<1x8x8x8xf32>
    %151 = vector.shape_cast %150 : vector<1x8x8x8xf32> to vector<8x8x8xf32>
    %c1_165 = arith.constant 1 : index
    %c2_166 = arith.constant 2 : index
    %c0_167 = arith.constant 0 : index
    %c0_168 = arith.constant 0 : index
    %152 = vector.load %arg8[%c1_165, %c2_166, %c0_167, %c0_168] : memref<4x10x10x8xf32, #tpu.memory_space<vmem>>, vector<1x8x8x8xf32>
    %153 = vector.shape_cast %152 : vector<1x8x8x8xf32> to vector<8x8x8xf32>
    %c0_169 = arith.constant 0 : index
    %c2_170 = arith.constant 2 : index
    %c1_171 = arith.constant 1 : index
    %c0_172 = arith.constant 0 : index
    %154 = vector.load %arg8[%c0_169, %c2_170, %c1_171, %c0_172] : memref<4x10x10x8xf32, #tpu.memory_space<vmem>>, vector<1x8x8x8xf32>
    %155 = vector.shape_cast %154 : vector<1x8x8x8xf32> to vector<8x8x8xf32>
    %c1_173 = arith.constant 1 : index
    %c2_174 = arith.constant 2 : index
    %c1_175 = arith.constant 1 : index
    %c0_176 = arith.constant 0 : index
    %156 = vector.load %arg8[%c1_173, %c2_174, %c1_175, %c0_176] : memref<4x10x10x8xf32, #tpu.memory_space<vmem>>, vector<1x8x8x8xf32>
    %157 = vector.shape_cast %156 : vector<1x8x8x8xf32> to vector<8x8x8xf32>
    %158 = tpu.concatenate %141, %143, %145, %147, %149, %151, %153, %155, %157 in 2 : vector<8x8x8xf32>, vector<8x8x8xf32>, vector<8x8x8xf32>, vector<8x8x8xf32>, vector<8x8x8xf32>, vector<8x8x8xf32>, vector<8x8x8xf32>, vector<8x8x8xf32>, vector<8x8x8xf32> -> vector<8x8x72xf32>
    %159 = vector.shape_cast %158 : vector<8x8x72xf32> to vector<64x72xf32>
    %cst_177 = arith.constant dense<0.000000e+00> : vector<64x8xf32>
    %160 = tpu.matmul %159, %0, %cst_177 {dimension_numbers = #tpu.dot_dimension_numbers<[1], [0], [0], [1], [0, 0, 1, 1], [], []>} : vector<64x72xf32>, vector<72x8xf32>, vector<64x8xf32> -> vector<64x8xf32>
    %161 = vector.broadcast %1 : vector<1x8xf32> to vector<64x8xf32>
    %162 = arith.addf %160, %161 : vector<64x8xf32>
    %cst_178 = arith.constant 0.000000e+00 : f32
    %163 = vector.broadcast %cst_178 : f32 to vector<64x8xf32>
    %164 = arith.maximumf %162, %163 : vector<64x8xf32>
    %165 = vector.shape_cast %164 : vector<64x8xf32> to vector<8x8x8xf32>
    %c2_179 = arith.constant 2 : index
    %c1_180 = arith.constant 1 : index
    %c1_181 = arith.constant 1 : index
    %c0_182 = arith.constant 0 : index
    %166 = vector.load %arg9[%c2_179, %c1_180, %c1_181, %c0_182] : memref<4x10x10x8xf32, #tpu.memory_space<vmem>>, vector<1x8x8x8xf32>
    %167 = vector.shape_cast %166 : vector<1x8x8x8xf32> to vector<8x8x8xf32>
    %168 = vector.shape_cast %165 : vector<8x8x8xf32> to vector<1x8x8x8xf32>
    tpu.vector_store %arg9[%c2_179, %c1_180, %c1_181, %c0_182], %168 {strides = array<i32>} : memref<4x10x10x8xf32, #tpu.memory_space<vmem>>, vector<1x8x8x8xf32>,
    %c0_183 = arith.constant 0 : index
    %c1_184 = arith.constant 1 : index
    %c1_185 = arith.constant 1 : index
    %c0_186 = arith.constant 0 : index
    %169 = vector.load %arg8[%c0_183, %c1_184, %c1_185, %c0_186] : memref<4x10x10x8xf32, #tpu.memory_space<vmem>>, vector<1x8x8x8xf32>
    %170 = vector.shape_cast %169 : vector<1x8x8x8xf32> to vector<8x8x8xf32>
    %c1_187 = arith.constant 1 : index
    %c1_188 = arith.constant 1 : index
    %c1_189 = arith.constant 1 : index
    %c0_190 = arith.constant 0 : index
    %171 = vector.load %arg8[%c1_187, %c1_188, %c1_189, %c0_190] : memref<4x10x10x8xf32, #tpu.memory_space<vmem>>, vector<1x8x8x8xf32>
    %172 = vector.shape_cast %171 : vector<1x8x8x8xf32> to vector<8x8x8xf32>
    %c0_191 = arith.constant 0 : index
    %c1_192 = arith.constant 1 : index
    %c2_193 = arith.constant 2 : index
    %c0_194 = arith.constant 0 : index
    %173 = vector.load %arg8[%c0_191, %c1_192, %c2_193, %c0_194] : memref<4x10x10x8xf32, #tpu.memory_space<vmem>>, vector<1x8x8x8xf32>
    %174 = vector.shape_cast %173 : vector<1x8x8x8xf32> to vector<8x8x8xf32>
    %c2_195 = arith.constant 2 : index
    %c1_196 = arith.constant 1 : index
    %c1_197 = arith.constant 1 : index
    %c0_198 = arith.constant 0 : index
    %175 = vector.load %arg8[%c2_195, %c1_196, %c1_197, %c0_198] : memref<4x10x10x8xf32, #tpu.memory_space<vmem>>, vector<1x8x8x8xf32>
    %176 = vector.shape_cast %175 : vector<1x8x8x8xf32> to vector<8x8x8xf32>
    %c3_199 = arith.constant 3 : index
    %c1_200 = arith.constant 1 : index
    %c1_201 = arith.constant 1 : index
    %c0_202 = arith.constant 0 : index
    %177 = vector.load %arg8[%c3_199, %c1_200, %c1_201, %c0_202] : memref<4x10x10x8xf32, #tpu.memory_space<vmem>>, vector<1x8x8x8xf32>
    %178 = vector.shape_cast %177 : vector<1x8x8x8xf32> to vector<8x8x8xf32>
    %c2_203 = arith.constant 2 : index
    %c1_204 = arith.constant 1 : index
    %c2_205 = arith.constant 2 : index
    %c0_206 = arith.constant 0 : index
    %179 = vector.load %arg8[%c2_203, %c1_204, %c2_205, %c0_206] : memref<4x10x10x8xf32, #tpu.memory_space<vmem>>, vector<1x8x8x8xf32>
    %180 = vector.shape_cast %179 : vector<1x8x8x8xf32> to vector<8x8x8xf32>
    %c0_207 = arith.constant 0 : index
    %c2_208 = arith.constant 2 : index
    %c1_209 = arith.constant 1 : index
    %c0_210 = arith.constant 0 : index
    %181 = vector.load %arg8[%c0_207, %c2_208, %c1_209, %c0_210] : memref<4x10x10x8xf32, #tpu.memory_space<vmem>>, vector<1x8x8x8xf32>
    %182 = vector.shape_cast %181 : vector<1x8x8x8xf32> to vector<8x8x8xf32>
    %c1_211 = arith.constant 1 : index
    %c2_212 = arith.constant 2 : index
    %c1_213 = arith.constant 1 : index
    %c0_214 = arith.constant 0 : index
    %183 = vector.load %arg8[%c1_211, %c2_212, %c1_213, %c0_214] : memref<4x10x10x8xf32, #tpu.memory_space<vmem>>, vector<1x8x8x8xf32>
    %184 = vector.shape_cast %183 : vector<1x8x8x8xf32> to vector<8x8x8xf32>
    %c0_215 = arith.constant 0 : index
    %c2_216 = arith.constant 2 : index
    %c2_217 = arith.constant 2 : index
    %c0_218 = arith.constant 0 : index
    %185 = vector.load %arg8[%c0_215, %c2_216, %c2_217, %c0_218] : memref<4x10x10x8xf32, #tpu.memory_space<vmem>>, vector<1x8x8x8xf32>
    %186 = vector.shape_cast %185 : vector<1x8x8x8xf32> to vector<8x8x8xf32>
    %187 = tpu.concatenate %170, %172, %174, %176, %178, %180, %182, %184, %186 in 2 : vector<8x8x8xf32>, vector<8x8x8xf32>, vector<8x8x8xf32>, vector<8x8x8xf32>, vector<8x8x8xf32>, vector<8x8x8xf32>, vector<8x8x8xf32>, vector<8x8x8xf32>, vector<8x8x8xf32> -> vector<8x8x72xf32>
    %188 = vector.shape_cast %187 : vector<8x8x72xf32> to vector<64x72xf32>
    %cst_219 = arith.constant dense<0.000000e+00> : vector<64x8xf32>
    %189 = tpu.matmul %188, %0, %cst_219 {dimension_numbers = #tpu.dot_dimension_numbers<[1], [0], [0], [1], [0, 0, 1, 1], [], []>} : vector<64x72xf32>, vector<72x8xf32>, vector<64x8xf32> -> vector<64x8xf32>
    %190 = vector.broadcast %1 : vector<1x8xf32> to vector<64x8xf32>
    %191 = arith.addf %189, %190 : vector<64x8xf32>
    %cst_220 = arith.constant 0.000000e+00 : f32
    %192 = vector.broadcast %cst_220 : f32 to vector<64x8xf32>
    %193 = arith.maximumf %191, %192 : vector<64x8xf32>
    %194 = vector.shape_cast %193 : vector<64x8xf32> to vector<8x8x8xf32>
    %c3_221 = arith.constant 3 : index
    %c1_222 = arith.constant 1 : index
    %c1_223 = arith.constant 1 : index
    %c0_224 = arith.constant 0 : index
    %195 = vector.load %arg9[%c3_221, %c1_222, %c1_223, %c0_224] : memref<4x10x10x8xf32, #tpu.memory_space<vmem>>, vector<1x8x8x8xf32>
    %196 = vector.shape_cast %195 : vector<1x8x8x8xf32> to vector<8x8x8xf32>
    %197 = vector.shape_cast %194 : vector<8x8x8xf32> to vector<1x8x8x8xf32>
    tpu.vector_store %arg9[%c3_221, %c1_222, %c1_223, %c0_224], %197 {strides = array<i32>} : memref<4x10x10x8xf32, #tpu.memory_space<vmem>>, vector<1x8x8x8xf32>,
    %c3_225 = arith.constant 3 : index
    %c0_226 = arith.constant 0 : index
    %c0_227 = arith.constant 0 : index
    %c0_228 = arith.constant 0 : index
    %198 = vector.load %arg9[%c3_225, %c0_226, %c0_227, %c0_228] : memref<4x10x10x8xf32, #tpu.memory_space<vmem>>, vector<1x8x8x8xf32>
    %199 = vector.shape_cast %198 : vector<1x8x8x8xf32> to vector<8x8x8xf32>
    %c2_229 = arith.constant 2 : index
    %c0_230 = arith.constant 0 : index
    %c1_231 = arith.constant 1 : index
    %c0_232 = arith.constant 0 : index
    %200 = vector.load %arg9[%c2_229, %c0_230, %c1_231, %c0_232] : memref<4x10x10x8xf32, #tpu.memory_space<vmem>>, vector<1x8x8x8xf32>
    %201 = vector.shape_cast %200 : vector<1x8x8x8xf32> to vector<8x8x8xf32>
    %c3_233 = arith.constant 3 : index
    %c0_234 = arith.constant 0 : index
    %c1_235 = arith.constant 1 : index
    %c0_236 = arith.constant 0 : index
    %202 = vector.load %arg9[%c3_233, %c0_234, %c1_235, %c0_236] : memref<4x10x10x8xf32, #tpu.memory_space<vmem>>, vector<1x8x8x8xf32>
    %203 = vector.shape_cast %202 : vector<1x8x8x8xf32> to vector<8x8x8xf32>
    %c1_237 = arith.constant 1 : index
    %c1_238 = arith.constant 1 : index
    %c0_239 = arith.constant 0 : index
    %c0_240 = arith.constant 0 : index
    %204 = vector.load %arg9[%c1_237, %c1_238, %c0_239, %c0_240] : memref<4x10x10x8xf32, #tpu.memory_space<vmem>>, vector<1x8x8x8xf32>
    %205 = vector.shape_cast %204 : vector<1x8x8x8xf32> to vector<8x8x8xf32>
    %c0_241 = arith.constant 0 : index
    %c1_242 = arith.constant 1 : index
    %c1_243 = arith.constant 1 : index
    %c0_244 = arith.constant 0 : index
    %206 = vector.load %arg9[%c0_241, %c1_242, %c1_243, %c0_244] : memref<4x10x10x8xf32, #tpu.memory_space<vmem>>, vector<1x8x8x8xf32>
    %207 = vector.shape_cast %206 : vector<1x8x8x8xf32> to vector<8x8x8xf32>
    %c1_245 = arith.constant 1 : index
    %c1_246 = arith.constant 1 : index
    %c1_247 = arith.constant 1 : index
    %c0_248 = arith.constant 0 : index
    %208 = vector.load %arg9[%c1_245, %c1_246, %c1_247, %c0_248] : memref<4x10x10x8xf32, #tpu.memory_space<vmem>>, vector<1x8x8x8xf32>
    %209 = vector.shape_cast %208 : vector<1x8x8x8xf32> to vector<8x8x8xf32>
    %c3_249 = arith.constant 3 : index
    %c1_250 = arith.constant 1 : index
    %c0_251 = arith.constant 0 : index
    %c0_252 = arith.constant 0 : index
    %210 = vector.load %arg9[%c3_249, %c1_250, %c0_251, %c0_252] : memref<4x10x10x8xf32, #tpu.memory_space<vmem>>, vector<1x8x8x8xf32>
    %211 = vector.shape_cast %210 : vector<1x8x8x8xf32> to vector<8x8x8xf32>
    %c2_253 = arith.constant 2 : index
    %c1_254 = arith.constant 1 : index
    %c1_255 = arith.constant 1 : index
    %c0_256 = arith.constant 0 : index
    %212 = vector.load %arg9[%c2_253, %c1_254, %c1_255, %c0_256] : memref<4x10x10x8xf32, #tpu.memory_space<vmem>>, vector<1x8x8x8xf32>
    %213 = vector.shape_cast %212 : vector<1x8x8x8xf32> to vector<8x8x8xf32>
    %c3_257 = arith.constant 3 : index
    %c1_258 = arith.constant 1 : index
    %c1_259 = arith.constant 1 : index
    %c0_260 = arith.constant 0 : index
    %214 = vector.load %arg9[%c3_257, %c1_258, %c1_259, %c0_260] : memref<4x10x10x8xf32, #tpu.memory_space<vmem>>, vector<1x8x8x8xf32>
    %215 = vector.shape_cast %214 : vector<1x8x8x8xf32> to vector<8x8x8xf32>
    %216 = tpu.concatenate %199, %201, %203, %205, %207, %209, %211, %213, %215 in 2 : vector<8x8x8xf32>, vector<8x8x8xf32>, vector<8x8x8xf32>, vector<8x8x8xf32>, vector<8x8x8xf32>, vector<8x8x8xf32>, vector<8x8x8xf32>, vector<8x8x8xf32>, vector<8x8x8xf32> -> vector<8x8x72xf32>
    %217 = vector.shape_cast %216 : vector<8x8x72xf32> to vector<64x72xf32>
    %cst_261 = arith.constant dense<0.000000e+00> : vector<64x4xf32>
    %218 = tpu.matmul %217, %2, %cst_261 {dimension_numbers = #tpu.dot_dimension_numbers<[1], [0], [0], [1], [0, 0, 1, 1], [], []>} : vector<64x72xf32>, vector<72x4xf32>, vector<64x4xf32> -> vector<64x4xf32>
    %219 = vector.broadcast %3 : vector<1x4xf32> to vector<64x4xf32>
    %220 = arith.addf %218, %219 : vector<64x4xf32>
    %cst_262 = arith.constant 0.000000e+00 : f32
    %221 = vector.broadcast %cst_262 : f32 to vector<64x4xf32>
    %222 = arith.maximumf %220, %221 : vector<64x4xf32>
    %223 = vector.shape_cast %222 : vector<64x4xf32> to vector<8x8x4xf32>
    %c2_263 = arith.constant 2 : index
    %c0_264 = arith.constant 0 : index
    %c1_265 = arith.constant 1 : index
    %c0_266 = arith.constant 0 : index
    %224 = vector.load %arg9[%c2_263, %c0_264, %c1_265, %c0_266] : memref<4x10x10x8xf32, #tpu.memory_space<vmem>>, vector<1x8x8x8xf32>
    %225 = vector.shape_cast %224 : vector<1x8x8x8xf32> to vector<8x8x8xf32>
    %c3_267 = arith.constant 3 : index
    %c0_268 = arith.constant 0 : index
    %c1_269 = arith.constant 1 : index
    %c0_270 = arith.constant 0 : index
    %226 = vector.load %arg9[%c3_267, %c0_268, %c1_269, %c0_270] : memref<4x10x10x8xf32, #tpu.memory_space<vmem>>, vector<1x8x8x8xf32>
    %227 = vector.shape_cast %226 : vector<1x8x8x8xf32> to vector<8x8x8xf32>
    %c2_271 = arith.constant 2 : index
    %c0_272 = arith.constant 0 : index
    %c2_273 = arith.constant 2 : index
    %c0_274 = arith.constant 0 : index
    %228 = vector.load %arg9[%c2_271, %c0_272, %c2_273, %c0_274] : memref<4x10x10x8xf32, #tpu.memory_space<vmem>>, vector<1x8x8x8xf32>
    %229 = vector.shape_cast %228 : vector<1x8x8x8xf32> to vector<8x8x8xf32>
    %c0_275 = arith.constant 0 : index
    %c1_276 = arith.constant 1 : index
    %c1_277 = arith.constant 1 : index
    %c0_278 = arith.constant 0 : index
    %230 = vector.load %arg9[%c0_275, %c1_276, %c1_277, %c0_278] : memref<4x10x10x8xf32, #tpu.memory_space<vmem>>, vector<1x8x8x8xf32>
    %231 = vector.shape_cast %230 : vector<1x8x8x8xf32> to vector<8x8x8xf32>
    %c1_279 = arith.constant 1 : index
    %c1_280 = arith.constant 1 : index
    %c1_281 = arith.constant 1 : index
    %c0_282 = arith.constant 0 : index
    %232 = vector.load %arg9[%c1_279, %c1_280, %c1_281, %c0_282] : memref<4x10x10x8xf32, #tpu.memory_space<vmem>>, vector<1x8x8x8xf32>
    %233 = vector.shape_cast %232 : vector<1x8x8x8xf32> to vector<8x8x8xf32>
    %c0_283 = arith.constant 0 : index
    %c1_284 = arith.constant 1 : index
    %c2_285 = arith.constant 2 : index
    %c0_286 = arith.constant 0 : index
    %234 = vector.load %arg9[%c0_283, %c1_284, %c2_285, %c0_286] : memref<4x10x10x8xf32, #tpu.memory_space<vmem>>, vector<1x8x8x8xf32>
    %235 = vector.shape_cast %234 : vector<1x8x8x8xf32> to vector<8x8x8xf32>
    %c2_287 = arith.constant 2 : index
    %c1_288 = arith.constant 1 : index
    %c1_289 = arith.constant 1 : index
    %c0_290 = arith.constant 0 : index
    %236 = vector.load %arg9[%c2_287, %c1_288, %c1_289, %c0_290] : memref<4x10x10x8xf32, #tpu.memory_space<vmem>>, vector<1x8x8x8xf32>
    %237 = vector.shape_cast %236 : vector<1x8x8x8xf32> to vector<8x8x8xf32>
    %c3_291 = arith.constant 3 : index
    %c1_292 = arith.constant 1 : index
    %c1_293 = arith.constant 1 : index
    %c0_294 = arith.constant 0 : index
    %238 = vector.load %arg9[%c3_291, %c1_292, %c1_293, %c0_294] : memref<4x10x10x8xf32, #tpu.memory_space<vmem>>, vector<1x8x8x8xf32>
    %239 = vector.shape_cast %238 : vector<1x8x8x8xf32> to vector<8x8x8xf32>
    %c2_295 = arith.constant 2 : index
    %c1_296 = arith.constant 1 : index
    %c2_297 = arith.constant 2 : index
    %c0_298 = arith.constant 0 : index
    %240 = vector.load %arg9[%c2_295, %c1_296, %c2_297, %c0_298] : memref<4x10x10x8xf32, #tpu.memory_space<vmem>>, vector<1x8x8x8xf32>
    %241 = vector.shape_cast %240 : vector<1x8x8x8xf32> to vector<8x8x8xf32>
    %242 = tpu.concatenate %225, %227, %229, %231, %233, %235, %237, %239, %241 in 2 : vector<8x8x8xf32>, vector<8x8x8xf32>, vector<8x8x8xf32>, vector<8x8x8xf32>, vector<8x8x8xf32>, vector<8x8x8xf32>, vector<8x8x8xf32>, vector<8x8x8xf32>, vector<8x8x8xf32> -> vector<8x8x72xf32>
    %243 = vector.shape_cast %242 : vector<8x8x72xf32> to vector<64x72xf32>
    %cst_299 = arith.constant dense<0.000000e+00> : vector<64x4xf32>
    %244 = tpu.matmul %243, %2, %cst_299 {dimension_numbers = #tpu.dot_dimension_numbers<[1], [0], [0], [1], [0, 0, 1, 1], [], []>} : vector<64x72xf32>, vector<72x4xf32>, vector<64x4xf32> -> vector<64x4xf32>
    %245 = vector.broadcast %3 : vector<1x4xf32> to vector<64x4xf32>
    %246 = arith.addf %244, %245 : vector<64x4xf32>
    %cst_300 = arith.constant 0.000000e+00 : f32
    %247 = vector.broadcast %cst_300 : f32 to vector<64x4xf32>
    %248 = arith.maximumf %246, %247 : vector<64x4xf32>
    %249 = vector.shape_cast %248 : vector<64x4xf32> to vector<8x8x4xf32>
    %250 = tpu.concatenate %223, %249 in 2 : vector<8x8x4xf32>, vector<8x8x4xf32> -> vector<8x8x8xf32>
    %c0_301 = arith.constant 0 : index
    %c0_302 = arith.constant 0 : index
    %c0_303 = arith.constant 0 : index
    %c0_304 = arith.constant 0 : index
    %c0_305 = arith.constant 0 : index
    %251 = vector.load %arg7[%c0_301, %c0_302, %c0_303, %c0_304, %c0_305] : memref<1x8x2x8x8xf32, #tpu.memory_space<vmem>>, vector<1x8x1x8x8xf32>
    %252 = vector.shape_cast %251 : vector<1x8x1x8x8xf32> to vector<8x8x8xf32>
    %253 = vector.shape_cast %250 : vector<8x8x8xf32> to vector<1x8x1x8x8xf32>
    tpu.vector_store %arg7[%c0_301, %c0_302, %c0_303, %c0_304, %c0_305], %253 {strides = array<i32>} : memref<1x8x2x8x8xf32, #tpu.memory_space<vmem>>, vector<1x8x1x8x8xf32>,
    %c1_306 = arith.constant 1 : index
    %c1_307 = arith.constant 1 : index
    %c0_308 = arith.constant 0 : index
    %c0_309 = arith.constant 0 : index
    %254 = vector.load %arg9[%c1_306, %c1_307, %c0_308, %c0_309] : memref<4x10x10x8xf32, #tpu.memory_space<vmem>>, vector<1x8x8x8xf32>
    %255 = vector.shape_cast %254 : vector<1x8x8x8xf32> to vector<8x8x8xf32>
    %c0_310 = arith.constant 0 : index
    %c1_311 = arith.constant 1 : index
    %c1_312 = arith.constant 1 : index
    %c0_313 = arith.constant 0 : index
    %256 = vector.load %arg9[%c0_310, %c1_311, %c1_312, %c0_313] : memref<4x10x10x8xf32, #tpu.memory_space<vmem>>, vector<1x8x8x8xf32>
    %257 = vector.shape_cast %256 : vector<1x8x8x8xf32> to vector<8x8x8xf32>
    %c1_314 = arith.constant 1 : index
    %c1_315 = arith.constant 1 : index
    %c1_316 = arith.constant 1 : index
    %c0_317 = arith.constant 0 : index
    %258 = vector.load %arg9[%c1_314, %c1_315, %c1_316, %c0_317] : memref<4x10x10x8xf32, #tpu.memory_space<vmem>>, vector<1x8x8x8xf32>
    %259 = vector.shape_cast %258 : vector<1x8x8x8xf32> to vector<8x8x8xf32>
    %c3_318 = arith.constant 3 : index
    %c1_319 = arith.constant 1 : index
    %c0_320 = arith.constant 0 : index
    %c0_321 = arith.constant 0 : index
    %260 = vector.load %arg9[%c3_318, %c1_319, %c0_320, %c0_321] : memref<4x10x10x8xf32, #tpu.memory_space<vmem>>, vector<1x8x8x8xf32>
    %261 = vector.shape_cast %260 : vector<1x8x8x8xf32> to vector<8x8x8xf32>
    %c2_322 = arith.constant 2 : index
    %c1_323 = arith.constant 1 : index
    %c1_324 = arith.constant 1 : index
    %c0_325 = arith.constant 0 : index
    %262 = vector.load %arg9[%c2_322, %c1_323, %c1_324, %c0_325] : memref<4x10x10x8xf32, #tpu.memory_space<vmem>>, vector<1x8x8x8xf32>
    %263 = vector.shape_cast %262 : vector<1x8x8x8xf32> to vector<8x8x8xf32>
    %c3_326 = arith.constant 3 : index
    %c1_327 = arith.constant 1 : index
    %c1_328 = arith.constant 1 : index
    %c0_329 = arith.constant 0 : index
    %264 = vector.load %arg9[%c3_326, %c1_327, %c1_328, %c0_329] : memref<4x10x10x8xf32, #tpu.memory_space<vmem>>, vector<1x8x8x8xf32>
    %265 = vector.shape_cast %264 : vector<1x8x8x8xf32> to vector<8x8x8xf32>
    %c1_330 = arith.constant 1 : index
    %c2_331 = arith.constant 2 : index
    %c0_332 = arith.constant 0 : index
    %c0_333 = arith.constant 0 : index
    %266 = vector.load %arg9[%c1_330, %c2_331, %c0_332, %c0_333] : memref<4x10x10x8xf32, #tpu.memory_space<vmem>>, vector<1x8x8x8xf32>
    %267 = vector.shape_cast %266 : vector<1x8x8x8xf32> to vector<8x8x8xf32>
    %c0_334 = arith.constant 0 : index
    %c2_335 = arith.constant 2 : index
    %c1_336 = arith.constant 1 : index
    %c0_337 = arith.constant 0 : index
    %268 = vector.load %arg9[%c0_334, %c2_335, %c1_336, %c0_337] : memref<4x10x10x8xf32, #tpu.memory_space<vmem>>, vector<1x8x8x8xf32>
    %269 = vector.shape_cast %268 : vector<1x8x8x8xf32> to vector<8x8x8xf32>
    %c1_338 = arith.constant 1 : index
    %c2_339 = arith.constant 2 : index
    %c1_340 = arith.constant 1 : index
    %c0_341 = arith.constant 0 : index
    %270 = vector.load %arg9[%c1_338, %c2_339, %c1_340, %c0_341] : memref<4x10x10x8xf32, #tpu.memory_space<vmem>>, vector<1x8x8x8xf32>
    %271 = vector.shape_cast %270 : vector<1x8x8x8xf32> to vector<8x8x8xf32>
    %272 = tpu.concatenate %255, %257, %259, %261, %263, %265, %267, %269, %271 in 2 : vector<8x8x8xf32>, vector<8x8x8xf32>, vector<8x8x8xf32>, vector<8x8x8xf32>, vector<8x8x8xf32>, vector<8x8x8xf32>, vector<8x8x8xf32>, vector<8x8x8xf32>, vector<8x8x8xf32> -> vector<8x8x72xf32>
    %273 = vector.shape_cast %272 : vector<8x8x72xf32> to vector<64x72xf32>
    %cst_342 = arith.constant dense<0.000000e+00> : vector<64x4xf32>
    %274 = tpu.matmul %273, %2, %cst_342 {dimension_numbers = #tpu.dot_dimension_numbers<[1], [0], [0], [1], [0, 0, 1, 1], [], []>} : vector<64x72xf32>, vector<72x4xf32>, vector<64x4xf32> -> vector<64x4xf32>
    %275 = vector.broadcast %3 : vector<1x4xf32> to vector<64x4xf32>
    %276 = arith.addf %274, %275 : vector<64x4xf32>
    %cst_343 = arith.constant 0.000000e+00 : f32
    %277 = vector.broadcast %cst_343 : f32 to vector<64x4xf32>
    %278 = arith.maximumf %276, %277 : vector<64x4xf32>
    %279 = vector.shape_cast %278 : vector<64x4xf32> to vector<8x8x4xf32>
    %c0_344 = arith.constant 0 : index
    %c1_345 = arith.constant 1 : index
    %c1_346 = arith.constant 1 : index
    %c0_347 = arith.constant 0 : index
    %280 = vector.load %arg9[%c0_344, %c1_345, %c1_346, %c0_347] : memref<4x10x10x8xf32, #tpu.memory_space<vmem>>, vector<1x8x8x8xf32>
    %281 = vector.shape_cast %280 : vector<1x8x8x8xf32> to vector<8x8x8xf32>
    %c1_348 = arith.constant 1 : index
    %c1_349 = arith.constant 1 : index
    %c1_350 = arith.constant 1 : index
    %c0_351 = arith.constant 0 : index
    %282 = vector.load %arg9[%c1_348, %c1_349, %c1_350, %c0_351] : memref<4x10x10x8xf32, #tpu.memory_space<vmem>>, vector<1x8x8x8xf32>
    %283 = vector.shape_cast %282 : vector<1x8x8x8xf32> to vector<8x8x8xf32>
    %c0_352 = arith.constant 0 : index
    %c1_353 = arith.constant 1 : index
    %c2_354 = arith.constant 2 : index
    %c0_355 = arith.constant 0 : index
    %284 = vector.load %arg9[%c0_352, %c1_353, %c2_354, %c0_355] : memref<4x10x10x8xf32, #tpu.memory_space<vmem>>, vector<1x8x8x8xf32>
    %285 = vector.shape_cast %284 : vector<1x8x8x8xf32> to vector<8x8x8xf32>
    %c2_356 = arith.constant 2 : index
    %c1_357 = arith.constant 1 : index
    %c1_358 = arith.constant 1 : index
    %c0_359 = arith.constant 0 : index
    %286 = vector.load %arg9[%c2_356, %c1_357, %c1_358, %c0_359] : memref<4x10x10x8xf32, #tpu.memory_space<vmem>>, vector<1x8x8x8xf32>
    %287 = vector.shape_cast %286 : vector<1x8x8x8xf32> to vector<8x8x8xf32>
    %c3_360 = arith.constant 3 : index
    %c1_361 = arith.constant 1 : index
    %c1_362 = arith.constant 1 : index
    %c0_363 = arith.constant 0 : index
    %288 = vector.load %arg9[%c3_360, %c1_361, %c1_362, %c0_363] : memref<4x10x10x8xf32, #tpu.memory_space<vmem>>, vector<1x8x8x8xf32>
    %289 = vector.shape_cast %288 : vector<1x8x8x8xf32> to vector<8x8x8xf32>
    %c2_364 = arith.constant 2 : index
    %c1_365 = arith.constant 1 : index
    %c2_366 = arith.constant 2 : index
    %c0_367 = arith.constant 0 : index
    %290 = vector.load %arg9[%c2_364, %c1_365, %c2_366, %c0_367] : memref<4x10x10x8xf32, #tpu.memory_space<vmem>>, vector<1x8x8x8xf32>
    %291 = vector.shape_cast %290 : vector<1x8x8x8xf32> to vector<8x8x8xf32>
    %c0_368 = arith.constant 0 : index
    %c2_369 = arith.constant 2 : index
    %c1_370 = arith.constant 1 : index
    %c0_371 = arith.constant 0 : index
    %292 = vector.load %arg9[%c0_368, %c2_369, %c1_370, %c0_371] : memref<4x10x10x8xf32, #tpu.memory_space<vmem>>, vector<1x8x8x8xf32>
    %293 = vector.shape_cast %292 : vector<1x8x8x8xf32> to vector<8x8x8xf32>
    %c1_372 = arith.constant 1 : index
    %c2_373 = arith.constant 2 : index
    %c1_374 = arith.constant 1 : index
    %c0_375 = arith.constant 0 : index
    %294 = vector.load %arg9[%c1_372, %c2_373, %c1_374, %c0_375] : memref<4x10x10x8xf32, #tpu.memory_space<vmem>>, vector<1x8x8x8xf32>
    %295 = vector.shape_cast %294 : vector<1x8x8x8xf32> to vector<8x8x8xf32>
    %c0_376 = arith.constant 0 : index
    %c2_377 = arith.constant 2 : index
    %c2_378 = arith.constant 2 : index
    %c0_379 = arith.constant 0 : index
    %296 = vector.load %arg9[%c0_376, %c2_377, %c2_378, %c0_379] : memref<4x10x10x8xf32, #tpu.memory_space<vmem>>, vector<1x8x8x8xf32>
    %297 = vector.shape_cast %296 : vector<1x8x8x8xf32> to vector<8x8x8xf32>
    %298 = tpu.concatenate %281, %283, %285, %287, %289, %291, %293, %295, %297 in 2 : vector<8x8x8xf32>, vector<8x8x8xf32>, vector<8x8x8xf32>, vector<8x8x8xf32>, vector<8x8x8xf32>, vector<8x8x8xf32>, vector<8x8x8xf32>, vector<8x8x8xf32>, vector<8x8x8xf32> -> vector<8x8x72xf32>
    %299 = vector.shape_cast %298 : vector<8x8x72xf32> to vector<64x72xf32>
    %cst_380 = arith.constant dense<0.000000e+00> : vector<64x4xf32>
    %300 = tpu.matmul %299, %2, %cst_380 {dimension_numbers = #tpu.dot_dimension_numbers<[1], [0], [0], [1], [0, 0, 1, 1], [], []>} : vector<64x72xf32>, vector<72x4xf32>, vector<64x4xf32> -> vector<64x4xf32>
    %301 = vector.broadcast %3 : vector<1x4xf32> to vector<64x4xf32>
    %302 = arith.addf %300, %301 : vector<64x4xf32>
    %cst_381 = arith.constant 0.000000e+00 : f32
    %303 = vector.broadcast %cst_381 : f32 to vector<64x4xf32>
    %304 = arith.maximumf %302, %303 : vector<64x4xf32>
    %305 = vector.shape_cast %304 : vector<64x4xf32> to vector<8x8x4xf32>
    %306 = tpu.concatenate %279, %305 in 2 : vector<8x8x4xf32>, vector<8x8x4xf32> -> vector<8x8x8xf32>
    %c0_382 = arith.constant 0 : index
    %c0_383 = arith.constant 0 : index
    %c1_384 = arith.constant 1 : index
    %c0_385 = arith.constant 0 : index
    %c0_386 = arith.constant 0 : index
    %307 = vector.load %arg7[%c0_382, %c0_383, %c1_384, %c0_385, %c0_386] : memref<1x8x2x8x8xf32, #tpu.memory_space<vmem>>, vector<1x8x1x8x8xf32>
    %308 = vector.shape_cast %307 : vector<1x8x1x8x8xf32> to vector<8x8x8xf32>
    %309 = vector.shape_cast %306 : vector<8x8x8xf32> to vector<1x8x1x8x8xf32>
    tpu.vector_store %arg7[%c0_382, %c0_383, %c1_384, %c0_385, %c0_386], %309 {strides = array<i32>} : memref<1x8x2x8x8xf32, #tpu.memory_space<vmem>>, vector<1x8x1x8x8xf32>,
    return
  }
  func.func @transform_0(%arg0: i32) -> (i32, i32, i32, i32) {
    %c0_i32 = arith.constant 0 : i32
    %c0_i32_0 = arith.constant 0 : i32
    %c0_i32_1 = arith.constant 0 : i32
    %c0_i32_2 = arith.constant 0 : i32
    return %arg0, %c0_i32, %c0_i32_0, %c0_i32_1 : i32, i32, i32, i32
  }
  func.func @transform_1(%arg0: i32) -> (i32, i32, i32, i32) {
    %c0_i32 = arith.constant 0 : i32
    %c0_i32_0 = arith.constant 0 : i32
    %c0_i32_1 = arith.constant 0 : i32
    %c0_i32_2 = arith.constant 0 : i32
    return %arg0, %c0_i32, %c0_i32_0, %c0_i32_1 : i32, i32, i32, i32
  }
  func.func @transform_2(%arg0: i32) -> (i32, i32) {
    %c0_i32 = arith.constant 0 : i32
    %c0_i32_0 = arith.constant 0 : i32
    %c0_i32_1 = arith.constant 0 : i32
    return %c0_i32, %c0_i32_0 : i32, i32
  }
  func.func @transform_3(%arg0: i32) -> (i32, i32) {
    %c0_i32 = arith.constant 0 : i32
    %c0_i32_0 = arith.constant 0 : i32
    %c0_i32_1 = arith.constant 0 : i32
    return %c0_i32, %c0_i32_0 : i32, i32
  }
  func.func @transform_4(%arg0: i32) -> (i32, i32) {
    %c0_i32 = arith.constant 0 : i32
    %c0_i32_0 = arith.constant 0 : i32
    %c0_i32_1 = arith.constant 0 : i32
    return %c0_i32, %c0_i32_0 : i32, i32
  }
  func.func @transform_5(%arg0: i32) -> (i32, i32) {
    %c0_i32 = arith.constant 0 : i32
    %c0_i32_0 = arith.constant 0 : i32
    %c0_i32_1 = arith.constant 0 : i32
    return %c0_i32, %c0_i32_0 : i32, i32
  }
  func.func @transform_6(%arg0: i32) -> (i32, i32, i32, i32, i32) {
    %c0_i32 = arith.constant 0 : i32
    %c0_i32_0 = arith.constant 0 : i32
    %c0_i32_1 = arith.constant 0 : i32
    %c0_i32_2 = arith.constant 0 : i32
    %c0_i32_3 = arith.constant 0 : i32
    return %arg0, %c0_i32, %c0_i32_0, %c0_i32_1, %c0_i32_2 : i32, i32, i32, i32, i32
  }
}

</mosaic_0001>

<llo_original>
// kernel: decoder_forward.1
$region0: #{decoder_forward.1}
  #allocation0 [shape = 'u32[]', space=smem, size = 0x4, offset = 0x4, fixed_abs, tag = 'smem constant byte address 0x4 - core index']
  #allocation1 [shape = 'u32[72,128]{1,0:T(1,128)}', space=vmem, size = 0x9000, scoped, tag = 'internal scratch']
  #allocation2 [shape = 'f32[4,10,10,8]{3,2,1,0:T(8,128)}', space=vmem, size = 0x50000, scoped, tag = 'scratch operand']
  #allocation3 [shape = 'f32[4,10,10,8]{3,2,1,0:T(8,128)}', space=vmem, size = 0x50000, scoped, tag = 'scratch operand']
  %s0 = inlined_call_operand.vmem [shape: f32[2,8,8,8], index: 0, kind: input, shape index: {}]
  %s1 = inlined_call_operand.vmem [shape: s32[2,8,8,8], index: 1, kind: input, shape index: {}]
  %s2 = inlined_call_operand.vmem [shape: f32[72,8], index: 2, kind: input, shape index: {}]
  %s3 = inlined_call_operand.vmem [shape: f32[1,8], index: 3, kind: input, shape index: {}]
  %s4 = inlined_call_operand.vmem [shape: f32[72,4], index: 4, kind: input, shape index: {}]
  %s5 = inlined_call_operand.vmem [shape: f32[1,4], index: 5, kind: input, shape index: {}]
  %s6 = inlined_call_operand.vmem [shape: f32[2,8,2,8,8], index: 6, kind: output, shape index: {}]
  %s7 = sld [smem:[#allocation0]]
  $region57: #{decoder_forward.1} parent=0
    _
  %s9 = ssub.s32 1, %s7
  %s10 = scalar_select 0, %s9, %s7
  loop: start=0, step=1, limit=4
  $region2: #{decoder_forward.1} parent=0 // loop_pre_header
    _
  $region3: #{decoder_forward.1} parent=0 // loop_header
    %s12 = sphi 0, %s16
    %p13 = scmp.ge.s32.totalorder %s12, 4
    %s22 = sphi 0, %s24
    %s25 = sphi 0, %s22
    %s26 = sphi 0, %s25
    %s42 = sphi 0, %s26
    %s48 = sphi 0, %s50
    %s51 = sphi 0, %s48
    %s52 = sphi 0, %s51
    %s68 = sphi 0, %s52
    %s72 = sphi 0, %s72
    %s74 = sphi 0, %s72
    %s75 = sphi 0, %s74
    %s89 = sphi 0, %s75
    %s93 = sphi 0, %s93
    %s95 = sphi 0, %s93
    %s96 = sphi 0, %s95
    %s110 = sphi 0, %s96
    %s114 = sphi 0, %s114
    %s116 = sphi 0, %s114
    %s117 = sphi 0, %s116
    %s131 = sphi 0, %s117
    %s135 = sphi 0, %s135
    %s137 = sphi 0, %s135
    %s138 = sphi 0, %s137
    %s152 = sphi 0, %s138
    %s158 = sphi 0, %s160
    %s161 = sphi 0, %s158
    %s162 = sphi 0, %s161
    %s178 = sphi 0, %s162
  $region4: #{decoder_forward.1} parent=0 // loop_header_branch
    %15 = sbr.rel (%p13) target = $region8
  $region5: #{decoder_forward.1} parent=0 // loop_body
    %s17 = ssub.s32 %s12, 1
    %s18 = ssub.s32 %s12, 2
    %s19 = sadd.s32 %s12, 1
    %s20 = ssub.s32 %s12, %s19
    %p21 = scmp.eq.s32.totalorder %s20, 0
    %s23 = sadd.s32 %s22, 1
    %s24 = scalar_select %p21, %s22, %s23
    %p27 = pneg %p21
    %p28 = scmp.eq.s32.totalorder %s12, 1
    %p29 = por %p27, %p28
    %p30 = scmp.ne.s32.totalorder %s22, %s25
    %p31 = scmp.eq.s32.totalorder %s12, 0
    %p32 = por %p30, %p31
    %p33 = scmp.ne.s32.totalorder %s22, %s25
    %p34 = scmp.eq.s32.totalorder %s17, 1
    %p35 = por %p33, %p34
    %p36 = scmp.ne.s32.totalorder %s25, %s26
    %p37 = scmp.eq.s32.totalorder %s17, 0
    %p38 = por %p36, %p37
    %p39 = scmp.ne.s32.totalorder %s25, %s26
    %p40 = scmp.eq.s32.totalorder %s18, 1
    %p41 = por %p39, %p40
    %p43 = scmp.ne.s32.totalorder %s26, %s42
    %p44 = scmp.eq.s32.totalorder %s18, 0
    %p45 = por %p43, %p44
    %s46 = ssub.s32 %s12, %s19
    %p47 = scmp.eq.s32.totalorder %s46, 0
    %s49 = sadd.s32 %s48, 1
    %s50 = scalar_select %p47, %s48, %s49
    %p53 = pneg %p47
    %p54 = scmp.eq.s32.totalorder %s12, 1
    %p55 = por %p53, %p54
    %p56 = scmp.ne.s32.totalorder %s48, %s51
    %p57 = scmp.eq.s32.totalorder %s12, 0
    %p58 = por %p56, %p57
    %p59 = scmp.ne.s32.totalorder %s48, %s51
    %p60 = scmp.eq.s32.totalorder %s17, 1
    %p61 = por %p59, %p60
    %p62 = scmp.ne.s32.totalorder %s51, %s52
    %p63 = scmp.eq.s32.totalorder %s17, 0
    %p64 = por %p62, %p63
    %p65 = scmp.ne.s32.totalorder %s51, %s52
    %p66 = scmp.eq.s32.totalorder %s18, 1
    %p67 = por %p65, %p66
    %p69 = scmp.ne.s32.totalorder %s52, %s68
    %p70 = scmp.eq.s32.totalorder %s18, 0
    %p71 = por %p69, %p70
    %s73 = sadd.s32 %s72, 1
    %p76 = scmp.eq.s32.totalorder %s12, 1
    %p77 = scmp.ne.s32.totalorder %s72, %s74
    %p78 = scmp.eq.s32.totalorder %s12, 0
    %p79 = por %p77, %p78
    %p80 = scmp.ne.s32.totalorder %s72, %s74
    %p81 = scmp.eq.s32.totalorder %s17, 1
    %p82 = por %p80, %p81
    %p83 = scmp.ne.s32.totalorder %s74, %s75
    %p84 = scmp.eq.s32.totalorder %s17, 0
    %p85 = por %p83, %p84
    %p86 = scmp.ne.s32.totalorder %s74, %s75
    %p87 = scmp.eq.s32.totalorder %s18, 1
    %p88 = por %p86, %p87
    %p90 = scmp.ne.s32.totalorder %s75, %s89
    %p91 = scmp.eq.s32.totalorder %s18, 0
    %p92 = por %p90, %p91
    %s94 = sadd.s32 %s93, 1
    %p97 = scmp.eq.s32.totalorder %s12, 1
    %p98 = scmp.ne.s32.totalorder %s93, %s95
    %p99 = scmp.eq.s32.totalorder %s12, 0
    %p100 = por %p98, %p99
    %p101 = scmp.ne.s32.totalorder %s93, %s95
    %p102 = scmp.eq.s32.totalorder %s17, 1
    %p103 = por %p101, %p102
    %p104 = scmp.ne.s32.totalorder %s95, %s96
    %p105 = scmp.eq.s32.totalorder %s17, 0
    %p106 = por %p104, %p105
    %p107 = scmp.ne.s32.totalorder %s95, %s96
    %p108 = scmp.eq.s32.totalorder %s18, 1
    %p109 = por %p107, %p108
    %p111 = scmp.ne.s32.totalorder %s96, %s110
    %p112 = scmp.eq.s32.totalorder %s18, 0
    %p113 = por %p111, %p112
    %s115 = sadd.s32 %s114, 1
    %p118 = scmp.eq.s32.totalorder %s12, 1
    %p119 = scmp.ne.s32.totalorder %s114, %s116
    %p120 = scmp.eq.s32.totalorder %s12, 0
    %p121 = por %p119, %p120
    %p122 = scmp.ne.s32.totalorder %s114, %s116
    %p123 = scmp.eq.s32.totalorder %s17, 1
    %p124 = por %p122, %p123
    %p125 = scmp.ne.s32.totalorder %s116, %s117
    %p126 = scmp.eq.s32.totalorder %s17, 0
    %p127 = por %p125, %p126
    %p128 = scmp.ne.s32.totalorder %s116, %s117
    %p129 = scmp.eq.s32.totalorder %s18, 1
    %p130 = por %p128, %p129
    %p132 = scmp.ne.s32.totalorder %s117, %s131
    %p133 = scmp.eq.s32.totalorder %s18, 0
    %p134 = por %p132, %p133
    %s136 = sadd.s32 %s135, 1
    %p139 = scmp.eq.s32.totalorder %s12, 1
    %p140 = scmp.ne.s32.totalorder %s135, %s137
    %p141 = scmp.eq.s32.totalorder %s12, 0
    %p142 = por %p140, %p141
    %p143 = scmp.ne.s32.totalorder %s135, %s137
    %p144 = scmp.eq.s32.totalorder %s17, 1
    %p145 = por %p143, %p144
    %p146 = scmp.ne.s32.totalorder %s137, %s138
    %p147 = scmp.eq.s32.totalorder %s17, 0
    %p148 = por %p146, %p147
    %p149 = scmp.ne.s32.totalorder %s137, %s138
    %p150 = scmp.eq.s32.totalorder %s18, 1
    %p151 = por %p149, %p150
    %p153 = scmp.ne.s32.totalorder %s138, %s152
    %p154 = scmp.eq.s32.totalorder %s18, 0
    %p155 = por %p153, %p154
    %s156 = ssub.s32 %s12, %s19
    %p157 = scmp.eq.s32.totalorder %s156, 0
    %s159 = sadd.s32 %s158, 1
    %s160 = scalar_select %p157, %s158, %s159
    %p163 = pneg %p157
    %p164 = scmp.eq.s32.totalorder %s12, 1
    %p165 = por %p163, %p164
    %p166 = scmp.ne.s32.totalorder %s158, %s161
    %p167 = scmp.eq.s32.totalorder %s12, 0
    %p168 = por %p166, %p167
    %p169 = scmp.ne.s32.totalorder %s158, %s161
    %p170 = scmp.eq.s32.totalorder %s17, 1
    %p171 = por %p169, %p170
    %p172 = scmp.ne.s32.totalorder %s161, %s162
    %p173 = scmp.eq.s32.totalorder %s17, 0
    %p174 = por %p172, %p173
    %p175 = scmp.ne.s32.totalorder %s161, %s162
    %p176 = scmp.eq.s32.totalorder %s18, 1
    %p177 = por %p175, %p176
    %p179 = scmp.ne.s32.totalorder %s162, %s178
    %p180 = scmp.eq.s32.totalorder %s18, 0
    %p181 = por %p179, %p180
    %p182 = scmp.le.s32.totalorder 1, %s12
    %p183 = scmp.lt.s32.totalorder %s12, 3
    %p184 = pnand %p182, %p183
    %p185 = pneg %p184
    // Predicated region
    $region9: #{decoder_forward.1} parent=5 // pred_check
      _
    $region10: #{decoder_forward.1} parent=5 // pred_check_branch
      %187 = sbr.rel (%p184) target = $region12
    $region11: #{decoder_forward.1} parent=5 // pred_region
      %s188 = ssub.s32 %s12, 1
      // Predicated region
      $region13: #{decoder_forward.1} parent=11 // pred_check
        %p189 = pneg %p85
      $region14: #{decoder_forward.1} parent=11 // pred_check_branch
        %191 = sbr.rel (%p189) target = $region16
      $region15: #{decoder_forward.1} parent=11 // pred_region
        _
      $region16: #{decoder_forward.1} parent=11 // pred_fallthru
        _
      // Predicated region
      $region17: #{decoder_forward.1} parent=11 // pred_check
        %p192 = pneg %p106
      $region18: #{decoder_forward.1} parent=11 // pred_check_branch
        %194 = sbr.rel (%p192) target = $region20
      $region19: #{decoder_forward.1} parent=11 // pred_region
        _
      $region20: #{decoder_forward.1} parent=11 // pred_fallthru
        _
      // Predicated region
      $region21: #{decoder_forward.1} parent=11 // pred_check
        %p195 = pneg %p127
      $region22: #{decoder_forward.1} parent=11 // pred_check_branch
        %197 = sbr.rel (%p195) target = $region24
      $region23: #{decoder_forward.1} parent=11 // pred_region
        _
      $region24: #{decoder_forward.1} parent=11 // pred_fallthru
        _
      // Predicated region
      $region25: #{decoder_forward.1} parent=11 // pred_check
        %p198 = pneg %p148
      $region26: #{decoder_forward.1} parent=11 // pred_check_branch
        %200 = sbr.rel (%p198) target = $region28
      $region27: #{decoder_forward.1} parent=11 // pred_region
        _
      $region28: #{decoder_forward.1} parent=11 // pred_fallthru
        _
    $region12: #{decoder_forward.1} parent=5 // pred_fallthru
      _
    %p201 = scmp.lt.s32.totalorder %s12, 2
    // Predicated region
    $region29: #{decoder_forward.1} parent=5 // pred_check
      %p202 = pneg %p201
    $region30: #{decoder_forward.1} parent=5 // pred_check_branch
      %204 = sbr.rel (%p202) target = $region32
    $region31: #{decoder_forward.1} parent=5 // pred_region
      // Predicated region
      $region33: #{decoder_forward.1} parent=31 // pred_check
        %p205 = pneg %p32
      $region34: #{decoder_forward.1} parent=31 // pred_check_branch
        %207 = sbr.rel (%p205) target = $region36
      $region35: #{decoder_forward.1} parent=31 // pred_region
        %p208 = scmp.lt.s32.totalorder %s12, 1
        %s209 = scalar_select %p208, %s12, 1
        %s210 = smul.addr %s209, 8
        %s211 = smul.addr %s210, 8
        %s212 = scalar_lea.vmem %s0, %s211
      $region36: #{decoder_forward.1} parent=31 // pred_fallthru
        _
      // Predicated region
      $region37: #{decoder_forward.1} parent=31 // pred_check
        %p213 = pneg %p58
      $region38: #{decoder_forward.1} parent=31 // pred_check_branch
        %215 = sbr.rel (%p213) target = $region40
      $region39: #{decoder_forward.1} parent=31 // pred_region
        %p216 = scmp.lt.s32.totalorder %s12, 1
        %s217 = scalar_select %p216, %s12, 1
        %s218 = smul.addr %s217, 8
        %s219 = smul.addr %s218, 8
        %s220 = scalar_lea.vmem %s1, %s219
      $region40: #{decoder_forward.1} parent=31 // pred_fallthru
        _
    $region32: #{decoder_forward.1} parent=5 // pred_fallthru
      _
    %p221 = scmp.le.s32.totalorder 1, %s12
    %p222 = scmp.lt.s32.totalorder %s12, 3
    %p223 = pnand %p221, %p222
    %p224 = pneg %p223
    // Predicated region
    $region41: #{decoder_forward.1} parent=5 // pred_check
      _
    $region42: #{decoder_forward.1} parent=5 // pred_check_branch
      %226 = sbr.rel (%p223) target = $region44
    $region43: #{decoder_forward.1} parent=5 // pred_region
      %s227 = ssub.s32 %s12, 1
      %p228 = scmp.lt.s32.totalorder %s17, 1
      %s229 = scalar_select %p228, %s17, 1
      %s230 = smul.addr %s229, 8
      %s231 = smul.addr %s230, 8
      %s232 = scalar_lea.vmem %s0, %s231
      %p233 = pneg %p38
      %p234 = pneg %p35
      %p235 = scmp.lt.s32.totalorder %s17, 1
      %s236 = scalar_select %p235, %s17, 1
      %s237 = smul.addr %s236, 8
      %s238 = smul.addr %s237, 8
      %s239 = scalar_lea.vmem %s1, %s238
      %p240 = pneg %p64
      %p241 = pneg %p61
      %p242 = pneg %p85
      %p243 = pneg %p82
      %p244 = pneg %p106
      %p245 = pneg %p103
      %p246 = pneg %p127
      %p247 = pneg %p124
      %p248 = pneg %p148
      %p249 = pneg %p145
      %p250 = pneg %p174
      %p251 = pneg %p171
      %p252 = scmp.lt.s32.totalorder %s17, 1
      %s253 = scalar_select %p252, %s17, 1
      %s254 = smul.addr %s253, 16
      %s255 = smul.addr %s254, 8
      %s256 = scalar_lea.vmem %s6, %s255
      %p257 = scmp.lt.s32.totalorder %s17, 1
      %s258 = scalar_select %p257, %s17, 1
      %s259 = smul.addr %s258, 8
      %s260 = smul.addr %s259, 8
      %s261 = scalar_lea.vmem %s0, %s260
      %p262 = scmp.lt.s32.totalorder %s17, 1
      %s263 = scalar_select %p262, %s17, 1
      %s264 = smul.addr %s263, 8
      %s265 = smul.addr %s264, 8
      %s266 = scalar_lea.vmem %s1, %s265
      %p267 = scmp.lt.s32.totalorder %s17, 1
      %s268 = scalar_select %p267, %s17, 1
      %s269 = smul.addr %s268, 16
      %s270 = smul.addr %s269, 8
      %s271 = scalar_lea.vmem %s6, %s270
      %v272 = vld [vmem:[%s2] sm:$0xff]
      %v273 = vld [vmem:[%s2 + $0x8] sm:$0xff]
      %v274 = vld [vmem:[%s2 + $0x10] sm:$0xff]
      %v275 = vld [vmem:[%s2 + $0x18] sm:$0xff]
      %v276 = vld [vmem:[%s2 + $0x20] sm:$0xff]
      %v277 = vld [vmem:[%s2 + $0x28] sm:$0xff]
      %v278 = vld [vmem:[%s2 + $0x30] sm:$0xff]
      %v279 = vld [vmem:[%s2 + $0x38] sm:$0xff]
      %v280 = vld [vmem:[%s2 + $0x40] sm:$0xff]
      %v281 = vld [vmem:[%s3] sm:$0x1]
      %v282 = vld [vmem:[%s4] sm:$0xff]
      %v283 = vld [vmem:[%s4 + $0x8] sm:$0xff]
      %v284 = vld [vmem:[%s4 + $0x10] sm:$0xff]
      %v285 = vld [vmem:[%s4 + $0x18] sm:$0xff]
      %v286 = vld [vmem:[%s4 + $0x20] sm:$0xff]
      %v287 = vld [vmem:[%s4 + $0x28] sm:$0xff]
      %v288 = vld [vmem:[%s4 + $0x30] sm:$0xff]
      %v289 = vld [vmem:[%s4 + $0x38] sm:$0xff]
      %v290 = vld [vmem:[%s4 + $0x40] sm:$0xff]
      %v291 = vld [vmem:[%s5] sm:$0x1]
      %vm292 = vcmask 64512
      %293 = vst.msk [vmem:[#allocation2] sm:$0xff] %vm292, 0.0
      %vm294 = vcmask 58368
      %295 = vst.msk [vmem:[#allocation2 + $0x8] sm:$0x3] %vm294, 0.0
      %296 = vst.msk [vmem:[#allocation2 + $0x10] sm:$0xff] %vm292, 0.0
      %297 = vst.msk [vmem:[#allocation2 + $0x18] sm:$0x3] %vm294, 0.0
      %298 = vst.msk [vmem:[#allocation2 + $0x20] sm:$0xff] %vm292, 0.0
      %299 = vst.msk [vmem:[#allocation2 + $0x28] sm:$0x3] %vm294, 0.0
      %300 = vst.msk [vmem:[#allocation2 + $0x30] sm:$0xff] %vm292, 0.0
      %301 = vst.msk [vmem:[#allocation2 + $0x38] sm:$0x3] %vm294, 0.0
      %302 = vst.msk [vmem:[#allocation2 + $0x40] sm:$0xff] %vm292, 0.0
      %303 = vst.msk [vmem:[#allocation2 + $0x48] sm:$0x3] %vm294, 0.0
      %304 = vst.msk [vmem:[#allocation2 + $0x50] sm:$0xff] %vm292, 0.0
      %305 = vst.msk [vmem:[#allocation2 + $0x58] sm:$0x3] %vm294, 0.0
      %306 = vst.msk [vmem:[#allocation2 + $0x60] sm:$0xff] %vm292, 0.0
      %307 = vst.msk [vmem:[#allocation2 + $0x68] sm:$0x3] %vm294, 0.0
      %308 = vst.msk [vmem:[#allocation2 + $0x70] sm:$0xff] %vm292, 0.0
      %309 = vst.msk [vmem:[#allocation2 + $0x78] sm:$0x3] %vm294, 0.0
      %310 = vst.msk [vmem:[#allocation2 + $0x80] sm:$0xff] %vm292, 0.0
      %311 = vst.msk [vmem:[#allocation2 + $0x88] sm:$0x3] %vm294, 0.0
      %312 = vst.msk [vmem:[#allocation2 + $0x90] sm:$0xff] %vm292, 0.0
      %313 = vst.msk [vmem:[#allocation2 + $0x98] sm:$0x3] %vm294, 0.0
      %314 = vst.msk [vmem:[#allocation2 + $0xa0] sm:$0xff] %vm292, 0.0
      %315 = vst.msk [vmem:[#allocation2 + $0xa8] sm:$0x3] %vm294, 0.0
      %316 = vst.msk [vmem:[#allocation2 + $0xb0] sm:$0xff] %vm292, 0.0
      %317 = vst.msk [vmem:[#allocation2 + $0xb8] sm:$0x3] %vm294, 0.0
      %318 = vst.msk [vmem:[#allocation2 + $0xc0] sm:$0xff] %vm292, 0.0
      %319 = vst.msk [vmem:[#allocation2 + $0xc8] sm:$0x3] %vm294, 0.0
      %320 = vst.msk [vmem:[#allocation2 + $0xd0] sm:$0xff] %vm292, 0.0
      %321 = vst.msk [vmem:[#allocation2 + $0xd8] sm:$0x3] %vm294, 0.0
      %322 = vst.msk [vmem:[#allocation2 + $0xe0] sm:$0xff] %vm292, 0.0
      %323 = vst.msk [vmem:[#allocation2 + $0xe8] sm:$0x3] %vm294, 0.0
      %324 = vst.msk [vmem:[#allocation2 + $0xf0] sm:$0xff] %vm292, 0.0
      %325 = vst.msk [vmem:[#allocation2 + $0xf8] sm:$0x3] %vm294, 0.0
      %326 = vst.msk [vmem:[#allocation2 + $0x100] sm:$0xff] %vm292, 0.0
      %327 = vst.msk [vmem:[#allocation2 + $0x108] sm:$0x3] %vm294, 0.0
      %328 = vst.msk [vmem:[#allocation2 + $0x110] sm:$0xff] %vm292, 0.0
      %329 = vst.msk [vmem:[#allocation2 + $0x118] sm:$0x3] %vm294, 0.0
      %330 = vst.msk [vmem:[#allocation2 + $0x120] sm:$0xff] %vm292, 0.0
      %331 = vst.msk [vmem:[#allocation2 + $0x128] sm:$0x3] %vm294, 0.0
      %332 = vst.msk [vmem:[#allocation2 + $0x130] sm:$0xff] %vm292, 0.0
      %333 = vst.msk [vmem:[#allocation2 + $0x138] sm:$0x3] %vm294, 0.0
      %334 = vst.msk [vmem:[#allocation2 + $0x140] sm:$0xff] %vm292, 0.0
      %335 = vst.msk [vmem:[#allocation2 + $0x148] sm:$0x3] %vm294, 0.0
      %336 = vst.msk [vmem:[#allocation2 + $0x150] sm:$0xff] %vm292, 0.0
      %337 = vst.msk [vmem:[#allocation2 + $0x158] sm:$0x3] %vm294, 0.0
      %338 = vst.msk [vmem:[#allocation2 + $0x160] sm:$0xff] %vm292, 0.0
      %339 = vst.msk [vmem:[#allocation2 + $0x168] sm:$0x3] %vm294, 0.0
      %340 = vst.msk [vmem:[#allocation2 + $0x170] sm:$0xff] %vm292, 0.0
      %341 = vst.msk [vmem:[#allocation2 + $0x178] sm:$0x3] %vm294, 0.0
      %342 = vst.msk [vmem:[#allocation2 + $0x180] sm:$0xff] %vm292, 0.0
      %343 = vst.msk [vmem:[#allocation2 + $0x188] sm:$0x3] %vm294, 0.0
      %344 = vst.msk [vmem:[#allocation2 + $0x190] sm:$0xff] %vm292, 0.0
      %345 = vst.msk [vmem:[#allocation2 + $0x198] sm:$0x3] %vm294, 0.0
      %346 = vst.msk [vmem:[#allocation2 + $0x1a0] sm:$0xff] %vm292, 0.0
      %347 = vst.msk [vmem:[#allocation2 + $0x1a8] sm:$0x3] %vm294, 0.0
      %348 = vst.msk [vmem:[#allocation2 + $0x1b0] sm:$0xff] %vm292, 0.0
      %349 = vst.msk [vmem:[#allocation2 + $0x1b8] sm:$0x3] %vm294, 0.0
      %350 = vst.msk [vmem:[#allocation2 + $0x1c0] sm:$0xff] %vm292, 0.0
      %351 = vst.msk [vmem:[#allocation2 + $0x1c8] sm:$0x3] %vm294, 0.0
      %352 = vst.msk [vmem:[#allocation2 + $0x1d0] sm:$0xff] %vm292, 0.0
      %353 = vst.msk [vmem:[#allocation2 + $0x1d8] sm:$0x3] %vm294, 0.0
      %354 = vst.msk [vmem:[#allocation2 + $0x1e0] sm:$0xff] %vm292, 0.0
      %355 = vst.msk [vmem:[#allocation2 + $0x1e8] sm:$0x3] %vm294, 0.0
      %356 = vst.msk [vmem:[#allocation2 + $0x1f0] sm:$0xff] %vm292, 0.0
      %357 = vst.msk [vmem:[#allocation2 + $0x1f8] sm:$0x3] %vm294, 0.0
      %358 = vst.msk [vmem:[#allocation2 + $0x200] sm:$0xff] %vm292, 0.0
      %359 = vst.msk [vmem:[#allocation2 + $0x208] sm:$0x3] %vm294, 0.0
      %360 = vst.msk [vmem:[#allocation2 + $0x210] sm:$0xff] %vm292, 0.0
      %361 = vst.msk [vmem:[#allocation2 + $0x218] sm:$0x3] %vm294, 0.0
      %362 = vst.msk [vmem:[#allocation2 + $0x220] sm:$0xff] %vm292, 0.0
      %363 = vst.msk [vmem:[#allocation2 + $0x228] sm:$0x3] %vm294, 0.0
      %364 = vst.msk [vmem:[#allocation2 + $0x230] sm:$0xff] %vm292, 0.0
      %365 = vst.msk [vmem:[#allocation2 + $0x238] sm:$0x3] %vm294, 0.0
      %366 = vst.msk [vmem:[#allocation2 + $0x240] sm:$0xff] %vm292, 0.0
      %367 = vst.msk [vmem:[#allocation2 + $0x248] sm:$0x3] %vm294, 0.0
      %368 = vst.msk [vmem:[#allocation2 + $0x250] sm:$0xff] %vm292, 0.0
      %369 = vst.msk [vmem:[#allocation2 + $0x258] sm:$0x3] %vm294, 0.0
      %370 = vst.msk [vmem:[#allocation2 + $0x260] sm:$0xff] %vm292, 0.0
      %371 = vst.msk [vmem:[#allocation2 + $0x268] sm:$0x3] %vm294, 0.0
      %372 = vst.msk [vmem:[#allocation2 + $0x270] sm:$0xff] %vm292, 0.0
      %373 = vst.msk [vmem:[#allocation2 + $0x278] sm:$0x3] %vm294, 0.0
      %374 = vst.msk [vmem:[#allocation3] sm:$0xff] %vm292, 0.0
      %375 = vst.msk [vmem:[#allocation3 + $0x8] sm:$0x3] %vm294, 0.0
      %376 = vst.msk [vmem:[#allocation3 + $0x10] sm:$0xff] %vm292, 0.0
      %377 = vst.msk [vmem:[#allocation3 + $0x18] sm:$0x3] %vm294, 0.0
      %378 = vst.msk [vmem:[#allocation3 + $0x20] sm:$0xff] %vm292, 0.0
      %379 = vst.msk [vmem:[#allocation3 + $0x28] sm:$0x3] %vm294, 0.0
      %380 = vst.msk [vmem:[#allocation3 + $0x30] sm:$0xff] %vm292, 0.0
      %381 = vst.msk [vmem:[#allocation3 + $0x38] sm:$0x3] %vm294, 0.0
      %382 = vst.msk [vmem:[#allocation3 + $0x40] sm:$0xff] %vm292, 0.0
      %383 = vst.msk [vmem:[#allocation3 + $0x48] sm:$0x3] %vm294, 0.0
      %384 = vst.msk [vmem:[#allocation3 + $0x50] sm:$0xff] %vm292, 0.0
      %385 = vst.msk [vmem:[#allocation3 + $0x58] sm:$0x3] %vm294, 0.0
      %386 = vst.msk [vmem:[#allocation3 + $0x60] sm:$0xff] %vm292, 0.0
      %387 = vst.msk [vmem:[#allocation3 + $0x68] sm:$0x3] %vm294, 0.0
      %388 = vst.msk [vmem:[#allocation3 + $0x70] sm:$0xff] %vm292, 0.0
      %389 = vst.msk [vmem:[#allocation3 + $0x78] sm:$0x3] %vm294, 0.0
      %390 = vst.msk [vmem:[#allocation3 + $0x80] sm:$0xff] %vm292, 0.0
      %391 = vst.msk [vmem:[#allocation3 + $0x88] sm:$0x3] %vm294, 0.0
      %392 = vst.msk [vmem:[#allocation3 + $0x90] sm:$0xff] %vm292, 0.0
      %393 = vst.msk [vmem:[#allocation3 + $0x98] sm:$0x3] %vm294, 0.0
      %394 = vst.msk [vmem:[#allocation3 + $0xa0] sm:$0xff] %vm292, 0.0
      %395 = vst.msk [vmem:[#allocation3 + $0xa8] sm:$0x3] %vm294, 0.0
      %396 = vst.msk [vmem:[#allocation3 + $0xb0] sm:$0xff] %vm292, 0.0
      %397 = vst.msk [vmem:[#allocation3 + $0xb8] sm:$0x3] %vm294, 0.0
      %398 = vst.msk [vmem:[#allocation3 + $0xc0] sm:$0xff] %vm292, 0.0
      %399 = vst.msk [vmem:[#allocation3 + $0xc8] sm:$0x3] %vm294, 0.0
      %400 = vst.msk [vmem:[#allocation3 + $0xd0] sm:$0xff] %vm292, 0.0
      %401 = vst.msk [vmem:[#allocation3 + $0xd8] sm:$0x3] %vm294, 0.0
      %402 = vst.msk [vmem:[#allocation3 + $0xe0] sm:$0xff] %vm292, 0.0
      %403 = vst.msk [vmem:[#allocation3 + $0xe8] sm:$0x3] %vm294, 0.0
      %404 = vst.msk [vmem:[#allocation3 + $0xf0] sm:$0xff] %vm292, 0.0
      %405 = vst.msk [vmem:[#allocation3 + $0xf8] sm:$0x3] %vm294, 0.0
      %406 = vst.msk [vmem:[#allocation3 + $0x100] sm:$0xff] %vm292, 0.0
      %407 = vst.msk [vmem:[#allocation3 + $0x108] sm:$0x3] %vm294, 0.0
      %408 = vst.msk [vmem:[#allocation3 + $0x110] sm:$0xff] %vm292, 0.0
      %409 = vst.msk [vmem:[#allocation3 + $0x118] sm:$0x3] %vm294, 0.0
      %410 = vst.msk [vmem:[#allocation3 + $0x120] sm:$0xff] %vm292, 0.0
      %411 = vst.msk [vmem:[#allocation3 + $0x128] sm:$0x3] %vm294, 0.0
      %412 = vst.msk [vmem:[#allocation3 + $0x130] sm:$0xff] %vm292, 0.0
      %413 = vst.msk [vmem:[#allocation3 + $0x138] sm:$0x3] %vm294, 0.0
      %414 = vst.msk [vmem:[#allocation3 + $0x140] sm:$0xff] %vm292, 0.0
      %415 = vst.msk [vmem:[#allocation3 + $0x148] sm:$0x3] %vm294, 0.0
      %416 = vst.msk [vmem:[#allocation3 + $0x150] sm:$0xff] %vm292, 0.0
      %417 = vst.msk [vmem:[#allocation3 + $0x158] sm:$0x3] %vm294, 0.0
      %418 = vst.msk [vmem:[#allocation3 + $0x160] sm:$0xff] %vm292, 0.0
      %419 = vst.msk [vmem:[#allocation3 + $0x168] sm:$0x3] %vm294, 0.0
      %420 = vst.msk [vmem:[#allocation3 + $0x170] sm:$0xff] %vm292, 0.0
      %421 = vst.msk [vmem:[#allocation3 + $0x178] sm:$0x3] %vm294, 0.0
      %422 = vst.msk [vmem:[#allocation3 + $0x180] sm:$0xff] %vm292, 0.0
      %423 = vst.msk [vmem:[#allocation3 + $0x188] sm:$0x3] %vm294, 0.0
      %424 = vst.msk [vmem:[#allocation3 + $0x190] sm:$0xff] %vm292, 0.0
      %425 = vst.msk [vmem:[#allocation3 + $0x198] sm:$0x3] %vm294, 0.0
      %426 = vst.msk [vmem:[#allocation3 + $0x1a0] sm:$0xff] %vm292, 0.0
      %427 = vst.msk [vmem:[#allocation3 + $0x1a8] sm:$0x3] %vm294, 0.0
      %428 = vst.msk [vmem:[#allocation3 + $0x1b0] sm:$0xff] %vm292, 0.0
      %429 = vst.msk [vmem:[#allocation3 + $0x1b8] sm:$0x3] %vm294, 0.0
      %430 = vst.msk [vmem:[#allocation3 + $0x1c0] sm:$0xff] %vm292, 0.0
      %431 = vst.msk [vmem:[#allocation3 + $0x1c8] sm:$0x3] %vm294, 0.0
      %432 = vst.msk [vmem:[#allocation3 + $0x1d0] sm:$0xff] %vm292, 0.0
      %433 = vst.msk [vmem:[#allocation3 + $0x1d8] sm:$0x3] %vm294, 0.0
      %434 = vst.msk [vmem:[#allocation3 + $0x1e0] sm:$0xff] %vm292, 0.0
      %435 = vst.msk [vmem:[#allocation3 + $0x1e8] sm:$0x3] %vm294, 0.0
      %436 = vst.msk [vmem:[#allocation3 + $0x1f0] sm:$0xff] %vm292, 0.0
      %437 = vst.msk [vmem:[#allocation3 + $0x1f8] sm:$0x3] %vm294, 0.0
      %438 = vst.msk [vmem:[#allocation3 + $0x200] sm:$0xff] %vm292, 0.0
      %439 = vst.msk [vmem:[#allocation3 + $0x208] sm:$0x3] %vm294, 0.0
      %440 = vst.msk [vmem:[#allocation3 + $0x210] sm:$0xff] %vm292, 0.0
      %441 = vst.msk [vmem:[#allocation3 + $0x218] sm:$0x3] %vm294, 0.0
      %442 = vst.msk [vmem:[#allocation3 + $0x220] sm:$0xff] %vm292, 0.0
      %443 = vst.msk [vmem:[#allocation3 + $0x228] sm:$0x3] %vm294, 0.0
      %444 = vst.msk [vmem:[#allocation3 + $0x230] sm:$0xff] %vm292, 0.0
      %445 = vst.msk [vmem:[#allocation3 + $0x238] sm:$0x3] %vm294, 0.0
      %446 = vst.msk [vmem:[#allocation3 + $0x240] sm:$0xff] %vm292, 0.0
      %447 = vst.msk [vmem:[#allocation3 + $0x248] sm:$0x3] %vm294, 0.0
      %448 = vst.msk [vmem:[#allocation3 + $0x250] sm:$0xff] %vm292, 0.0
      %449 = vst.msk [vmem:[#allocation3 + $0x258] sm:$0x3] %vm294, 0.0
      %450 = vst.msk [vmem:[#allocation3 + $0x260] sm:$0xff] %vm292, 0.0
      %451 = vst.msk [vmem:[#allocation3 + $0x268] sm:$0x3] %vm294, 0.0
      %452 = vst.msk [vmem:[#allocation3 + $0x270] sm:$0xff] %vm292, 0.0
      %453 = vst.msk [vmem:[#allocation3 + $0x278] sm:$0x3] %vm294, 0.0
      %v454 = vld [vmem:[%s261] sm:$0xff]
      %v455 = vld [vmem:[%s261 + $0x8] sm:$0xff]
      %v456 = vld [vmem:[%s261 + $0x10] sm:$0xff]
      %v457 = vld [vmem:[%s261 + $0x18] sm:$0xff]
      %v458 = vld [vmem:[%s261 + $0x20] sm:$0xff]
      %v459 = vld [vmem:[%s261 + $0x28] sm:$0xff]
      %v460 = vld [vmem:[%s261 + $0x30] sm:$0xff]
      %v461 = vld [vmem:[%s261 + $0x38] sm:$0xff]
      %v462 = vld [vmem:[%s266] sm:$0xff]
      %v463 = vld [vmem:[%s266 + $0x8] sm:$0xff]
      %v464 = vld [vmem:[%s266 + $0x10] sm:$0xff]
      %v465 = vld [vmem:[%s266 + $0x18] sm:$0xff]
      %v466 = vld [vmem:[%s266 + $0x20] sm:$0xff]
      %v467 = vld [vmem:[%s266 + $0x28] sm:$0xff]
      %v468 = vld [vmem:[%s266 + $0x30] sm:$0xff]
      %v469 = vld [vmem:[%s266 + $0x38] sm:$0xff]
      %v470 = vlaneseq
      %v471 = vshrl.u32 %v470, 7
      %v472 = vmul.u32 %v471, 2
      %v473 = vadd.s32 %v472, 32
      %v474 = vadd.s32 %v472, 64
      %v475 = vadd.s32 %v472, 96
      %v476 = vadd.s32 %v472, 128
      %v477 = vadd.s32 %v472, 160
      %v478 = vadd.s32 %v472, 192
      %v479 = vadd.s32 %v472, 224
      %vm480 = vcmp.eq.s32.totalorder %v462, %v472
      %vm481 = vcmp.eq.s32.totalorder %v463, %v473
      %vm482 = vcmp.eq.s32.totalorder %v464, %v474
      %vm483 = vcmp.eq.s32.totalorder %v465, %v475
      %vm484 = vcmp.eq.s32.totalorder %v466, %v476
      %vm485 = vcmp.eq.s32.totalorder %v467, %v477
      %vm486 = vcmp.eq.s32.totalorder %v468, %v478
      %vm487 = vcmp.eq.s32.totalorder %v469, %v479
      %v488 = vsel %vm480, %v454, 0.0
      %v489 = vsel %vm481, %v455, 0.0
      %v490 = vsel %vm482, %v456, 0.0
      %v491 = vsel %vm483, %v457, 0.0
      %v492 = vsel %vm484, %v458, 0.0
      %v493 = vsel %vm485, %v459, 0.0
      %v494 = vsel %vm486, %v460, 0.0
      %v495 = vsel %vm487, %v461, 0.0
      %s496 = scalar_lea.vmem [#allocation2], 16
      %497 = vst.msk [vmem:[%s496 + $0x1] sm:$0xff] %vm292, %v488
      %498 = vst.msk [vmem:[%s496 + $0x11] sm:$0xff] %vm292, %v489
      %499 = vst.msk [vmem:[%s496 + $0x21] sm:$0xff] %vm292, %v490
      %500 = vst.msk [vmem:[%s496 + $0x31] sm:$0xff] %vm292, %v491
      %501 = vst.msk [vmem:[%s496 + $0x41] sm:$0xff] %vm292, %v492
      %502 = vst.msk [vmem:[%s496 + $0x51] sm:$0xff] %vm292, %v493
      %503 = vst.msk [vmem:[%s496 + $0x61] sm:$0xff] %vm292, %v494
      %504 = vst.msk [vmem:[%s496 + $0x71] sm:$0xff] %vm292, %v495
      %v505 = vadd.s32 %v472, 1
      %v506 = vadd.s32 %v505, 32
      %v507 = vadd.s32 %v505, 64
      %v508 = vadd.s32 %v505, 96
      %v509 = vadd.s32 %v505, 128
      %v510 = vadd.s32 %v505, 160
      %v511 = vadd.s32 %v505, 192
      %v512 = vadd.s32 %v505, 224
      %vm513 = vcmp.eq.s32.totalorder %v462, %v505
      %vm514 = vcmp.eq.s32.totalorder %v463, %v506
      %vm515 = vcmp.eq.s32.totalorder %v464, %v507
      %vm516 = vcmp.eq.s32.totalorder %v465, %v508
      %vm517 = vcmp.eq.s32.totalorder %v466, %v509
      %vm518 = vcmp.eq.s32.totalorder %v467, %v510
      %vm519 = vcmp.eq.s32.totalorder %v468, %v511
      %vm520 = vcmp.eq.s32.totalorder %v469, %v512
      %v521 = vsel %vm513, %v454, 0.0
      %v522 = vsel %vm514, %v455, 0.0
      %v523 = vsel %vm515, %v456, 0.0
      %v524 = vsel %vm516, %v457, 0.0
      %v525 = vsel %vm517, %v458, 0.0
      %v526 = vsel %vm518, %v459, 0.0
      %v527 = vsel %vm519, %v460, 0.0
      %v528 = vsel %vm520, %v461, 0.0
      %s529 = scalar_lea.vmem [#allocation2], 176
      %530 = vst.msk [vmem:[%s529 + $0x1] sm:$0xff] %vm292, %v521
      %531 = vst.msk [vmem:[%s529 + $0x11] sm:$0xff] %vm292, %v522
      %532 = vst.msk [vmem:[%s529 + $0x21] sm:$0xff] %vm292, %v523
      %533 = vst.msk [vmem:[%s529 + $0x31] sm:$0xff] %vm292, %v524
      %534 = vst.msk [vmem:[%s529 + $0x41] sm:$0xff] %vm292, %v525
      %535 = vst.msk [vmem:[%s529 + $0x51] sm:$0xff] %vm292, %v526
      %536 = vst.msk [vmem:[%s529 + $0x61] sm:$0xff] %vm292, %v527
      %537 = vst.msk [vmem:[%s529 + $0x71] sm:$0xff] %vm292, %v528
      %v538 = vadd.s32 %v472, 16
      %v539 = vadd.s32 %v472, 48
      %v540 = vadd.s32 %v472, 80
      %v541 = vadd.s32 %v472, 112
      %v542 = vadd.s32 %v472, 144
      %v543 = vadd.s32 %v472, 176
      %v544 = vadd.s32 %v472, 208
      %v545 = vadd.s32 %v472, 240
      %vm546 = vcmp.eq.s32.totalorder %v462, %v538
      %vm547 = vcmp.eq.s32.totalorder %v463, %v539
      %vm548 = vcmp.eq.s32.totalorder %v464, %v540
      %vm549 = vcmp.eq.s32.totalorder %v465, %v541
      %vm550 = vcmp.eq.s32.totalorder %v466, %v542
      %vm551 = vcmp.eq.s32.totalorder %v467, %v543
      %vm552 = vcmp.eq.s32.totalorder %v468, %v544
      %vm553 = vcmp.eq.s32.totalorder %v469, %v545
      %v554 = vsel %vm546, %v454, 0.0
      %v555 = vsel %vm547, %v455, 0.0
      %v556 = vsel %vm548, %v456, 0.0
      %v557 = vsel %vm549, %v457, 0.0
      %v558 = vsel %vm550, %v458, 0.0
      %v559 = vsel %vm551, %v459, 0.0
      %v560 = vsel %vm552, %v460, 0.0
      %v561 = vsel %vm553, %v461, 0.0
      %s562 = scalar_lea.vmem [#allocation2], 336
      %563 = vst.msk [vmem:[%s562 + $0x1] sm:$0xff] %vm292, %v554
      %564 = vst.msk [vmem:[%s562 + $0x11] sm:$0xff] %vm292, %v555
      %565 = vst.msk [vmem:[%s562 + $0x21] sm:$0xff] %vm292, %v556
      %566 = vst.msk [vmem:[%s562 + $0x31] sm:$0xff] %vm292, %v557
      %567 = vst.msk [vmem:[%s562 + $0x41] sm:$0xff] %vm292, %v558
      %568 = vst.msk [vmem:[%s562 + $0x51] sm:$0xff] %vm292, %v559
      %569 = vst.msk [vmem:[%s562 + $0x61] sm:$0xff] %vm292, %v560
      %570 = vst.msk [vmem:[%s562 + $0x71] sm:$0xff] %vm292, %v561
      %v571 = vadd.s32 %v505, 16
      %v572 = vadd.s32 %v505, 48
      %v573 = vadd.s32 %v505, 80
      %v574 = vadd.s32 %v505, 112
      %v575 = vadd.s32 %v505, 144
      %v576 = vadd.s32 %v505, 176
      %v577 = vadd.s32 %v505, 208
      %v578 = vadd.s32 %v505, 240
      %vm579 = vcmp.eq.s32.totalorder %v462, %v571
      %vm580 = vcmp.eq.s32.totalorder %v463, %v572
      %vm581 = vcmp.eq.s32.totalorder %v464, %v573
      %vm582 = vcmp.eq.s32.totalorder %v465, %v574
      %vm583 = vcmp.eq.s32.totalorder %v466, %v575
      %vm584 = vcmp.eq.s32.totalorder %v467, %v576
      %vm585 = vcmp.eq.s32.totalorder %v468, %v577
      %vm586 = vcmp.eq.s32.totalorder %v469, %v578
      %v587 = vsel %vm579, %v454, 0.0
      %v588 = vsel %vm580, %v455, 0.0
      %v589 = vsel %vm581, %v456, 0.0
      %v590 = vsel %vm582, %v457, 0.0
      %v591 = vsel %vm583, %v458, 0.0
      %v592 = vsel %vm584, %v459, 0.0
      %v593 = vsel %vm585, %v460, 0.0
      %v594 = vsel %vm586, %v461, 0.0
      %s595 = scalar_lea.vmem [#allocation2], 496
      %596 = vst.msk [vmem:[%s595 + $0x1] sm:$0xff] %vm292, %v587
      %597 = vst.msk [vmem:[%s595 + $0x11] sm:$0xff] %vm292, %v588
      %598 = vst.msk [vmem:[%s595 + $0x21] sm:$0xff] %vm292, %v589
      %599 = vst.msk [vmem:[%s595 + $0x31] sm:$0xff] %vm292, %v590
      %600 = vst.msk [vmem:[%s595 + $0x41] sm:$0xff] %vm292, %v591
      %601 = vst.msk [vmem:[%s595 + $0x51] sm:$0xff] %vm292, %v592
      %602 = vst.msk [vmem:[%s595 + $0x61] sm:$0xff] %vm292, %v593
      %603 = vst.msk [vmem:[%s595 + $0x71] sm:$0xff] %vm292, %v594
      %s604 = scalar_lea.vmem [#allocation2], 480
      %v605 = vld [vmem:[%s604] sm:$0xff]
      %v606 = vld [vmem:[%s604 + $0x10] sm:$0xff]
      %v607 = vld [vmem:[%s604 + $0x20] sm:$0xff]
      %v608 = vld [vmem:[%s604 + $0x30] sm:$0xff]
      %v609 = vld [vmem:[%s604 + $0x40] sm:$0xff]
      %v610 = vld [vmem:[%s604 + $0x50] sm:$0xff]
      %v611 = vld [vmem:[%s604 + $0x60] sm:$0xff]
      %v612 = vld [vmem:[%s604 + $0x70] sm:$0xff]
      %s613 = scalar_lea.vmem [#allocation2], 320
      %v614 = vld [vmem:[%s613 + $0x1] sm:$0xff]
      %v615 = vld [vmem:[%s613 + $0x11] sm:$0xff]
      %v616 = vld [vmem:[%s613 + $0x21] sm:$0xff]
      %v617 = vld [vmem:[%s613 + $0x31] sm:$0xff]
      %v618 = vld [vmem:[%s613 + $0x41] sm:$0xff]
      %v619 = vld [vmem:[%s613 + $0x51] sm:$0xff]
      %v620 = vld [vmem:[%s613 + $0x61] sm:$0xff]
      %v621 = vld [vmem:[%s613 + $0x71] sm:$0xff]
      %v622 = vld [vmem:[%s604 + $0x1] sm:$0xff]
      %v623 = vld [vmem:[%s604 + $0x11] sm:$0xff]
      %v624 = vld [vmem:[%s604 + $0x21] sm:$0xff]
      %v625 = vld [vmem:[%s604 + $0x31] sm:$0xff]
      %v626 = vld [vmem:[%s604 + $0x41] sm:$0xff]
      %v627 = vld [vmem:[%s604 + $0x51] sm:$0xff]
      %v628 = vld [vmem:[%s604 + $0x61] sm:$0xff]
      %v629 = vld [vmem:[%s604 + $0x71] sm:$0xff]
      %v630 = vld [vmem:[%s529] sm:$0xff]
      %v631 = vld [vmem:[%s529 + $0x10] sm:$0xff]
      %v632 = vld [vmem:[%s529 + $0x20] sm:$0xff]
      %v633 = vld [vmem:[%s529 + $0x30] sm:$0xff]
      %v634 = vld [vmem:[%s529 + $0x40] sm:$0xff]
      %v635 = vld [vmem:[%s529 + $0x50] sm:$0xff]
      %v636 = vld [vmem:[%s529 + $0x60] sm:$0xff]
      %v637 = vld [vmem:[%s529 + $0x70] sm:$0xff]
      %v638 = vld [vmem:[%s496 + $0x1] sm:$0xff]
      %v639 = vld [vmem:[%s496 + $0x11] sm:$0xff]
      %v640 = vld [vmem:[%s496 + $0x21] sm:$0xff]
      %v641 = vld [vmem:[%s496 + $0x31] sm:$0xff]
      %v642 = vld [vmem:[%s496 + $0x41] sm:$0xff]
      %v643 = vld [vmem:[%s496 + $0x51] sm:$0xff]
      %v644 = vld [vmem:[%s496 + $0x61] sm:$0xff]
      %v645 = vld [vmem:[%s496 + $0x71] sm:$0xff]
      %v646 = vld [vmem:[%s529 + $0x1] sm:$0xff]
      %v647 = vld [vmem:[%s529 + $0x11] sm:$0xff]
      %v648 = vld [vmem:[%s529 + $0x21] sm:$0xff]
      %v649 = vld [vmem:[%s529 + $0x31] sm:$0xff]
      %v650 = vld [vmem:[%s529 + $0x41] sm:$0xff]
      %v651 = vld [vmem:[%s529 + $0x51] sm:$0xff]
      %v652 = vld [vmem:[%s529 + $0x61] sm:$0xff]
      %v653 = vld [vmem:[%s529 + $0x71] sm:$0xff]
      %v654 = vld [vmem:[%s595] sm:$0xff]
      %v655 = vld [vmem:[%s595 + $0x10] sm:$0xff]
      %v656 = vld [vmem:[%s595 + $0x20] sm:$0xff]
      %v657 = vld [vmem:[%s595 + $0x30] sm:$0xff]
      %v658 = vld [vmem:[%s595 + $0x40] sm:$0xff]
      %v659 = vld [vmem:[%s595 + $0x50] sm:$0xff]
      %v660 = vld [vmem:[%s595 + $0x60] sm:$0xff]
      %v661 = vld [vmem:[%s595 + $0x70] sm:$0xff]
      %v662 = vld [vmem:[%s562 + $0x1] sm:$0xff]
      %v663 = vld [vmem:[%s562 + $0x11] sm:$0xff]
      %v664 = vld [vmem:[%s562 + $0x21] sm:$0xff]
      %v665 = vld [vmem:[%s562 + $0x31] sm:$0xff]
      %v666 = vld [vmem:[%s562 + $0x41] sm:$0xff]
      %v667 = vld [vmem:[%s562 + $0x51] sm:$0xff]
      %v668 = vld [vmem:[%s562 + $0x61] sm:$0xff]
      %v669 = vld [vmem:[%s562 + $0x71] sm:$0xff]
      %v670 = vld [vmem:[%s595 + $0x1] sm:$0xff]
      %v671 = vld [vmem:[%s595 + $0x11] sm:$0xff]
      %v672 = vld [vmem:[%s595 + $0x21] sm:$0xff]
      %v673 = vld [vmem:[%s595 + $0x31] sm:$0xff]
      %v674 = vld [vmem:[%s595 + $0x41] sm:$0xff]
      %v675 = vld [vmem:[%s595 + $0x51] sm:$0xff]
      %v676 = vld [vmem:[%s595 + $0x61] sm:$0xff]
      %v677 = vld [vmem:[%s595 + $0x71] sm:$0xff]
      %686 = vrot.lane.b32.xlu0 %v614, 8
      %v687 = vpop.permute.xlu0 %686
      %688 = vrot.lane.b32.xlu0 %v615, 8
      %v689 = vpop.permute.xlu0 %688
      %690 = vrot.lane.b32.xlu0 %v616, 8
      %v691 = vpop.permute.xlu0 %690
      %692 = vrot.lane.b32.xlu0 %v617, 8
      %v693 = vpop.permute.xlu0 %692
      %694 = vrot.lane.b32.xlu0 %v618, 8
      %v695 = vpop.permute.xlu0 %694
      %696 = vrot.lane.b32.xlu0 %v619, 8
      %v697 = vpop.permute.xlu0 %696
      %698 = vrot.lane.b32.xlu0 %v620, 8
      %v699 = vpop.permute.xlu0 %698
      %700 = vrot.lane.b32.xlu0 %v621, 8
      %v701 = vpop.permute.xlu0 %700
      %718 = vrot.lane.b32.xlu0 %v622, 16
      %v719 = vpop.permute.xlu0 %718
      %720 = vrot.lane.b32.xlu0 %v623, 16
      %v721 = vpop.permute.xlu0 %720
      %722 = vrot.lane.b32.xlu0 %v624, 16
      %v723 = vpop.permute.xlu0 %722
      %724 = vrot.lane.b32.xlu0 %v625, 16
      %v725 = vpop.permute.xlu0 %724
      %726 = vrot.lane.b32.xlu0 %v626, 16
      %v727 = vpop.permute.xlu0 %726
      %728 = vrot.lane.b32.xlu0 %v627, 16
      %v729 = vpop.permute.xlu0 %728
      %730 = vrot.lane.b32.xlu0 %v628, 16
      %v731 = vpop.permute.xlu0 %730
      %732 = vrot.lane.b32.xlu0 %v629, 16
      %v733 = vpop.permute.xlu0 %732
      %750 = vrot.lane.b32.xlu0 %v630, 24
      %v751 = vpop.permute.xlu0 %750
      %752 = vrot.lane.b32.xlu0 %v631, 24
      %v753 = vpop.permute.xlu0 %752
      %754 = vrot.lane.b32.xlu0 %v632, 24
      %v755 = vpop.permute.xlu0 %754
      %756 = vrot.lane.b32.xlu0 %v633, 24
      %v757 = vpop.permute.xlu0 %756
      %758 = vrot.lane.b32.xlu0 %v634, 24
      %v759 = vpop.permute.xlu0 %758
      %760 = vrot.lane.b32.xlu0 %v635, 24
      %v761 = vpop.permute.xlu0 %760
      %762 = vrot.lane.b32.xlu0 %v636, 24
      %v763 = vpop.permute.xlu0 %762
      %764 = vrot.lane.b32.xlu0 %v637, 24
      %v765 = vpop.permute.xlu0 %764
      %782 = vrot.lane.b32.xlu0 %v638, 32
      %v783 = vpop.permute.xlu0 %782
      %784 = vrot.lane.b32.xlu0 %v639, 32
      %v785 = vpop.permute.xlu0 %784
      %786 = vrot.lane.b32.xlu0 %v640, 32
      %v787 = vpop.permute.xlu0 %786
      %788 = vrot.lane.b32.xlu0 %v641, 32
      %v789 = vpop.permute.xlu0 %788
      %790 = vrot.lane.b32.xlu0 %v642, 32
      %v791 = vpop.permute.xlu0 %790
      %792 = vrot.lane.b32.xlu0 %v643, 32
      %v793 = vpop.permute.xlu0 %792
      %794 = vrot.lane.b32.xlu0 %v644, 32
      %v795 = vpop.permute.xlu0 %794
      %796 = vrot.lane.b32.xlu0 %v645, 32
      %v797 = vpop.permute.xlu0 %796
      %814 = vrot.lane.b32.xlu0 %v646, 40
      %v815 = vpop.permute.xlu0 %814
      %816 = vrot.lane.b32.xlu0 %v647, 40
      %v817 = vpop.permute.xlu0 %816
      %818 = vrot.lane.b32.xlu0 %v648, 40
      %v819 = vpop.permute.xlu0 %818
      %820 = vrot.lane.b32.xlu0 %v649, 40
      %v821 = vpop.permute.xlu0 %820
      %822 = vrot.lane.b32.xlu0 %v650, 40
      %v823 = vpop.permute.xlu0 %822
      %824 = vrot.lane.b32.xlu0 %v651, 40
      %v825 = vpop.permute.xlu0 %824
      %826 = vrot.lane.b32.xlu0 %v652, 40
      %v827 = vpop.permute.xlu0 %826
      %828 = vrot.lane.b32.xlu0 %v653, 40
      %v829 = vpop.permute.xlu0 %828
      %846 = vrot.lane.b32.xlu0 %v654, 48
      %v847 = vpop.permute.xlu0 %846
      %848 = vrot.lane.b32.xlu0 %v655, 48
      %v849 = vpop.permute.xlu0 %848
      %850 = vrot.lane.b32.xlu0 %v656, 48
      %v851 = vpop.permute.xlu0 %850
      %852 = vrot.lane.b32.xlu0 %v657, 48
      %v853 = vpop.permute.xlu0 %852
      %854 = vrot.lane.b32.xlu0 %v658, 48
      %v855 = vpop.permute.xlu0 %854
      %856 = vrot.lane.b32.xlu0 %v659, 48
      %v857 = vpop.permute.xlu0 %856
      %858 = vrot.lane.b32.xlu0 %v660, 48
      %v859 = vpop.permute.xlu0 %858
      %860 = vrot.lane.b32.xlu0 %v661, 48
      %v861 = vpop.permute.xlu0 %860
      %878 = vrot.lane.b32.xlu0 %v662, 56
      %v879 = vpop.permute.xlu0 %878
      %880 = vrot.lane.b32.xlu0 %v663, 56
      %v881 = vpop.permute.xlu0 %880
      %882 = vrot.lane.b32.xlu0 %v664, 56
      %v883 = vpop.permute.xlu0 %882
      %884 = vrot.lane.b32.xlu0 %v665, 56
      %v885 = vpop.permute.xlu0 %884
      %886 = vrot.lane.b32.xlu0 %v666, 56
      %v887 = vpop.permute.xlu0 %886
      %888 = vrot.lane.b32.xlu0 %v667, 56
      %v889 = vpop.permute.xlu0 %888
      %890 = vrot.lane.b32.xlu0 %v668, 56
      %v891 = vpop.permute.xlu0 %890
      %892 = vrot.lane.b32.xlu0 %v669, 56
      %v893 = vpop.permute.xlu0 %892
      %910 = vrot.lane.b32.xlu0 %v670, 64
      %v911 = vpop.permute.xlu0 %910
      %912 = vrot.lane.b32.xlu0 %v671, 64
      %v913 = vpop.permute.xlu0 %912
      %914 = vrot.lane.b32.xlu0 %v672, 64
      %v915 = vpop.permute.xlu0 %914
      %916 = vrot.lane.b32.xlu0 %v673, 64
      %v917 = vpop.permute.xlu0 %916
      %918 = vrot.lane.b32.xlu0 %v674, 64
      %v919 = vpop.permute.xlu0 %918
      %920 = vrot.lane.b32.xlu0 %v675, 64
      %v921 = vpop.permute.xlu0 %920
      %922 = vrot.lane.b32.xlu0 %v676, 64
      %v923 = vpop.permute.xlu0 %922
      %924 = vrot.lane.b32.xlu0 %v677, 64
      %v925 = vpop.permute.xlu0 %924
      %v934 = vsel %vm292, %v605, %v687
      %v935 = vsel %vm292, %v606, %v689
      %v936 = vsel %vm292, %v607, %v691
      %v937 = vsel %vm292, %v608, %v693
      %v938 = vsel %vm292, %v609, %v695
      %v939 = vsel %vm292, %v610, %v697
      %v940 = vsel %vm292, %v611, %v699
      %v941 = vsel %vm292, %v612, %v701
      %vm942 = vcmask 130048
      %v943 = vsel %vm942, %v934, %v719
      %v944 = vsel %vm942, %v935, %v721
      %v945 = vsel %vm942, %v936, %v723
      %v946 = vsel %vm942, %v937, %v725
      %v947 = vsel %vm942, %v938, %v727
      %v948 = vsel %vm942, %v939, %v729
      %v949 = vsel %vm942, %v940, %v731
      %v950 = vsel %vm942, %v941, %v733
      %vm951 = vcmask 195584
      %v952 = vsel %vm951, %v943, %v751
      %v953 = vsel %vm951, %v944, %v753
      %v954 = vsel %vm951, %v945, %v755
      %v955 = vsel %vm951, %v946, %v757
      %v956 = vsel %vm951, %v947, %v759
      %v957 = vsel %vm951, %v948, %v761
      %v958 = vsel %vm951, %v949, %v763
      %v959 = vsel %vm951, %v950, %v765
      %vm960 = vcmask 261120
      %v961 = vsel %vm960, %v952, %v783
      %v962 = vsel %vm960, %v953, %v785
      %v963 = vsel %vm960, %v954, %v787
      %v964 = vsel %vm960, %v955, %v789
      %v965 = vsel %vm960, %v956, %v791
      %v966 = vsel %vm960, %v957, %v793
      %v967 = vsel %vm960, %v958, %v795
      %v968 = vsel %vm960, %v959, %v797
      %vm969 = vcmask 326656
      %v970 = vsel %vm969, %v961, %v815
      %v971 = vsel %vm969, %v962, %v817
      %v972 = vsel %vm969, %v963, %v819
      %v973 = vsel %vm969, %v964, %v821
      %v974 = vsel %vm969, %v965, %v823
      %v975 = vsel %vm969, %v966, %v825
      %v976 = vsel %vm969, %v967, %v827
      %v977 = vsel %vm969, %v968, %v829
      %vm978 = vcmask 392192
      %v979 = vsel %vm978, %v970, %v847
      %v980 = vsel %vm978, %v971, %v849
      %v981 = vsel %vm978, %v972, %v851
      %v982 = vsel %vm978, %v973, %v853
      %v983 = vsel %vm978, %v974, %v855
      %v984 = vsel %vm978, %v975, %v857
      %v985 = vsel %vm978, %v976, %v859
      %v986 = vsel %vm978, %v977, %v861
      %vm987 = vcmask 457728
      %v988 = vsel %vm987, %v979, %v879
      %v989 = vsel %vm987, %v980, %v881
      %v990 = vsel %vm987, %v981, %v883
      %v991 = vsel %vm987, %v982, %v885
      %v992 = vsel %vm987, %v983, %v887
      %v993 = vsel %vm987, %v984, %v889
      %v994 = vsel %vm987, %v985, %v891
      %v995 = vsel %vm987, %v986, %v893
      %vm996 = vcmask 523264
      %v997 = vsel %vm996, %v988, %v911
      %v998 = vsel %vm996, %v989, %v913
      %v999 = vsel %vm996, %v990, %v915
      %v1000 = vsel %vm996, %v991, %v917
      %v1001 = vsel %vm996, %v992, %v919
      %v1002 = vsel %vm996, %v993, %v921
      %v1003 = vsel %vm996, %v994, %v923
      %v1004 = vsel %vm996, %v995, %v925
      %v1006 = vperm.slane %v281, 0
      %vm1008 = vcmask 588800
      %v1010 = vsel %vm1008, %v997, 0
      %v1013 = vsel %vm1008, %v998, 0
      %v1016 = vsel %vm1008, %v999, 0
      %v1019 = vsel %vm1008, %v1000, 0
      %v1022 = vsel %vm1008, %v1001, 0
      %v1025 = vsel %vm1008, %v1002, 0
      %v1028 = vsel %vm1008, %v1003, 0
      %v1031 = vsel %vm1008, %v1004, 0
      %1033 = vmatpush.msra.mxu0 0.0
      %1034 = vmatpush.msra.mxu0 0.0
      %1035 = vmatpush.msra.mxu0 0.0
      %1036 = vmatpush.msra.mxu0 0.0
      %1037 = vmatpush.msra.mxu0 0.0
      %1038 = vmatpush.msra.mxu0 0.0
      %1039 = vmatpush.msra.mxu0 0.0
      %1040 = vmatpush.msra.mxu0 %v280
      %1041 = vmatpush.msra.mxu0 %v279
      %1042 = vmatpush.msra.mxu0 %v278
      %1043 = vmatpush.msra.mxu0 %v277
      %1044 = vmatpush.msra.mxu0 %v276
      %1045 = vmatpush.msra.mxu0 %v275
      %1046 = vmatpush.msra.mxu0 %v274
      %1047 = vmatpush.msra.mxu0 %v273
      %1048 = vmatpush.msra.mxu0 %v272
      %1049 = vmatmul.f32.gmra.mxu0 %v1010
      %v1050 = vpop.f32.mrf.mxu0
      %v1051 = vadd.f32 %v1006, %v1050
      %1052 = vmatmul.f32.gmra.mxu0 %v1013
      %v1053 = vpop.f32.mrf.mxu0
      %v1054 = vadd.f32 %v1006, %v1053
      %1055 = vmatmul.f32.gmra.mxu0 %v1016
      %v1056 = vpop.f32.mrf.mxu0
      %v1057 = vadd.f32 %v1006, %v1056
      %1058 = vmatmul.f32.gmra.mxu0 %v1019
      %v1059 = vpop.f32.mrf.mxu0
      %v1060 = vadd.f32 %v1006, %v1059
      %1061 = vmatmul.f32.gmra.mxu0 %v1022
      %v1062 = vpop.f32.mrf.mxu0
      %v1063 = vadd.f32 %v1006, %v1062
      %1064 = vmatmul.f32.gmra.mxu0 %v1025
      %v1065 = vpop.f32.mrf.mxu0
      %v1066 = vadd.f32 %v1006, %v1065
      %1067 = vmatmul.f32.gmra.mxu0 %v1028
      %v1068 = vpop.f32.mrf.mxu0
      %v1069 = vadd.f32 %v1006, %v1068
      %1070 = vmatmul.f32.gmra.mxu0 %v1031
      %v1071 = vpop.f32.mrf.mxu0
      %v1072 = vadd.f32 %v1006, %v1071
      %1073 = vdwg.mxu0
      %v1074 = vmax.f32 %v1051, 0.0
      %v1075 = vmax.f32 %v1054, 0.0
      %v1076 = vmax.f32 %v1057, 0.0
      %v1077 = vmax.f32 %v1060, 0.0
      %v1078 = vmax.f32 %v1063, 0.0
      %v1079 = vmax.f32 %v1066, 0.0
      %v1080 = vmax.f32 %v1069, 0.0
      %v1081 = vmax.f32 %v1072, 0.0
      %s1082 = scalar_lea.vmem [#allocation3], 16
      %1083 = vst.msk [vmem:[%s1082 + $0x1] sm:$0xff] %vm292, %v1074
      %1084 = vst.msk [vmem:[%s1082 + $0x11] sm:$0xff] %vm292, %v1075
      %1085 = vst.msk [vmem:[%s1082 + $0x21] sm:$0xff] %vm292, %v1076
      %1086 = vst.msk [vmem:[%s1082 + $0x31] sm:$0xff] %vm292, %v1077
      %1087 = vst.msk [vmem:[%s1082 + $0x41] sm:$0xff] %vm292, %v1078
      %1088 = vst.msk [vmem:[%s1082 + $0x51] sm:$0xff] %vm292, %v1079
      %1089 = vst.msk [vmem:[%s1082 + $0x61] sm:$0xff] %vm292, %v1080
      %1090 = vst.msk [vmem:[%s1082 + $0x71] sm:$0xff] %vm292, %v1081
      %v1091 = vld [vmem:[%s613 + $0x1] sm:$0xff]
      %v1092 = vld [vmem:[%s613 + $0x11] sm:$0xff]
      %v1093 = vld [vmem:[%s613 + $0x21] sm:$0xff]
      %v1094 = vld [vmem:[%s613 + $0x31] sm:$0xff]
      %v1095 = vld [vmem:[%s613 + $0x41] sm:$0xff]
      %v1096 = vld [vmem:[%s613 + $0x51] sm:$0xff]
      %v1097 = vld [vmem:[%s613 + $0x61] sm:$0xff]
      %v1098 = vld [vmem:[%s613 + $0x71] sm:$0xff]
      %v1099 = vld [vmem:[%s604 + $0x1] sm:$0xff]
      %v1100 = vld [vmem:[%s604 + $0x11] sm:$0xff]
      %v1101 = vld [vmem:[%s604 + $0x21] sm:$0xff]
      %v1102 = vld [vmem:[%s604 + $0x31] sm:$0xff]
      %v1103 = vld [vmem:[%s604 + $0x41] sm:$0xff]
      %v1104 = vld [vmem:[%s604 + $0x51] sm:$0xff]
      %v1105 = vld [vmem:[%s604 + $0x61] sm:$0xff]
      %v1106 = vld [vmem:[%s604 + $0x71] sm:$0xff]
      %v1107 = vld [vmem:[%s613 + $0x2] sm:$0xff]
      %v1108 = vld [vmem:[%s613 + $0x12] sm:$0xff]
      %v1109 = vld [vmem:[%s613 + $0x22] sm:$0xff]
      %v1110 = vld [vmem:[%s613 + $0x32] sm:$0xff]
      %v1111 = vld [vmem:[%s613 + $0x42] sm:$0xff]
      %v1112 = vld [vmem:[%s613 + $0x52] sm:$0xff]
      %v1113 = vld [vmem:[%s613 + $0x62] sm:$0xff]
      %v1114 = vld [vmem:[%s613 + $0x72] sm:$0xff]
      %v1115 = vld [vmem:[%s496 + $0x1] sm:$0xff]
      %v1116 = vld [vmem:[%s496 + $0x11] sm:$0xff]
      %v1117 = vld [vmem:[%s496 + $0x21] sm:$0xff]
      %v1118 = vld [vmem:[%s496 + $0x31] sm:$0xff]
      %v1119 = vld [vmem:[%s496 + $0x41] sm:$0xff]
      %v1120 = vld [vmem:[%s496 + $0x51] sm:$0xff]
      %v1121 = vld [vmem:[%s496 + $0x61] sm:$0xff]
      %v1122 = vld [vmem:[%s496 + $0x71] sm:$0xff]
      %v1123 = vld [vmem:[%s529 + $0x1] sm:$0xff]
      %v1124 = vld [vmem:[%s529 + $0x11] sm:$0xff]
      %v1125 = vld [vmem:[%s529 + $0x21] sm:$0xff]
      %v1126 = vld [vmem:[%s529 + $0x31] sm:$0xff]
      %v1127 = vld [vmem:[%s529 + $0x41] sm:$0xff]
      %v1128 = vld [vmem:[%s529 + $0x51] sm:$0xff]
      %v1129 = vld [vmem:[%s529 + $0x61] sm:$0xff]
      %v1130 = vld [vmem:[%s529 + $0x71] sm:$0xff]
      %v1131 = vld [vmem:[%s496 + $0x2] sm:$0xff]
      %v1132 = vld [vmem:[%s496 + $0x12] sm:$0xff]
      %v1133 = vld [vmem:[%s496 + $0x22] sm:$0xff]
      %v1134 = vld [vmem:[%s496 + $0x32] sm:$0xff]
      %v1135 = vld [vmem:[%s496 + $0x42] sm:$0xff]
      %v1136 = vld [vmem:[%s496 + $0x52] sm:$0xff]
      %v1137 = vld [vmem:[%s496 + $0x62] sm:$0xff]
      %v1138 = vld [vmem:[%s496 + $0x72] sm:$0xff]
      %v1139 = vld [vmem:[%s562 + $0x1] sm:$0xff]
      %v1140 = vld [vmem:[%s562 + $0x11] sm:$0xff]
      %v1141 = vld [vmem:[%s562 + $0x21] sm:$0xff]
      %v1142 = vld [vmem:[%s562 + $0x31] sm:$0xff]
      %v1143 = vld [vmem:[%s562 + $0x41] sm:$0xff]
      %v1144 = vld [vmem:[%s562 + $0x51] sm:$0xff]
      %v1145 = vld [vmem:[%s562 + $0x61] sm:$0xff]
      %v1146 = vld [vmem:[%s562 + $0x71] sm:$0xff]
      %v1147 = vld [vmem:[%s595 + $0x1] sm:$0xff]
      %v1148 = vld [vmem:[%s595 + $0x11] sm:$0xff]
      %v1149 = vld [vmem:[%s595 + $0x21] sm:$0xff]
      %v1150 = vld [vmem:[%s595 + $0x31] sm:$0xff]
      %v1151 = vld [vmem:[%s595 + $0x41] sm:$0xff]
      %v1152 = vld [vmem:[%s595 + $0x51] sm:$0xff]
      %v1153 = vld [vmem:[%s595 + $0x61] sm:$0xff]
      %v1154 = vld [vmem:[%s595 + $0x71] sm:$0xff]
      %v1155 = vld [vmem:[%s562 + $0x2] sm:$0xff]
      %v1156 = vld [vmem:[%s562 + $0x12] sm:$0xff]
      %v1157 = vld [vmem:[%s562 + $0x22] sm:$0xff]
      %v1158 = vld [vmem:[%s562 + $0x32] sm:$0xff]
      %v1159 = vld [vmem:[%s562 + $0x42] sm:$0xff]
      %v1160 = vld [vmem:[%s562 + $0x52] sm:$0xff]
      %v1161 = vld [vmem:[%s562 + $0x62] sm:$0xff]
      %v1162 = vld [vmem:[%s562 + $0x72] sm:$0xff]
      %1171 = vrot.lane.b32.xlu0 %v1099, 8
      %v1172 = vpop.permute.xlu0 %1171
      %1173 = vrot.lane.b32.xlu0 %v1100, 8
      %v1174 = vpop.permute.xlu0 %1173
      %1175 = vrot.lane.b32.xlu0 %v1101, 8
      %v1176 = vpop.permute.xlu0 %1175
      %1177 = vrot.lane.b32.xlu0 %v1102, 8
      %v1178 = vpop.permute.xlu0 %1177
      %1179 = vrot.lane.b32.xlu0 %v1103, 8
      %v1180 = vpop.permute.xlu0 %1179
      %1181 = vrot.lane.b32.xlu0 %v1104, 8
      %v1182 = vpop.permute.xlu0 %1181
      %1183 = vrot.lane.b32.xlu0 %v1105, 8
      %v1184 = vpop.permute.xlu0 %1183
      %1185 = vrot.lane.b32.xlu0 %v1106, 8
      %v1186 = vpop.permute.xlu0 %1185
      %1203 = vrot.lane.b32.xlu0 %v1107, 16
      %v1204 = vpop.permute.xlu0 %1203
      %1205 = vrot.lane.b32.xlu0 %v1108, 16
      %v1206 = vpop.permute.xlu0 %1205
      %1207 = vrot.lane.b32.xlu0 %v1109, 16
      %v1208 = vpop.permute.xlu0 %1207
      %1209 = vrot.lane.b32.xlu0 %v1110, 16
      %v1210 = vpop.permute.xlu0 %1209
      %1211 = vrot.lane.b32.xlu0 %v1111, 16
      %v1212 = vpop.permute.xlu0 %1211
      %1213 = vrot.lane.b32.xlu0 %v1112, 16
      %v1214 = vpop.permute.xlu0 %1213
      %1215 = vrot.lane.b32.xlu0 %v1113, 16
      %v1216 = vpop.permute.xlu0 %1215
      %1217 = vrot.lane.b32.xlu0 %v1114, 16
      %v1218 = vpop.permute.xlu0 %1217
      %1235 = vrot.lane.b32.xlu0 %v1115, 24
      %v1236 = vpop.permute.xlu0 %1235
      %1237 = vrot.lane.b32.xlu0 %v1116, 24
      %v1238 = vpop.permute.xlu0 %1237
      %1239 = vrot.lane.b32.xlu0 %v1117, 24
      %v1240 = vpop.permute.xlu0 %1239
      %1241 = vrot.lane.b32.xlu0 %v1118, 24
      %v1242 = vpop.permute.xlu0 %1241
      %1243 = vrot.lane.b32.xlu0 %v1119, 24
      %v1244 = vpop.permute.xlu0 %1243
      %1245 = vrot.lane.b32.xlu0 %v1120, 24
      %v1246 = vpop.permute.xlu0 %1245
      %1247 = vrot.lane.b32.xlu0 %v1121, 24
      %v1248 = vpop.permute.xlu0 %1247
      %1249 = vrot.lane.b32.xlu0 %v1122, 24
      %v1250 = vpop.permute.xlu0 %1249
      %1267 = vrot.lane.b32.xlu0 %v1123, 32
      %v1268 = vpop.permute.xlu0 %1267
      %1269 = vrot.lane.b32.xlu0 %v1124, 32
      %v1270 = vpop.permute.xlu0 %1269
      %1271 = vrot.lane.b32.xlu0 %v1125, 32
      %v1272 = vpop.permute.xlu0 %1271
      %1273 = vrot.lane.b32.xlu0 %v1126, 32
      %v1274 = vpop.permute.xlu0 %1273
      %1275 = vrot.lane.b32.xlu0 %v1127, 32
      %v1276 = vpop.permute.xlu0 %1275
      %1277 = vrot.lane.b32.xlu0 %v1128, 32
      %v1278 = vpop.permute.xlu0 %1277
      %1279 = vrot.lane.b32.xlu0 %v1129, 32
      %v1280 = vpop.permute.xlu0 %1279
      %1281 = vrot.lane.b32.xlu0 %v1130, 32
      %v1282 = vpop.permute.xlu0 %1281
      %1299 = vrot.lane.b32.xlu0 %v1131, 40
      %v1300 = vpop.permute.xlu0 %1299
      %1301 = vrot.lane.b32.xlu0 %v1132, 40
      %v1302 = vpop.permute.xlu0 %1301
      %1303 = vrot.lane.b32.xlu0 %v1133, 40
      %v1304 = vpop.permute.xlu0 %1303
      %1305 = vrot.lane.b32.xlu0 %v1134, 40
      %v1306 = vpop.permute.xlu0 %1305
      %1307 = vrot.lane.b32.xlu0 %v1135, 40
      %v1308 = vpop.permute.xlu0 %1307
      %1309 = vrot.lane.b32.xlu0 %v1136, 40
      %v1310 = vpop.permute.xlu0 %1309
      %1311 = vrot.lane.b32.xlu0 %v1137, 40
      %v1312 = vpop.permute.xlu0 %1311
      %1313 = vrot.lane.b32.xlu0 %v1138, 40
      %v1314 = vpop.permute.xlu0 %1313
      %1331 = vrot.lane.b32.xlu0 %v1139, 48
      %v1332 = vpop.permute.xlu0 %1331
      %1333 = vrot.lane.b32.xlu0 %v1140, 48
      %v1334 = vpop.permute.xlu0 %1333
      %1335 = vrot.lane.b32.xlu0 %v1141, 48
      %v1336 = vpop.permute.xlu0 %1335
      %1337 = vrot.lane.b32.xlu0 %v1142, 48
      %v1338 = vpop.permute.xlu0 %1337
      %1339 = vrot.lane.b32.xlu0 %v1143, 48
      %v1340 = vpop.permute.xlu0 %1339
      %1341 = vrot.lane.b32.xlu0 %v1144, 48
      %v1342 = vpop.permute.xlu0 %1341
      %1343 = vrot.lane.b32.xlu0 %v1145, 48
      %v1344 = vpop.permute.xlu0 %1343
      %1345 = vrot.lane.b32.xlu0 %v1146, 48
      %v1346 = vpop.permute.xlu0 %1345
      %1363 = vrot.lane.b32.xlu0 %v1147, 56
      %v1364 = vpop.permute.xlu0 %1363
      %1365 = vrot.lane.b32.xlu0 %v1148, 56
      %v1366 = vpop.permute.xlu0 %1365
      %1367 = vrot.lane.b32.xlu0 %v1149, 56
      %v1368 = vpop.permute.xlu0 %1367
      %1369 = vrot.lane.b32.xlu0 %v1150, 56
      %v1370 = vpop.permute.xlu0 %1369
      %1371 = vrot.lane.b32.xlu0 %v1151, 56
      %v1372 = vpop.permute.xlu0 %1371
      %1373 = vrot.lane.b32.xlu0 %v1152, 56
      %v1374 = vpop.permute.xlu0 %1373
      %1375 = vrot.lane.b32.xlu0 %v1153, 56
      %v1376 = vpop.permute.xlu0 %1375
      %1377 = vrot.lane.b32.xlu0 %v1154, 56
      %v1378 = vpop.permute.xlu0 %1377
      %1395 = vrot.lane.b32.xlu0 %v1155, 64
      %v1396 = vpop.permute.xlu0 %1395
      %1397 = vrot.lane.b32.xlu0 %v1156, 64
      %v1398 = vpop.permute.xlu0 %1397
      %1399 = vrot.lane.b32.xlu0 %v1157, 64
      %v1400 = vpop.permute.xlu0 %1399
      %1401 = vrot.lane.b32.xlu0 %v1158, 64
      %v1402 = vpop.permute.xlu0 %1401
      %1403 = vrot.lane.b32.xlu0 %v1159, 64
      %v1404 = vpop.permute.xlu0 %1403
      %1405 = vrot.lane.b32.xlu0 %v1160, 64
      %v1406 = vpop.permute.xlu0 %1405
      %1407 = vrot.lane.b32.xlu0 %v1161, 64
      %v1408 = vpop.permute.xlu0 %1407
      %1409 = vrot.lane.b32.xlu0 %v1162, 64
      %v1410 = vpop.permute.xlu0 %1409
      %v1419 = vsel %vm292, %v1091, %v1172
      %v1420 = vsel %vm292, %v1092, %v1174
      %v1421 = vsel %vm292, %v1093, %v1176
      %v1422 = vsel %vm292, %v1094, %v1178
      %v1423 = vsel %vm292, %v1095, %v1180
      %v1424 = vsel %vm292, %v1096, %v1182
      %v1425 = vsel %vm292, %v1097, %v1184
      %v1426 = vsel %vm292, %v1098, %v1186
      %v1427 = vsel %vm942, %v1419, %v1204
      %v1428 = vsel %vm942, %v1420, %v1206
      %v1429 = vsel %vm942, %v1421, %v1208
      %v1430 = vsel %vm942, %v1422, %v1210
      %v1431 = vsel %vm942, %v1423, %v1212
      %v1432 = vsel %vm942, %v1424, %v1214
      %v1433 = vsel %vm942, %v1425, %v1216
      %v1434 = vsel %vm942, %v1426, %v1218
      %v1435 = vsel %vm951, %v1427, %v1236
      %v1436 = vsel %vm951, %v1428, %v1238
      %v1437 = vsel %vm951, %v1429, %v1240
      %v1438 = vsel %vm951, %v1430, %v1242
      %v1439 = vsel %vm951, %v1431, %v1244
      %v1440 = vsel %vm951, %v1432, %v1246
      %v1441 = vsel %vm951, %v1433, %v1248
      %v1442 = vsel %vm951, %v1434, %v1250
      %v1443 = vsel %vm960, %v1435, %v1268
      %v1444 = vsel %vm960, %v1436, %v1270
      %v1445 = vsel %vm960, %v1437, %v1272
      %v1446 = vsel %vm960, %v1438, %v1274
      %v1447 = vsel %vm960, %v1439, %v1276
      %v1448 = vsel %vm960, %v1440, %v1278
      %v1449 = vsel %vm960, %v1441, %v1280
      %v1450 = vsel %vm960, %v1442, %v1282
      %v1451 = vsel %vm969, %v1443, %v1300
      %v1452 = vsel %vm969, %v1444, %v1302
      %v1453 = vsel %vm969, %v1445, %v1304
      %v1454 = vsel %vm969, %v1446, %v1306
      %v1455 = vsel %vm969, %v1447, %v1308
      %v1456 = vsel %vm969, %v1448, %v1310
      %v1457 = vsel %vm969, %v1449, %v1312
      %v1458 = vsel %vm969, %v1450, %v1314
      %v1459 = vsel %vm978, %v1451, %v1332
      %v1460 = vsel %vm978, %v1452, %v1334
      %v1461 = vsel %vm978, %v1453, %v1336
      %v1462 = vsel %vm978, %v1454, %v1338
      %v1463 = vsel %vm978, %v1455, %v1340
      %v1464 = vsel %vm978, %v1456, %v1342
      %v1465 = vsel %vm978, %v1457, %v1344
      %v1466 = vsel %vm978, %v1458, %v1346
      %v1467 = vsel %vm987, %v1459, %v1364
      %v1468 = vsel %vm987, %v1460, %v1366
      %v1469 = vsel %vm987, %v1461, %v1368
      %v1470 = vsel %vm987, %v1462, %v1370
      %v1471 = vsel %vm987, %v1463, %v1372
      %v1472 = vsel %vm987, %v1464, %v1374
      %v1473 = vsel %vm987, %v1465, %v1376
      %v1474 = vsel %vm987, %v1466, %v1378
      %v1475 = vsel %vm996, %v1467, %v1396
      %v1476 = vsel %vm996, %v1468, %v1398
      %v1477 = vsel %vm996, %v1469, %v1400
      %v1478 = vsel %vm996, %v1470, %v1402
      %v1479 = vsel %vm996, %v1471, %v1404
      %v1480 = vsel %vm996, %v1472, %v1406
      %v1481 = vsel %vm996, %v1473, %v1408
      %v1482 = vsel %vm996, %v1474, %v1410
      %v1484 = vsel %vm1008, %v1475, 0
      %v1487 = vsel %vm1008, %v1476, 0
      %v1490 = vsel %vm1008, %v1477, 0
      %v1493 = vsel %vm1008, %v1478, 0
      %v1496 = vsel %vm1008, %v1479, 0
      %v1499 = vsel %vm1008, %v1480, 0
      %v1502 = vsel %vm1008, %v1481, 0
      %v1505 = vsel %vm1008, %v1482, 0
      %1507 = vmatpush.msra.mxu0 0.0
      %1508 = vmatpush.msra.mxu0 0.0
      %1509 = vmatpush.msra.mxu0 0.0
      %1510 = vmatpush.msra.mxu0 0.0
      %1511 = vmatpush.msra.mxu0 0.0
      %1512 = vmatpush.msra.mxu0 0.0
      %1513 = vmatpush.msra.mxu0 0.0
      %1514 = vmatpush.msra.mxu0 %v280
      %1515 = vmatpush.msra.mxu0 %v279
      %1516 = vmatpush.msra.mxu0 %v278
      %1517 = vmatpush.msra.mxu0 %v277
      %1518 = vmatpush.msra.mxu0 %v276
      %1519 = vmatpush.msra.mxu0 %v275
      %1520 = vmatpush.msra.mxu0 %v274
      %1521 = vmatpush.msra.mxu0 %v273
      %1522 = vmatpush.msra.mxu0 %v272
      %1523 = vmatmul.f32.gmra.mxu0 %v1484
      %v1524 = vpop.f32.mrf.mxu0
      %v1525 = vadd.f32 %v1006, %v1524
      %1526 = vmatmul.f32.gmra.mxu0 %v1487
      %v1527 = vpop.f32.mrf.mxu0
      %v1528 = vadd.f32 %v1006, %v1527
      %1529 = vmatmul.f32.gmra.mxu0 %v1490
      %v1530 = vpop.f32.mrf.mxu0
      %v1531 = vadd.f32 %v1006, %v1530
      %1532 = vmatmul.f32.gmra.mxu0 %v1493
      %v1533 = vpop.f32.mrf.mxu0
      %v1534 = vadd.f32 %v1006, %v1533
      %1535 = vmatmul.f32.gmra.mxu0 %v1496
      %v1536 = vpop.f32.mrf.mxu0
      %v1537 = vadd.f32 %v1006, %v1536
      %1538 = vmatmul.f32.gmra.mxu0 %v1499
      %v1539 = vpop.f32.mrf.mxu0
      %v1540 = vadd.f32 %v1006, %v1539
      %1541 = vmatmul.f32.gmra.mxu0 %v1502
      %v1542 = vpop.f32.mrf.mxu0
      %v1543 = vadd.f32 %v1006, %v1542
      %1544 = vmatmul.f32.gmra.mxu0 %v1505
      %v1545 = vpop.f32.mrf.mxu0
      %v1546 = vadd.f32 %v1006, %v1545
      %1547 = vdwg.mxu0
      %v1548 = vmax.f32 %v1525, 0.0
      %v1549 = vmax.f32 %v1528, 0.0
      %v1550 = vmax.f32 %v1531, 0.0
      %v1551 = vmax.f32 %v1534, 0.0
      %v1552 = vmax.f32 %v1537, 0.0
      %v1553 = vmax.f32 %v1540, 0.0
      %v1554 = vmax.f32 %v1543, 0.0
      %v1555 = vmax.f32 %v1546, 0.0
      %s1556 = scalar_lea.vmem [#allocation3], 176
      %1557 = vst.msk [vmem:[%s1556 + $0x1] sm:$0xff] %vm292, %v1548
      %1558 = vst.msk [vmem:[%s1556 + $0x11] sm:$0xff] %vm292, %v1549
      %1559 = vst.msk [vmem:[%s1556 + $0x21] sm:$0xff] %vm292, %v1550
      %1560 = vst.msk [vmem:[%s1556 + $0x31] sm:$0xff] %vm292, %v1551
      %1561 = vst.msk [vmem:[%s1556 + $0x41] sm:$0xff] %vm292, %v1552
      %1562 = vst.msk [vmem:[%s1556 + $0x51] sm:$0xff] %vm292, %v1553
      %1563 = vst.msk [vmem:[%s1556 + $0x61] sm:$0xff] %vm292, %v1554
      %1564 = vst.msk [vmem:[%s1556 + $0x71] sm:$0xff] %vm292, %v1555
      %v1565 = vld [vmem:[%s529] sm:$0xff]
      %v1566 = vld [vmem:[%s529 + $0x10] sm:$0xff]
      %v1567 = vld [vmem:[%s529 + $0x20] sm:$0xff]
      %v1568 = vld [vmem:[%s529 + $0x30] sm:$0xff]
      %v1569 = vld [vmem:[%s529 + $0x40] sm:$0xff]
      %v1570 = vld [vmem:[%s529 + $0x50] sm:$0xff]
      %v1571 = vld [vmem:[%s529 + $0x60] sm:$0xff]
      %v1572 = vld [vmem:[%s529 + $0x70] sm:$0xff]
      %v1573 = vld [vmem:[%s496 + $0x1] sm:$0xff]
      %v1574 = vld [vmem:[%s496 + $0x11] sm:$0xff]
      %v1575 = vld [vmem:[%s496 + $0x21] sm:$0xff]
      %v1576 = vld [vmem:[%s496 + $0x31] sm:$0xff]
      %v1577 = vld [vmem:[%s496 + $0x41] sm:$0xff]
      %v1578 = vld [vmem:[%s496 + $0x51] sm:$0xff]
      %v1579 = vld [vmem:[%s496 + $0x61] sm:$0xff]
      %v1580 = vld [vmem:[%s496 + $0x71] sm:$0xff]
      %v1581 = vld [vmem:[%s529 + $0x1] sm:$0xff]
      %v1582 = vld [vmem:[%s529 + $0x11] sm:$0xff]
      %v1583 = vld [vmem:[%s529 + $0x21] sm:$0xff]
      %v1584 = vld [vmem:[%s529 + $0x31] sm:$0xff]
      %v1585 = vld [vmem:[%s529 + $0x41] sm:$0xff]
      %v1586 = vld [vmem:[%s529 + $0x51] sm:$0xff]
      %v1587 = vld [vmem:[%s529 + $0x61] sm:$0xff]
      %v1588 = vld [vmem:[%s529 + $0x71] sm:$0xff]
      %v1589 = vld [vmem:[%s595] sm:$0xff]
      %v1590 = vld [vmem:[%s595 + $0x10] sm:$0xff]
      %v1591 = vld [vmem:[%s595 + $0x20] sm:$0xff]
      %v1592 = vld [vmem:[%s595 + $0x30] sm:$0xff]
      %v1593 = vld [vmem:[%s595 + $0x40] sm:$0xff]
      %v1594 = vld [vmem:[%s595 + $0x50] sm:$0xff]
      %v1595 = vld [vmem:[%s595 + $0x60] sm:$0xff]
      %v1596 = vld [vmem:[%s595 + $0x70] sm:$0xff]
      %v1597 = vld [vmem:[%s562 + $0x1] sm:$0xff]
      %v1598 = vld [vmem:[%s562 + $0x11] sm:$0xff]
      %v1599 = vld [vmem:[%s562 + $0x21] sm:$0xff]
      %v1600 = vld [vmem:[%s562 + $0x31] sm:$0xff]
      %v1601 = vld [vmem:[%s562 + $0x41] sm:$0xff]
      %v1602 = vld [vmem:[%s562 + $0x51] sm:$0xff]
      %v1603 = vld [vmem:[%s562 + $0x61] sm:$0xff]
      %v1604 = vld [vmem:[%s562 + $0x71] sm:$0xff]
      %v1605 = vld [vmem:[%s595 + $0x1] sm:$0xff]
      %v1606 = vld [vmem:[%s595 + $0x11] sm:$0xff]
      %v1607 = vld [vmem:[%s595 + $0x21] sm:$0xff]
      %v1608 = vld [vmem:[%s595 + $0x31] sm:$0xff]
      %v1609 = vld [vmem:[%s595 + $0x41] sm:$0xff]
      %v1610 = vld [vmem:[%s595 + $0x51] sm:$0xff]
      %v1611 = vld [vmem:[%s595 + $0x61] sm:$0xff]
      %v1612 = vld [vmem:[%s595 + $0x71] sm:$0xff]
      %s1613 = scalar_lea.vmem [#allocation2], 192
      %v1614 = vld [vmem:[%s1613] sm:$0xff]
      %v1615 = vld [vmem:[%s1613 + $0x10] sm:$0xff]
      %v1616 = vld [vmem:[%s1613 + $0x20] sm:$0xff]
      %v1617 = vld [vmem:[%s1613 + $0x30] sm:$0xff]
      %v1618 = vld [vmem:[%s1613 + $0x40] sm:$0xff]
      %v1619 = vld [vmem:[%s1613 + $0x50] sm:$0xff]
      %v1620 = vld [vmem:[%s1613 + $0x60] sm:$0xff]
      %v1621 = vld [vmem:[%s1613 + $0x70] sm:$0xff]
      %s1622 = scalar_lea.vmem [#allocation2], 32
      %v1623 = vld [vmem:[%s1622 + $0x1] sm:$0xff]
      %v1624 = vld [vmem:[%s1622 + $0x11] sm:$0xff]
      %v1625 = vld [vmem:[%s1622 + $0x21] sm:$0xff]
      %v1626 = vld [vmem:[%s1622 + $0x31] sm:$0xff]
      %v1627 = vld [vmem:[%s1622 + $0x41] sm:$0xff]
      %v1628 = vld [vmem:[%s1622 + $0x51] sm:$0xff]
      %v1629 = vld [vmem:[%s1622 + $0x61] sm:$0xff]
      %v1630 = vld [vmem:[%s1622 + $0x71] sm:$0xff]
      %v1631 = vld [vmem:[%s1613 + $0x1] sm:$0xff]
      %v1632 = vld [vmem:[%s1613 + $0x11] sm:$0xff]
      %v1633 = vld [vmem:[%s1613 + $0x21] sm:$0xff]
      %v1634 = vld [vmem:[%s1613 + $0x31] sm:$0xff]
      %v1635 = vld [vmem:[%s1613 + $0x41] sm:$0xff]
      %v1636 = vld [vmem:[%s1613 + $0x51] sm:$0xff]
      %v1637 = vld [vmem:[%s1613 + $0x61] sm:$0xff]
      %v1638 = vld [vmem:[%s1613 + $0x71] sm:$0xff]
      %1647 = vrot.lane.b32.xlu0 %v1573, 8
      %v1648 = vpop.permute.xlu0 %1647
      %1649 = vrot.lane.b32.xlu0 %v1574, 8
      %v1650 = vpop.permute.xlu0 %1649
      %1651 = vrot.lane.b32.xlu0 %v1575, 8
      %v1652 = vpop.permute.xlu0 %1651
      %1653 = vrot.lane.b32.xlu0 %v1576, 8
      %v1654 = vpop.permute.xlu0 %1653
      %1655 = vrot.lane.b32.xlu0 %v1577, 8
      %v1656 = vpop.permute.xlu0 %1655
      %1657 = vrot.lane.b32.xlu0 %v1578, 8
      %v1658 = vpop.permute.xlu0 %1657
      %1659 = vrot.lane.b32.xlu0 %v1579, 8
      %v1660 = vpop.permute.xlu0 %1659
      %1661 = vrot.lane.b32.xlu0 %v1580, 8
      %v1662 = vpop.permute.xlu0 %1661
      %1679 = vrot.lane.b32.xlu0 %v1581, 16
      %v1680 = vpop.permute.xlu0 %1679
      %1681 = vrot.lane.b32.xlu0 %v1582, 16
      %v1682 = vpop.permute.xlu0 %1681
      %1683 = vrot.lane.b32.xlu0 %v1583, 16
      %v1684 = vpop.permute.xlu0 %1683
      %1685 = vrot.lane.b32.xlu0 %v1584, 16
      %v1686 = vpop.permute.xlu0 %1685
      %1687 = vrot.lane.b32.xlu0 %v1585, 16
      %v1688 = vpop.permute.xlu0 %1687
      %1689 = vrot.lane.b32.xlu0 %v1586, 16
      %v1690 = vpop.permute.xlu0 %1689
      %1691 = vrot.lane.b32.xlu0 %v1587, 16
      %v1692 = vpop.permute.xlu0 %1691
      %1693 = vrot.lane.b32.xlu0 %v1588, 16
      %v1694 = vpop.permute.xlu0 %1693
      %1711 = vrot.lane.b32.xlu0 %v1589, 24
      %v1712 = vpop.permute.xlu0 %1711
      %1713 = vrot.lane.b32.xlu0 %v1590, 24
      %v1714 = vpop.permute.xlu0 %1713
      %1715 = vrot.lane.b32.xlu0 %v1591, 24
      %v1716 = vpop.permute.xlu0 %1715
      %1717 = vrot.lane.b32.xlu0 %v1592, 24
      %v1718 = vpop.permute.xlu0 %1717
      %1719 = vrot.lane.b32.xlu0 %v1593, 24
      %v1720 = vpop.permute.xlu0 %1719
      %1721 = vrot.lane.b32.xlu0 %v1594, 24
      %v1722 = vpop.permute.xlu0 %1721
      %1723 = vrot.lane.b32.xlu0 %v1595, 24
      %v1724 = vpop.permute.xlu0 %1723
      %1725 = vrot.lane.b32.xlu0 %v1596, 24
      %v1726 = vpop.permute.xlu0 %1725
      %1743 = vrot.lane.b32.xlu0 %v1597, 32
      %v1744 = vpop.permute.xlu0 %1743
      %1745 = vrot.lane.b32.xlu0 %v1598, 32
      %v1746 = vpop.permute.xlu0 %1745
      %1747 = vrot.lane.b32.xlu0 %v1599, 32
      %v1748 = vpop.permute.xlu0 %1747
      %1749 = vrot.lane.b32.xlu0 %v1600, 32
      %v1750 = vpop.permute.xlu0 %1749
      %1751 = vrot.lane.b32.xlu0 %v1601, 32
      %v1752 = vpop.permute.xlu0 %1751
      %1753 = vrot.lane.b32.xlu0 %v1602, 32
      %v1754 = vpop.permute.xlu0 %1753
      %1755 = vrot.lane.b32.xlu0 %v1603, 32
      %v1756 = vpop.permute.xlu0 %1755
      %1757 = vrot.lane.b32.xlu0 %v1604, 32
      %v1758 = vpop.permute.xlu0 %1757
      %1775 = vrot.lane.b32.xlu0 %v1605, 40
      %v1776 = vpop.permute.xlu0 %1775
      %1777 = vrot.lane.b32.xlu0 %v1606, 40
      %v1778 = vpop.permute.xlu0 %1777
      %1779 = vrot.lane.b32.xlu0 %v1607, 40
      %v1780 = vpop.permute.xlu0 %1779
      %1781 = vrot.lane.b32.xlu0 %v1608, 40
      %v1782 = vpop.permute.xlu0 %1781
      %1783 = vrot.lane.b32.xlu0 %v1609, 40
      %v1784 = vpop.permute.xlu0 %1783
      %1785 = vrot.lane.b32.xlu0 %v1610, 40
      %v1786 = vpop.permute.xlu0 %1785
      %1787 = vrot.lane.b32.xlu0 %v1611, 40
      %v1788 = vpop.permute.xlu0 %1787
      %1789 = vrot.lane.b32.xlu0 %v1612, 40
      %v1790 = vpop.permute.xlu0 %1789
      %1807 = vrot.lane.b32.xlu0 %v1614, 48
      %v1808 = vpop.permute.xlu0 %1807
      %1809 = vrot.lane.b32.xlu0 %v1615, 48
      %v1810 = vpop.permute.xlu0 %1809
      %1811 = vrot.lane.b32.xlu0 %v1616, 48
      %v1812 = vpop.permute.xlu0 %1811
      %1813 = vrot.lane.b32.xlu0 %v1617, 48
      %v1814 = vpop.permute.xlu0 %1813
      %1815 = vrot.lane.b32.xlu0 %v1618, 48
      %v1816 = vpop.permute.xlu0 %1815
      %1817 = vrot.lane.b32.xlu0 %v1619, 48
      %v1818 = vpop.permute.xlu0 %1817
      %1819 = vrot.lane.b32.xlu0 %v1620, 48
      %v1820 = vpop.permute.xlu0 %1819
      %1821 = vrot.lane.b32.xlu0 %v1621, 48
      %v1822 = vpop.permute.xlu0 %1821
      %1839 = vrot.lane.b32.xlu0 %v1623, 56
      %v1840 = vpop.permute.xlu0 %1839
      %1841 = vrot.lane.b32.xlu0 %v1624, 56
      %v1842 = vpop.permute.xlu0 %1841
      %1843 = vrot.lane.b32.xlu0 %v1625, 56
      %v1844 = vpop.permute.xlu0 %1843
      %1845 = vrot.lane.b32.xlu0 %v1626, 56
      %v1846 = vpop.permute.xlu0 %1845
      %1847 = vrot.lane.b32.xlu0 %v1627, 56
      %v1848 = vpop.permute.xlu0 %1847
      %1849 = vrot.lane.b32.xlu0 %v1628, 56
      %v1850 = vpop.permute.xlu0 %1849
      %1851 = vrot.lane.b32.xlu0 %v1629, 56
      %v1852 = vpop.permute.xlu0 %1851
      %1853 = vrot.lane.b32.xlu0 %v1630, 56
      %v1854 = vpop.permute.xlu0 %1853
      %1871 = vrot.lane.b32.xlu0 %v1631, 64
      %v1872 = vpop.permute.xlu0 %1871
      %1873 = vrot.lane.b32.xlu0 %v1632, 64
      %v1874 = vpop.permute.xlu0 %1873
      %1875 = vrot.lane.b32.xlu0 %v1633, 64
      %v1876 = vpop.permute.xlu0 %1875
      %1877 = vrot.lane.b32.xlu0 %v1634, 64
      %v1878 = vpop.permute.xlu0 %1877
      %1879 = vrot.lane.b32.xlu0 %v1635, 64
      %v1880 = vpop.permute.xlu0 %1879
      %1881 = vrot.lane.b32.xlu0 %v1636, 64
      %v1882 = vpop.permute.xlu0 %1881
      %1883 = vrot.lane.b32.xlu0 %v1637, 64
      %v1884 = vpop.permute.xlu0 %1883
      %1885 = vrot.lane.b32.xlu0 %v1638, 64
      %v1886 = vpop.permute.xlu0 %1885
      %v1895 = vsel %vm292, %v1565, %v1648
      %v1896 = vsel %vm292, %v1566, %v1650
      %v1897 = vsel %vm292, %v1567, %v1652
      %v1898 = vsel %vm292, %v1568, %v1654
      %v1899 = vsel %vm292, %v1569, %v1656
      %v1900 = vsel %vm292, %v1570, %v1658
      %v1901 = vsel %vm292, %v1571, %v1660
      %v1902 = vsel %vm292, %v1572, %v1662
      %v1903 = vsel %vm942, %v1895, %v1680
      %v1904 = vsel %vm942, %v1896, %v1682
      %v1905 = vsel %vm942, %v1897, %v1684
      %v1906 = vsel %vm942, %v1898, %v1686
      %v1907 = vsel %vm942, %v1899, %v1688
      %v1908 = vsel %vm942, %v1900, %v1690
      %v1909 = vsel %vm942, %v1901, %v1692
      %v1910 = vsel %vm942, %v1902, %v1694
      %v1911 = vsel %vm951, %v1903, %v1712
      %v1912 = vsel %vm951, %v1904, %v1714
      %v1913 = vsel %vm951, %v1905, %v1716
      %v1914 = vsel %vm951, %v1906, %v1718
      %v1915 = vsel %vm951, %v1907, %v1720
      %v1916 = vsel %vm951, %v1908, %v1722
      %v1917 = vsel %vm951, %v1909, %v1724
      %v1918 = vsel %vm951, %v1910, %v1726
      %v1919 = vsel %vm960, %v1911, %v1744
      %v1920 = vsel %vm960, %v1912, %v1746
      %v1921 = vsel %vm960, %v1913, %v1748
      %v1922 = vsel %vm960, %v1914, %v1750
      %v1923 = vsel %vm960, %v1915, %v1752
      %v1924 = vsel %vm960, %v1916, %v1754
      %v1925 = vsel %vm960, %v1917, %v1756
      %v1926 = vsel %vm960, %v1918, %v1758
      %v1927 = vsel %vm969, %v1919, %v1776
      %v1928 = vsel %vm969, %v1920, %v1778
      %v1929 = vsel %vm969, %v1921, %v1780
      %v1930 = vsel %vm969, %v1922, %v1782
      %v1931 = vsel %vm969, %v1923, %v1784
      %v1932 = vsel %vm969, %v1924, %v1786
      %v1933 = vsel %vm969, %v1925, %v1788
      %v1934 = vsel %vm969, %v1926, %v1790
      %v1935 = vsel %vm978, %v1927, %v1808
      %v1936 = vsel %vm978, %v1928, %v1810
      %v1937 = vsel %vm978, %v1929, %v1812
      %v1938 = vsel %vm978, %v1930, %v1814
      %v1939 = vsel %vm978, %v1931, %v1816
      %v1940 = vsel %vm978, %v1932, %v1818
      %v1941 = vsel %vm978, %v1933, %v1820
      %v1942 = vsel %vm978, %v1934, %v1822
      %v1943 = vsel %vm987, %v1935, %v1840
      %v1944 = vsel %vm987, %v1936, %v1842
      %v1945 = vsel %vm987, %v1937, %v1844
      %v1946 = vsel %vm987, %v1938, %v1846
      %v1947 = vsel %vm987, %v1939, %v1848
      %v1948 = vsel %vm987, %v1940, %v1850
      %v1949 = vsel %vm987, %v1941, %v1852
      %v1950 = vsel %vm987, %v1942, %v1854
      %v1951 = vsel %vm996, %v1943, %v1872
      %v1952 = vsel %vm996, %v1944, %v1874
      %v1953 = vsel %vm996, %v1945, %v1876
      %v1954 = vsel %vm996, %v1946, %v1878
      %v1955 = vsel %vm996, %v1947, %v1880
      %v1956 = vsel %vm996, %v1948, %v1882
      %v1957 = vsel %vm996, %v1949, %v1884
      %v1958 = vsel %vm996, %v1950, %v1886
      %v1960 = vsel %vm1008, %v1951, 0
      %v1963 = vsel %vm1008, %v1952, 0
      %v1966 = vsel %vm1008, %v1953, 0
      %v1969 = vsel %vm1008, %v1954, 0
      %v1972 = vsel %vm1008, %v1955, 0
      %v1975 = vsel %vm1008, %v1956, 0
      %v1978 = vsel %vm1008, %v1957, 0
      %v1981 = vsel %vm1008, %v1958, 0
      %1983 = vmatpush.msra.mxu0 0.0
      %1984 = vmatpush.msra.mxu0 0.0
      %1985 = vmatpush.msra.mxu0 0.0
      %1986 = vmatpush.msra.mxu0 0.0
      %1987 = vmatpush.msra.mxu0 0.0
      %1988 = vmatpush.msra.mxu0 0.0
      %1989 = vmatpush.msra.mxu0 0.0
      %1990 = vmatpush.msra.mxu0 %v280
      %1991 = vmatpush.msra.mxu0 %v279
      %1992 = vmatpush.msra.mxu0 %v278
      %1993 = vmatpush.msra.mxu0 %v277
      %1994 = vmatpush.msra.mxu0 %v276
      %1995 = vmatpush.msra.mxu0 %v275
      %1996 = vmatpush.msra.mxu0 %v274
      %1997 = vmatpush.msra.mxu0 %v273
      %1998 = vmatpush.msra.mxu0 %v272
      %1999 = vmatmul.f32.gmra.mxu0 %v1960
      %v2000 = vpop.f32.mrf.mxu0
      %v2001 = vadd.f32 %v1006, %v2000
      %2002 = vmatmul.f32.gmra.mxu0 %v1963
      %v2003 = vpop.f32.mrf.mxu0
      %v2004 = vadd.f32 %v1006, %v2003
      %2005 = vmatmul.f32.gmra.mxu0 %v1966
      %v2006 = vpop.f32.mrf.mxu0
      %v2007 = vadd.f32 %v1006, %v2006
      %2008 = vmatmul.f32.gmra.mxu0 %v1969
      %v2009 = vpop.f32.mrf.mxu0
      %v2010 = vadd.f32 %v1006, %v2009
      %2011 = vmatmul.f32.gmra.mxu0 %v1972
      %v2012 = vpop.f32.mrf.mxu0
      %v2013 = vadd.f32 %v1006, %v2012
      %2014 = vmatmul.f32.gmra.mxu0 %v1975
      %v2015 = vpop.f32.mrf.mxu0
      %v2016 = vadd.f32 %v1006, %v2015
      %2017 = vmatmul.f32.gmra.mxu0 %v1978
      %v2018 = vpop.f32.mrf.mxu0
      %v2019 = vadd.f32 %v1006, %v2018
      %2020 = vmatmul.f32.gmra.mxu0 %v1981
      %v2021 = vpop.f32.mrf.mxu0
      %v2022 = vadd.f32 %v1006, %v2021
      %2023 = vdwg.mxu0
      %v2024 = vmax.f32 %v2001, 0.0
      %v2025 = vmax.f32 %v2004, 0.0
      %v2026 = vmax.f32 %v2007, 0.0
      %v2027 = vmax.f32 %v2010, 0.0
      %v2028 = vmax.f32 %v2013, 0.0
      %v2029 = vmax.f32 %v2016, 0.0
      %v2030 = vmax.f32 %v2019, 0.0
      %v2031 = vmax.f32 %v2022, 0.0
      %s2032 = scalar_lea.vmem [#allocation3], 336
      %2033 = vst.msk [vmem:[%s2032 + $0x1] sm:$0xff] %vm292, %v2024
      %2034 = vst.msk [vmem:[%s2032 + $0x11] sm:$0xff] %vm292, %v2025
      %2035 = vst.msk [vmem:[%s2032 + $0x21] sm:$0xff] %vm292, %v2026
      %2036 = vst.msk [vmem:[%s2032 + $0x31] sm:$0xff] %vm292, %v2027
      %2037 = vst.msk [vmem:[%s2032 + $0x41] sm:$0xff] %vm292, %v2028
      %2038 = vst.msk [vmem:[%s2032 + $0x51] sm:$0xff] %vm292, %v2029
      %2039 = vst.msk [vmem:[%s2032 + $0x61] sm:$0xff] %vm292, %v2030
      %2040 = vst.msk [vmem:[%s2032 + $0x71] sm:$0xff] %vm292, %v2031
      %v2041 = vld [vmem:[%s496 + $0x1] sm:$0xff]
      %v2042 = vld [vmem:[%s496 + $0x11] sm:$0xff]
      %v2043 = vld [vmem:[%s496 + $0x21] sm:$0xff]
      %v2044 = vld [vmem:[%s496 + $0x31] sm:$0xff]
      %v2045 = vld [vmem:[%s496 + $0x41] sm:$0xff]
      %v2046 = vld [vmem:[%s496 + $0x51] sm:$0xff]
      %v2047 = vld [vmem:[%s496 + $0x61] sm:$0xff]
      %v2048 = vld [vmem:[%s496 + $0x71] sm:$0xff]
      %v2049 = vld [vmem:[%s529 + $0x1] sm:$0xff]
      %v2050 = vld [vmem:[%s529 + $0x11] sm:$0xff]
      %v2051 = vld [vmem:[%s529 + $0x21] sm:$0xff]
      %v2052 = vld [vmem:[%s529 + $0x31] sm:$0xff]
      %v2053 = vld [vmem:[%s529 + $0x41] sm:$0xff]
      %v2054 = vld [vmem:[%s529 + $0x51] sm:$0xff]
      %v2055 = vld [vmem:[%s529 + $0x61] sm:$0xff]
      %v2056 = vld [vmem:[%s529 + $0x71] sm:$0xff]
      %v2057 = vld [vmem:[%s496 + $0x2] sm:$0xff]
      %v2058 = vld [vmem:[%s496 + $0x12] sm:$0xff]
      %v2059 = vld [vmem:[%s496 + $0x22] sm:$0xff]
      %v2060 = vld [vmem:[%s496 + $0x32] sm:$0xff]
      %v2061 = vld [vmem:[%s496 + $0x42] sm:$0xff]
      %v2062 = vld [vmem:[%s496 + $0x52] sm:$0xff]
      %v2063 = vld [vmem:[%s496 + $0x62] sm:$0xff]
      %v2064 = vld [vmem:[%s496 + $0x72] sm:$0xff]
      %v2065 = vld [vmem:[%s562 + $0x1] sm:$0xff]
      %v2066 = vld [vmem:[%s562 + $0x11] sm:$0xff]
      %v2067 = vld [vmem:[%s562 + $0x21] sm:$0xff]
      %v2068 = vld [vmem:[%s562 + $0x31] sm:$0xff]
      %v2069 = vld [vmem:[%s562 + $0x41] sm:$0xff]
      %v2070 = vld [vmem:[%s562 + $0x51] sm:$0xff]
      %v2071 = vld [vmem:[%s562 + $0x61] sm:$0xff]
      %v2072 = vld [vmem:[%s562 + $0x71] sm:$0xff]
      %v2073 = vld [vmem:[%s595 + $0x1] sm:$0xff]
      %v2074 = vld [vmem:[%s595 + $0x11] sm:$0xff]
      %v2075 = vld [vmem:[%s595 + $0x21] sm:$0xff]
      %v2076 = vld [vmem:[%s595 + $0x31] sm:$0xff]
      %v2077 = vld [vmem:[%s595 + $0x41] sm:$0xff]
      %v2078 = vld [vmem:[%s595 + $0x51] sm:$0xff]
      %v2079 = vld [vmem:[%s595 + $0x61] sm:$0xff]
      %v2080 = vld [vmem:[%s595 + $0x71] sm:$0xff]
      %v2081 = vld [vmem:[%s562 + $0x2] sm:$0xff]
      %v2082 = vld [vmem:[%s562 + $0x12] sm:$0xff]
      %v2083 = vld [vmem:[%s562 + $0x22] sm:$0xff]
      %v2084 = vld [vmem:[%s562 + $0x32] sm:$0xff]
      %v2085 = vld [vmem:[%s562 + $0x42] sm:$0xff]
      %v2086 = vld [vmem:[%s562 + $0x52] sm:$0xff]
      %v2087 = vld [vmem:[%s562 + $0x62] sm:$0xff]
      %v2088 = vld [vmem:[%s562 + $0x72] sm:$0xff]
      %v2089 = vld [vmem:[%s1622 + $0x1] sm:$0xff]
      %v2090 = vld [vmem:[%s1622 + $0x11] sm:$0xff]
      %v2091 = vld [vmem:[%s1622 + $0x21] sm:$0xff]
      %v2092 = vld [vmem:[%s1622 + $0x31] sm:$0xff]
      %v2093 = vld [vmem:[%s1622 + $0x41] sm:$0xff]
      %v2094 = vld [vmem:[%s1622 + $0x51] sm:$0xff]
      %v2095 = vld [vmem:[%s1622 + $0x61] sm:$0xff]
      %v2096 = vld [vmem:[%s1622 + $0x71] sm:$0xff]
      %v2097 = vld [vmem:[%s1613 + $0x1] sm:$0xff]
      %v2098 = vld [vmem:[%s1613 + $0x11] sm:$0xff]
      %v2099 = vld [vmem:[%s1613 + $0x21] sm:$0xff]
      %v2100 = vld [vmem:[%s1613 + $0x31] sm:$0xff]
      %v2101 = vld [vmem:[%s1613 + $0x41] sm:$0xff]
      %v2102 = vld [vmem:[%s1613 + $0x51] sm:$0xff]
      %v2103 = vld [vmem:[%s1613 + $0x61] sm:$0xff]
      %v2104 = vld [vmem:[%s1613 + $0x71] sm:$0xff]
      %v2105 = vld [vmem:[%s1622 + $0x2] sm:$0xff]
      %v2106 = vld [vmem:[%s1622 + $0x12] sm:$0xff]
      %v2107 = vld [vmem:[%s1622 + $0x22] sm:$0xff]
      %v2108 = vld [vmem:[%s1622 + $0x32] sm:$0xff]
      %v2109 = vld [vmem:[%s1622 + $0x42] sm:$0xff]
      %v2110 = vld [vmem:[%s1622 + $0x52] sm:$0xff]
      %v2111 = vld [vmem:[%s1622 + $0x62] sm:$0xff]
      %v2112 = vld [vmem:[%s1622 + $0x72] sm:$0xff]
      %2121 = vrot.lane.b32.xlu0 %v2049, 8
      %v2122 = vpop.permute.xlu0 %2121
      %2123 = vrot.lane.b32.xlu0 %v2050, 8
      %v2124 = vpop.permute.xlu0 %2123
      %2125 = vrot.lane.b32.xlu0 %v2051, 8
      %v2126 = vpop.permute.xlu0 %2125
      %2127 = vrot.lane.b32.xlu0 %v2052, 8
      %v2128 = vpop.permute.xlu0 %2127
      %2129 = vrot.lane.b32.xlu0 %v2053, 8
      %v2130 = vpop.permute.xlu0 %2129
      %2131 = vrot.lane.b32.xlu0 %v2054, 8
      %v2132 = vpop.permute.xlu0 %2131
      %2133 = vrot.lane.b32.xlu0 %v2055, 8
      %v2134 = vpop.permute.xlu0 %2133
      %2135 = vrot.lane.b32.xlu0 %v2056, 8
      %v2136 = vpop.permute.xlu0 %2135
      %2153 = vrot.lane.b32.xlu0 %v2057, 16
      %v2154 = vpop.permute.xlu0 %2153
      %2155 = vrot.lane.b32.xlu0 %v2058, 16
      %v2156 = vpop.permute.xlu0 %2155
      %2157 = vrot.lane.b32.xlu0 %v2059, 16
      %v2158 = vpop.permute.xlu0 %2157
      %2159 = vrot.lane.b32.xlu0 %v2060, 16
      %v2160 = vpop.permute.xlu0 %2159
      %2161 = vrot.lane.b32.xlu0 %v2061, 16
      %v2162 = vpop.permute.xlu0 %2161
      %2163 = vrot.lane.b32.xlu0 %v2062, 16
      %v2164 = vpop.permute.xlu0 %2163
      %2165 = vrot.lane.b32.xlu0 %v2063, 16
      %v2166 = vpop.permute.xlu0 %2165
      %2167 = vrot.lane.b32.xlu0 %v2064, 16
      %v2168 = vpop.permute.xlu0 %2167
      %2185 = vrot.lane.b32.xlu0 %v2065, 24
      %v2186 = vpop.permute.xlu0 %2185
      %2187 = vrot.lane.b32.xlu0 %v2066, 24
      %v2188 = vpop.permute.xlu0 %2187
      %2189 = vrot.lane.b32.xlu0 %v2067, 24
      %v2190 = vpop.permute.xlu0 %2189
      %2191 = vrot.lane.b32.xlu0 %v2068, 24
      %v2192 = vpop.permute.xlu0 %2191
      %2193 = vrot.lane.b32.xlu0 %v2069, 24
      %v2194 = vpop.permute.xlu0 %2193
      %2195 = vrot.lane.b32.xlu0 %v2070, 24
      %v2196 = vpop.permute.xlu0 %2195
      %2197 = vrot.lane.b32.xlu0 %v2071, 24
      %v2198 = vpop.permute.xlu0 %2197
      %2199 = vrot.lane.b32.xlu0 %v2072, 24
      %v2200 = vpop.permute.xlu0 %2199
      %2217 = vrot.lane.b32.xlu0 %v2073, 32
      %v2218 = vpop.permute.xlu0 %2217
      %2219 = vrot.lane.b32.xlu0 %v2074, 32
      %v2220 = vpop.permute.xlu0 %2219
      %2221 = vrot.lane.b32.xlu0 %v2075, 32
      %v2222 = vpop.permute.xlu0 %2221
      %2223 = vrot.lane.b32.xlu0 %v2076, 32
      %v2224 = vpop.permute.xlu0 %2223
      %2225 = vrot.lane.b32.xlu0 %v2077, 32
      %v2226 = vpop.permute.xlu0 %2225
      %2227 = vrot.lane.b32.xlu0 %v2078, 32
      %v2228 = vpop.permute.xlu0 %2227
      %2229 = vrot.lane.b32.xlu0 %v2079, 32
      %v2230 = vpop.permute.xlu0 %2229
      %2231 = vrot.lane.b32.xlu0 %v2080, 32
      %v2232 = vpop.permute.xlu0 %2231
      %2249 = vrot.lane.b32.xlu0 %v2081, 40
      %v2250 = vpop.permute.xlu0 %2249
      %2251 = vrot.lane.b32.xlu0 %v2082, 40
      %v2252 = vpop.permute.xlu0 %2251
      %2253 = vrot.lane.b32.xlu0 %v2083, 40
      %v2254 = vpop.permute.xlu0 %2253
      %2255 = vrot.lane.b32.xlu0 %v2084, 40
      %v2256 = vpop.permute.xlu0 %2255
      %2257 = vrot.lane.b32.xlu0 %v2085, 40
      %v2258 = vpop.permute.xlu0 %2257
      %2259 = vrot.lane.b32.xlu0 %v2086, 40
      %v2260 = vpop.permute.xlu0 %2259
      %2261 = vrot.lane.b32.xlu0 %v2087, 40
      %v2262 = vpop.permute.xlu0 %2261
      %2263 = vrot.lane.b32.xlu0 %v2088, 40
      %v2264 = vpop.permute.xlu0 %2263
      %2281 = vrot.lane.b32.xlu0 %v2089, 48
      %v2282 = vpop.permute.xlu0 %2281
      %2283 = vrot.lane.b32.xlu0 %v2090, 48
      %v2284 = vpop.permute.xlu0 %2283
      %2285 = vrot.lane.b32.xlu0 %v2091, 48
      %v2286 = vpop.permute.xlu0 %2285
      %2287 = vrot.lane.b32.xlu0 %v2092, 48
      %v2288 = vpop.permute.xlu0 %2287
      %2289 = vrot.lane.b32.xlu0 %v2093, 48
      %v2290 = vpop.permute.xlu0 %2289
      %2291 = vrot.lane.b32.xlu0 %v2094, 48
      %v2292 = vpop.permute.xlu0 %2291
      %2293 = vrot.lane.b32.xlu0 %v2095, 48
      %v2294 = vpop.permute.xlu0 %2293
      %2295 = vrot.lane.b32.xlu0 %v2096, 48
      %v2296 = vpop.permute.xlu0 %2295
      %2313 = vrot.lane.b32.xlu0 %v2097, 56
      %v2314 = vpop.permute.xlu0 %2313
      %2315 = vrot.lane.b32.xlu0 %v2098, 56
      %v2316 = vpop.permute.xlu0 %2315
      %2317 = vrot.lane.b32.xlu0 %v2099, 56
      %v2318 = vpop.permute.xlu0 %2317
      %2319 = vrot.lane.b32.xlu0 %v2100, 56
      %v2320 = vpop.permute.xlu0 %2319
      %2321 = vrot.lane.b32.xlu0 %v2101, 56
      %v2322 = vpop.permute.xlu0 %2321
      %2323 = vrot.lane.b32.xlu0 %v2102, 56
      %v2324 = vpop.permute.xlu0 %2323
      %2325 = vrot.lane.b32.xlu0 %v2103, 56
      %v2326 = vpop.permute.xlu0 %2325
      %2327 = vrot.lane.b32.xlu0 %v2104, 56
      %v2328 = vpop.permute.xlu0 %2327
      %2345 = vrot.lane.b32.xlu0 %v2105, 64
      %v2346 = vpop.permute.xlu0 %2345
      %2347 = vrot.lane.b32.xlu0 %v2106, 64
      %v2348 = vpop.permute.xlu0 %2347
      %2349 = vrot.lane.b32.xlu0 %v2107, 64
      %v2350 = vpop.permute.xlu0 %2349
      %2351 = vrot.lane.b32.xlu0 %v2108, 64
      %v2352 = vpop.permute.xlu0 %2351
      %2353 = vrot.lane.b32.xlu0 %v2109, 64
      %v2354 = vpop.permute.xlu0 %2353
      %2355 = vrot.lane.b32.xlu0 %v2110, 64
      %v2356 = vpop.permute.xlu0 %2355
      %2357 = vrot.lane.b32.xlu0 %v2111, 64
      %v2358 = vpop.permute.xlu0 %2357
      %2359 = vrot.lane.b32.xlu0 %v2112, 64
      %v2360 = vpop.permute.xlu0 %2359
      %v2369 = vsel %vm292, %v2041, %v2122
      %v2370 = vsel %vm292, %v2042, %v2124
      %v2371 = vsel %vm292, %v2043, %v2126
      %v2372 = vsel %vm292, %v2044, %v2128
      %v2373 = vsel %vm292, %v2045, %v2130
      %v2374 = vsel %vm292, %v2046, %v2132
      %v2375 = vsel %vm292, %v2047, %v2134
      %v2376 = vsel %vm292, %v2048, %v2136
      %v2377 = vsel %vm942, %v2369, %v2154
      %v2378 = vsel %vm942, %v2370, %v2156
      %v2379 = vsel %vm942, %v2371, %v2158
      %v2380 = vsel %vm942, %v2372, %v2160
      %v2381 = vsel %vm942, %v2373, %v2162
      %v2382 = vsel %vm942, %v2374, %v2164
      %v2383 = vsel %vm942, %v2375, %v2166
      %v2384 = vsel %vm942, %v2376, %v2168
      %v2385 = vsel %vm951, %v2377, %v2186
      %v2386 = vsel %vm951, %v2378, %v2188
      %v2387 = vsel %vm951, %v2379, %v2190
      %v2388 = vsel %vm951, %v2380, %v2192
      %v2389 = vsel %vm951, %v2381, %v2194
      %v2390 = vsel %vm951, %v2382, %v2196
      %v2391 = vsel %vm951, %v2383, %v2198
      %v2392 = vsel %vm951, %v2384, %v2200
      %v2393 = vsel %vm960, %v2385, %v2218
      %v2394 = vsel %vm960, %v2386, %v2220
      %v2395 = vsel %vm960, %v2387, %v2222
      %v2396 = vsel %vm960, %v2388, %v2224
      %v2397 = vsel %vm960, %v2389, %v2226
      %v2398 = vsel %vm960, %v2390, %v2228
      %v2399 = vsel %vm960, %v2391, %v2230
      %v2400 = vsel %vm960, %v2392, %v2232
      %v2401 = vsel %vm969, %v2393, %v2250
      %v2402 = vsel %vm969, %v2394, %v2252
      %v2403 = vsel %vm969, %v2395, %v2254
      %v2404 = vsel %vm969, %v2396, %v2256
      %v2405 = vsel %vm969, %v2397, %v2258
      %v2406 = vsel %vm969, %v2398, %v2260
      %v2407 = vsel %vm969, %v2399, %v2262
      %v2408 = vsel %vm969, %v2400, %v2264
      %v2409 = vsel %vm978, %v2401, %v2282
      %v2410 = vsel %vm978, %v2402, %v2284
      %v2411 = vsel %vm978, %v2403, %v2286
      %v2412 = vsel %vm978, %v2404, %v2288
      %v2413 = vsel %vm978, %v2405, %v2290
      %v2414 = vsel %vm978, %v2406, %v2292
      %v2415 = vsel %vm978, %v2407, %v2294
      %v2416 = vsel %vm978, %v2408, %v2296
      %v2417 = vsel %vm987, %v2409, %v2314
      %v2418 = vsel %vm987, %v2410, %v2316
      %v2419 = vsel %vm987, %v2411, %v2318
      %v2420 = vsel %vm987, %v2412, %v2320
      %v2421 = vsel %vm987, %v2413, %v2322
      %v2422 = vsel %vm987, %v2414, %v2324
      %v2423 = vsel %vm987, %v2415, %v2326
      %v2424 = vsel %vm987, %v2416, %v2328
      %v2425 = vsel %vm996, %v2417, %v2346
      %v2426 = vsel %vm996, %v2418, %v2348
      %v2427 = vsel %vm996, %v2419, %v2350
      %v2428 = vsel %vm996, %v2420, %v2352
      %v2429 = vsel %vm996, %v2421, %v2354
      %v2430 = vsel %vm996, %v2422, %v2356
      %v2431 = vsel %vm996, %v2423, %v2358
      %v2432 = vsel %vm996, %v2424, %v2360
      %v2434 = vsel %vm1008, %v2425, 0
      %v2437 = vsel %vm1008, %v2426, 0
      %v2440 = vsel %vm1008, %v2427, 0
      %v2443 = vsel %vm1008, %v2428, 0
      %v2446 = vsel %vm1008, %v2429, 0
      %v2449 = vsel %vm1008, %v2430, 0
      %v2452 = vsel %vm1008, %v2431, 0
      %v2455 = vsel %vm1008, %v2432, 0
      %2457 = vmatpush.msra.mxu0 0.0
      %2458 = vmatpush.msra.mxu0 0.0
      %2459 = vmatpush.msra.mxu0 0.0
      %2460 = vmatpush.msra.mxu0 0.0
      %2461 = vmatpush.msra.mxu0 0.0
      %2462 = vmatpush.msra.mxu0 0.0
      %2463 = vmatpush.msra.mxu0 0.0
      %2464 = vmatpush.msra.mxu0 %v280
      %2465 = vmatpush.msra.mxu0 %v279
      %2466 = vmatpush.msra.mxu0 %v278
      %2467 = vmatpush.msra.mxu0 %v277
      %2468 = vmatpush.msra.mxu0 %v276
      %2469 = vmatpush.msra.mxu0 %v275
      %2470 = vmatpush.msra.mxu0 %v274
      %2471 = vmatpush.msra.mxu0 %v273
      %2472 = vmatpush.msra.mxu0 %v272
      %2473 = vmatmul.f32.gmra.mxu0 %v2434
      %v2474 = vpop.f32.mrf.mxu0
      %v2475 = vadd.f32 %v1006, %v2474
      %2476 = vmatmul.f32.gmra.mxu0 %v2437
      %v2477 = vpop.f32.mrf.mxu0
      %v2478 = vadd.f32 %v1006, %v2477
      %2479 = vmatmul.f32.gmra.mxu0 %v2440
      %v2480 = vpop.f32.mrf.mxu0
      %v2481 = vadd.f32 %v1006, %v2480
      %2482 = vmatmul.f32.gmra.mxu0 %v2443
      %v2483 = vpop.f32.mrf.mxu0
      %v2484 = vadd.f32 %v1006, %v2483
      %2485 = vmatmul.f32.gmra.mxu0 %v2446
      %v2486 = vpop.f32.mrf.mxu0
      %v2487 = vadd.f32 %v1006, %v2486
      %2488 = vmatmul.f32.gmra.mxu0 %v2449
      %v2489 = vpop.f32.mrf.mxu0
      %v2490 = vadd.f32 %v1006, %v2489
      %2491 = vmatmul.f32.gmra.mxu0 %v2452
      %v2492 = vpop.f32.mrf.mxu0
      %v2493 = vadd.f32 %v1006, %v2492
      %2494 = vmatmul.f32.gmra.mxu0 %v2455
      %v2495 = vpop.f32.mrf.mxu0
      %v2496 = vadd.f32 %v1006, %v2495
      %2497 = vdwg.mxu0
      %v2498 = vmax.f32 %v2475, 0.0
      %v2499 = vmax.f32 %v2478, 0.0
      %v2500 = vmax.f32 %v2481, 0.0
      %v2501 = vmax.f32 %v2484, 0.0
      %v2502 = vmax.f32 %v2487, 0.0
      %v2503 = vmax.f32 %v2490, 0.0
      %v2504 = vmax.f32 %v2493, 0.0
      %v2505 = vmax.f32 %v2496, 0.0
      %s2506 = scalar_lea.vmem [#allocation3], 496
      %2507 = vst.msk [vmem:[%s2506 + $0x1] sm:$0xff] %vm292, %v2498
      %2508 = vst.msk [vmem:[%s2506 + $0x11] sm:$0xff] %vm292, %v2499
      %2509 = vst.msk [vmem:[%s2506 + $0x21] sm:$0xff] %vm292, %v2500
      %2510 = vst.msk [vmem:[%s2506 + $0x31] sm:$0xff] %vm292, %v2501
      %2511 = vst.msk [vmem:[%s2506 + $0x41] sm:$0xff] %vm292, %v2502
      %2512 = vst.msk [vmem:[%s2506 + $0x51] sm:$0xff] %vm292, %v2503
      %2513 = vst.msk [vmem:[%s2506 + $0x61] sm:$0xff] %vm292, %v2504
      %2514 = vst.msk [vmem:[%s2506 + $0x71] sm:$0xff] %vm292, %v2505
      %s2515 = scalar_lea.vmem [#allocation3], 480
      %v2516 = vld [vmem:[%s2515] sm:$0xff]
      %v2517 = vld [vmem:[%s2515 + $0x10] sm:$0xff]
      %v2518 = vld [vmem:[%s2515 + $0x20] sm:$0xff]
      %v2519 = vld [vmem:[%s2515 + $0x30] sm:$0xff]
      %v2520 = vld [vmem:[%s2515 + $0x40] sm:$0xff]
      %v2521 = vld [vmem:[%s2515 + $0x50] sm:$0xff]
      %v2522 = vld [vmem:[%s2515 + $0x60] sm:$0xff]
      %v2523 = vld [vmem:[%s2515 + $0x70] sm:$0xff]
      %s2524 = scalar_lea.vmem [#allocation3], 320
      %v2525 = vld [vmem:[%s2524 + $0x1] sm:$0xff]
      %v2526 = vld [vmem:[%s2524 + $0x11] sm:$0xff]
      %v2527 = vld [vmem:[%s2524 + $0x21] sm:$0xff]
      %v2528 = vld [vmem:[%s2524 + $0x31] sm:$0xff]
      %v2529 = vld [vmem:[%s2524 + $0x41] sm:$0xff]
      %v2530 = vld [vmem:[%s2524 + $0x51] sm:$0xff]
      %v2531 = vld [vmem:[%s2524 + $0x61] sm:$0xff]
      %v2532 = vld [vmem:[%s2524 + $0x71] sm:$0xff]
      %v2533 = vld [vmem:[%s2515 + $0x1] sm:$0xff]
      %v2534 = vld [vmem:[%s2515 + $0x11] sm:$0xff]
      %v2535 = vld [vmem:[%s2515 + $0x21] sm:$0xff]
      %v2536 = vld [vmem:[%s2515 + $0x31] sm:$0xff]
      %v2537 = vld [vmem:[%s2515 + $0x41] sm:$0xff]
      %v2538 = vld [vmem:[%s2515 + $0x51] sm:$0xff]
      %v2539 = vld [vmem:[%s2515 + $0x61] sm:$0xff]
      %v2540 = vld [vmem:[%s2515 + $0x71] sm:$0xff]
      %v2541 = vld [vmem:[%s1556] sm:$0xff]
      %v2542 = vld [vmem:[%s1556 + $0x10] sm:$0xff]
      %v2543 = vld [vmem:[%s1556 + $0x20] sm:$0xff]
      %v2544 = vld [vmem:[%s1556 + $0x30] sm:$0xff]
      %v2545 = vld [vmem:[%s1556 + $0x40] sm:$0xff]
      %v2546 = vld [vmem:[%s1556 + $0x50] sm:$0xff]
      %v2547 = vld [vmem:[%s1556 + $0x60] sm:$0xff]
      %v2548 = vld [vmem:[%s1556 + $0x70] sm:$0xff]
      %v2549 = vld [vmem:[%s1082 + $0x1] sm:$0xff]
      %v2550 = vld [vmem:[%s1082 + $0x11] sm:$0xff]
      %v2551 = vld [vmem:[%s1082 + $0x21] sm:$0xff]
      %v2552 = vld [vmem:[%s1082 + $0x31] sm:$0xff]
      %v2553 = vld [vmem:[%s1082 + $0x41] sm:$0xff]
      %v2554 = vld [vmem:[%s1082 + $0x51] sm:$0xff]
      %v2555 = vld [vmem:[%s1082 + $0x61] sm:$0xff]
      %v2556 = vld [vmem:[%s1082 + $0x71] sm:$0xff]
      %v2557 = vld [vmem:[%s1556 + $0x1] sm:$0xff]
      %v2558 = vld [vmem:[%s1556 + $0x11] sm:$0xff]
      %v2559 = vld [vmem:[%s1556 + $0x21] sm:$0xff]
      %v2560 = vld [vmem:[%s1556 + $0x31] sm:$0xff]
      %v2561 = vld [vmem:[%s1556 + $0x41] sm:$0xff]
      %v2562 = vld [vmem:[%s1556 + $0x51] sm:$0xff]
      %v2563 = vld [vmem:[%s1556 + $0x61] sm:$0xff]
      %v2564 = vld [vmem:[%s1556 + $0x71] sm:$0xff]
      %v2565 = vld [vmem:[%s2506] sm:$0xff]
      %v2566 = vld [vmem:[%s2506 + $0x10] sm:$0xff]
      %v2567 = vld [vmem:[%s2506 + $0x20] sm:$0xff]
      %v2568 = vld [vmem:[%s2506 + $0x30] sm:$0xff]
      %v2569 = vld [vmem:[%s2506 + $0x40] sm:$0xff]
      %v2570 = vld [vmem:[%s2506 + $0x50] sm:$0xff]
      %v2571 = vld [vmem:[%s2506 + $0x60] sm:$0xff]
      %v2572 = vld [vmem:[%s2506 + $0x70] sm:$0xff]
      %v2573 = vld [vmem:[%s2032 + $0x1] sm:$0xff]
      %v2574 = vld [vmem:[%s2032 + $0x11] sm:$0xff]
      %v2575 = vld [vmem:[%s2032 + $0x21] sm:$0xff]
      %v2576 = vld [vmem:[%s2032 + $0x31] sm:$0xff]
      %v2577 = vld [vmem:[%s2032 + $0x41] sm:$0xff]
      %v2578 = vld [vmem:[%s2032 + $0x51] sm:$0xff]
      %v2579 = vld [vmem:[%s2032 + $0x61] sm:$0xff]
      %v2580 = vld [vmem:[%s2032 + $0x71] sm:$0xff]
      %v2581 = vld [vmem:[%s2506 + $0x1] sm:$0xff]
      %v2582 = vld [vmem:[%s2506 + $0x11] sm:$0xff]
      %v2583 = vld [vmem:[%s2506 + $0x21] sm:$0xff]
      %v2584 = vld [vmem:[%s2506 + $0x31] sm:$0xff]
      %v2585 = vld [vmem:[%s2506 + $0x41] sm:$0xff]
      %v2586 = vld [vmem:[%s2506 + $0x51] sm:$0xff]
      %v2587 = vld [vmem:[%s2506 + $0x61] sm:$0xff]
      %v2588 = vld [vmem:[%s2506 + $0x71] sm:$0xff]
      %2597 = vrot.lane.b32.xlu0 %v2525, 8
      %v2598 = vpop.permute.xlu0 %2597
      %2599 = vrot.lane.b32.xlu0 %v2526, 8
      %v2600 = vpop.permute.xlu0 %2599
      %2601 = vrot.lane.b32.xlu0 %v2527, 8
      %v2602 = vpop.permute.xlu0 %2601
      %2603 = vrot.lane.b32.xlu0 %v2528, 8
      %v2604 = vpop.permute.xlu0 %2603
      %2605 = vrot.lane.b32.xlu0 %v2529, 8
      %v2606 = vpop.permute.xlu0 %2605
      %2607 = vrot.lane.b32.xlu0 %v2530, 8
      %v2608 = vpop.permute.xlu0 %2607
      %2609 = vrot.lane.b32.xlu0 %v2531, 8
      %v2610 = vpop.permute.xlu0 %2609
      %2611 = vrot.lane.b32.xlu0 %v2532, 8
      %v2612 = vpop.permute.xlu0 %2611
      %2629 = vrot.lane.b32.xlu0 %v2533, 16
      %v2630 = vpop.permute.xlu0 %2629
      %2631 = vrot.lane.b32.xlu0 %v2534, 16
      %v2632 = vpop.permute.xlu0 %2631
      %2633 = vrot.lane.b32.xlu0 %v2535, 16
      %v2634 = vpop.permute.xlu0 %2633
      %2635 = vrot.lane.b32.xlu0 %v2536, 16
      %v2636 = vpop.permute.xlu0 %2635
      %2637 = vrot.lane.b32.xlu0 %v2537, 16
      %v2638 = vpop.permute.xlu0 %2637
      %2639 = vrot.lane.b32.xlu0 %v2538, 16
      %v2640 = vpop.permute.xlu0 %2639
      %2641 = vrot.lane.b32.xlu0 %v2539, 16
      %v2642 = vpop.permute.xlu0 %2641
      %2643 = vrot.lane.b32.xlu0 %v2540, 16
      %v2644 = vpop.permute.xlu0 %2643
      %2661 = vrot.lane.b32.xlu0 %v2541, 24
      %v2662 = vpop.permute.xlu0 %2661
      %2663 = vrot.lane.b32.xlu0 %v2542, 24
      %v2664 = vpop.permute.xlu0 %2663
      %2665 = vrot.lane.b32.xlu0 %v2543, 24
      %v2666 = vpop.permute.xlu0 %2665
      %2667 = vrot.lane.b32.xlu0 %v2544, 24
      %v2668 = vpop.permute.xlu0 %2667
      %2669 = vrot.lane.b32.xlu0 %v2545, 24
      %v2670 = vpop.permute.xlu0 %2669
      %2671 = vrot.lane.b32.xlu0 %v2546, 24
      %v2672 = vpop.permute.xlu0 %2671
      %2673 = vrot.lane.b32.xlu0 %v2547, 24
      %v2674 = vpop.permute.xlu0 %2673
      %2675 = vrot.lane.b32.xlu0 %v2548, 24
      %v2676 = vpop.permute.xlu0 %2675
      %2693 = vrot.lane.b32.xlu0 %v2549, 32
      %v2694 = vpop.permute.xlu0 %2693
      %2695 = vrot.lane.b32.xlu0 %v2550, 32
      %v2696 = vpop.permute.xlu0 %2695
      %2697 = vrot.lane.b32.xlu0 %v2551, 32
      %v2698 = vpop.permute.xlu0 %2697
      %2699 = vrot.lane.b32.xlu0 %v2552, 32
      %v2700 = vpop.permute.xlu0 %2699
      %2701 = vrot.lane.b32.xlu0 %v2553, 32
      %v2702 = vpop.permute.xlu0 %2701
      %2703 = vrot.lane.b32.xlu0 %v2554, 32
      %v2704 = vpop.permute.xlu0 %2703
      %2705 = vrot.lane.b32.xlu0 %v2555, 32
      %v2706 = vpop.permute.xlu0 %2705
      %2707 = vrot.lane.b32.xlu0 %v2556, 32
      %v2708 = vpop.permute.xlu0 %2707
      %2725 = vrot.lane.b32.xlu0 %v2557, 40
      %v2726 = vpop.permute.xlu0 %2725
      %2727 = vrot.lane.b32.xlu0 %v2558, 40
      %v2728 = vpop.permute.xlu0 %2727
      %2729 = vrot.lane.b32.xlu0 %v2559, 40
      %v2730 = vpop.permute.xlu0 %2729
      %2731 = vrot.lane.b32.xlu0 %v2560, 40
      %v2732 = vpop.permute.xlu0 %2731
      %2733 = vrot.lane.b32.xlu0 %v2561, 40
      %v2734 = vpop.permute.xlu0 %2733
      %2735 = vrot.lane.b32.xlu0 %v2562, 40
      %v2736 = vpop.permute.xlu0 %2735
      %2737 = vrot.lane.b32.xlu0 %v2563, 40
      %v2738 = vpop.permute.xlu0 %2737
      %2739 = vrot.lane.b32.xlu0 %v2564, 40
      %v2740 = vpop.permute.xlu0 %2739
      %2757 = vrot.lane.b32.xlu0 %v2565, 48
      %v2758 = vpop.permute.xlu0 %2757
      %2759 = vrot.lane.b32.xlu0 %v2566, 48
      %v2760 = vpop.permute.xlu0 %2759
      %2761 = vrot.lane.b32.xlu0 %v2567, 48
      %v2762 = vpop.permute.xlu0 %2761
      %2763 = vrot.lane.b32.xlu0 %v2568, 48
      %v2764 = vpop.permute.xlu0 %2763
      %2765 = vrot.lane.b32.xlu0 %v2569, 48
      %v2766 = vpop.permute.xlu0 %2765
      %2767 = vrot.lane.b32.xlu0 %v2570, 48
      %v2768 = vpop.permute.xlu0 %2767
      %2769 = vrot.lane.b32.xlu0 %v2571, 48
      %v2770 = vpop.permute.xlu0 %2769
      %2771 = vrot.lane.b32.xlu0 %v2572, 48
      %v2772 = vpop.permute.xlu0 %2771
      %2789 = vrot.lane.b32.xlu0 %v2573, 56
      %v2790 = vpop.permute.xlu0 %2789
      %2791 = vrot.lane.b32.xlu0 %v2574, 56
      %v2792 = vpop.permute.xlu0 %2791
      %2793 = vrot.lane.b32.xlu0 %v2575, 56
      %v2794 = vpop.permute.xlu0 %2793
      %2795 = vrot.lane.b32.xlu0 %v2576, 56
      %v2796 = vpop.permute.xlu0 %2795
      %2797 = vrot.lane.b32.xlu0 %v2577, 56
      %v2798 = vpop.permute.xlu0 %2797
      %2799 = vrot.lane.b32.xlu0 %v2578, 56
      %v2800 = vpop.permute.xlu0 %2799
      %2801 = vrot.lane.b32.xlu0 %v2579, 56
      %v2802 = vpop.permute.xlu0 %2801
      %2803 = vrot.lane.b32.xlu0 %v2580, 56
      %v2804 = vpop.permute.xlu0 %2803
      %2821 = vrot.lane.b32.xlu0 %v2581, 64
      %v2822 = vpop.permute.xlu0 %2821
      %2823 = vrot.lane.b32.xlu0 %v2582, 64
      %v2824 = vpop.permute.xlu0 %2823
      %2825 = vrot.lane.b32.xlu0 %v2583, 64
      %v2826 = vpop.permute.xlu0 %2825
      %2827 = vrot.lane.b32.xlu0 %v2584, 64
      %v2828 = vpop.permute.xlu0 %2827
      %2829 = vrot.lane.b32.xlu0 %v2585, 64
      %v2830 = vpop.permute.xlu0 %2829
      %2831 = vrot.lane.b32.xlu0 %v2586, 64
      %v2832 = vpop.permute.xlu0 %2831
      %2833 = vrot.lane.b32.xlu0 %v2587, 64
      %v2834 = vpop.permute.xlu0 %2833
      %2835 = vrot.lane.b32.xlu0 %v2588, 64
      %v2836 = vpop.permute.xlu0 %2835
      %v2845 = vsel %vm292, %v2516, %v2598
      %v2846 = vsel %vm292, %v2517, %v2600
      %v2847 = vsel %vm292, %v2518, %v2602
      %v2848 = vsel %vm292, %v2519, %v2604
      %v2849 = vsel %vm292, %v2520, %v2606
      %v2850 = vsel %vm292, %v2521, %v2608
      %v2851 = vsel %vm292, %v2522, %v2610
      %v2852 = vsel %vm292, %v2523, %v2612
      %v2853 = vsel %vm942, %v2845, %v2630
      %v2854 = vsel %vm942, %v2846, %v2632
      %v2855 = vsel %vm942, %v2847, %v2634
      %v2856 = vsel %vm942, %v2848, %v2636
      %v2857 = vsel %vm942, %v2849, %v2638
      %v2858 = vsel %vm942, %v2850, %v2640
      %v2859 = vsel %vm942, %v2851, %v2642
      %v2860 = vsel %vm942, %v2852, %v2644
      %v2861 = vsel %vm951, %v2853, %v2662
      %v2862 = vsel %vm951, %v2854, %v2664
      %v2863 = vsel %vm951, %v2855, %v2666
      %v2864 = vsel %vm951, %v2856, %v2668
      %v2865 = vsel %vm951, %v2857, %v2670
      %v2866 = vsel %vm951, %v2858, %v2672
      %v2867 = vsel %vm951, %v2859, %v2674
      %v2868 = vsel %vm951, %v2860, %v2676
      %v2869 = vsel %vm960, %v2861, %v2694
      %v2870 = vsel %vm960, %v2862, %v2696
      %v2871 = vsel %vm960, %v2863, %v2698
      %v2872 = vsel %vm960, %v2864, %v2700
      %v2873 = vsel %vm960, %v2865, %v2702
      %v2874 = vsel %vm960, %v2866, %v2704
      %v2875 = vsel %vm960, %v2867, %v2706
      %v2876 = vsel %vm960, %v2868, %v2708
      %v2877 = vsel %vm969, %v2869, %v2726
      %v2878 = vsel %vm969, %v2870, %v2728
      %v2879 = vsel %vm969, %v2871, %v2730
      %v2880 = vsel %vm969, %v2872, %v2732
      %v2881 = vsel %vm969, %v2873, %v2734
      %v2882 = vsel %vm969, %v2874, %v2736
      %v2883 = vsel %vm969, %v2875, %v2738
      %v2884 = vsel %vm969, %v2876, %v2740
      %v2885 = vsel %vm978, %v2877, %v2758
      %v2886 = vsel %vm978, %v2878, %v2760
      %v2887 = vsel %vm978, %v2879, %v2762
      %v2888 = vsel %vm978, %v2880, %v2764
      %v2889 = vsel %vm978, %v2881, %v2766
      %v2890 = vsel %vm978, %v2882, %v2768
      %v2891 = vsel %vm978, %v2883, %v2770
      %v2892 = vsel %vm978, %v2884, %v2772
      %v2893 = vsel %vm987, %v2885, %v2790
      %v2894 = vsel %vm987, %v2886, %v2792
      %v2895 = vsel %vm987, %v2887, %v2794
      %v2896 = vsel %vm987, %v2888, %v2796
      %v2897 = vsel %vm987, %v2889, %v2798
      %v2898 = vsel %vm987, %v2890, %v2800
      %v2899 = vsel %vm987, %v2891, %v2802
      %v2900 = vsel %vm987, %v2892, %v2804
      %v2901 = vsel %vm996, %v2893, %v2822
      %v2902 = vsel %vm996, %v2894, %v2824
      %v2903 = vsel %vm996, %v2895, %v2826
      %v2904 = vsel %vm996, %v2896, %v2828
      %v2905 = vsel %vm996, %v2897, %v2830
      %v2906 = vsel %vm996, %v2898, %v2832
      %v2907 = vsel %vm996, %v2899, %v2834
      %v2908 = vsel %vm996, %v2900, %v2836
      %v2910 = vperm.slane %v291, 0
      %v2913 = vsel %vm1008, %v2901, 0
      %v2916 = vsel %vm1008, %v2902, 0
      %v2919 = vsel %vm1008, %v2903, 0
      %v2922 = vsel %vm1008, %v2904, 0
      %v2925 = vsel %vm1008, %v2905, 0
      %v2928 = vsel %vm1008, %v2906, 0
      %v2931 = vsel %vm1008, %v2907, 0
      %v2934 = vsel %vm1008, %v2908, 0
      %2936 = vmatpush.msra.mxu0 0.0
      %2937 = vmatpush.msra.mxu0 0.0
      %2938 = vmatpush.msra.mxu0 0.0
      %2939 = vmatpush.msra.mxu0 0.0
      %2940 = vmatpush.msra.mxu0 0.0
      %2941 = vmatpush.msra.mxu0 0.0
      %2942 = vmatpush.msra.mxu0 0.0
      %2943 = vmatpush.msra.mxu0 %v290
      %2944 = vmatpush.msra.mxu0 %v289
      %2945 = vmatpush.msra.mxu0 %v288
      %2946 = vmatpush.msra.mxu0 %v287
      %2947 = vmatpush.msra.mxu0 %v286
      %2948 = vmatpush.msra.mxu0 %v285
      %2949 = vmatpush.msra.mxu0 %v284
      %2950 = vmatpush.msra.mxu0 %v283
      %2951 = vmatpush.msra.mxu0 %v282
      %2952 = vmatmul.f32.gmra.mxu0 %v2913
      %v2953 = vpop.f32.mrf.mxu0
      %v2954 = vadd.f32 %v2910, %v2953
      %2955 = vmatmul.f32.gmra.mxu0 %v2916
      %v2956 = vpop.f32.mrf.mxu0
      %v2957 = vadd.f32 %v2910, %v2956
      %2958 = vmatmul.f32.gmra.mxu0 %v2919
      %v2959 = vpop.f32.mrf.mxu0
      %v2960 = vadd.f32 %v2910, %v2959
      %2961 = vmatmul.f32.gmra.mxu0 %v2922
      %v2962 = vpop.f32.mrf.mxu0
      %v2963 = vadd.f32 %v2910, %v2962
      %2964 = vmatmul.f32.gmra.mxu0 %v2925
      %v2965 = vpop.f32.mrf.mxu0
      %v2966 = vadd.f32 %v2910, %v2965
      %2967 = vmatmul.f32.gmra.mxu0 %v2928
      %v2968 = vpop.f32.mrf.mxu0
      %v2969 = vadd.f32 %v2910, %v2968
      %2970 = vmatmul.f32.gmra.mxu0 %v2931
      %v2971 = vpop.f32.mrf.mxu0
      %v2972 = vadd.f32 %v2910, %v2971
      %2973 = vmatmul.f32.gmra.mxu0 %v2934
      %v2974 = vpop.f32.mrf.mxu0
      %v2975 = vadd.f32 %v2910, %v2974
      %2976 = vdwg.mxu0
      %v2977 = vmax.f32 %v2954, 0.0
      %v2978 = vmax.f32 %v2957, 0.0
      %v2979 = vmax.f32 %v2960, 0.0
      %v2980 = vmax.f32 %v2963, 0.0
      %v2981 = vmax.f32 %v2966, 0.0
      %v2982 = vmax.f32 %v2969, 0.0
      %v2983 = vmax.f32 %v2972, 0.0
      %v2984 = vmax.f32 %v2975, 0.0
      %v2985 = vld [vmem:[%s2524 + $0x2] sm:$0xff]
      %v2986 = vld [vmem:[%s2524 + $0x12] sm:$0xff]
      %v2987 = vld [vmem:[%s2524 + $0x22] sm:$0xff]
      %v2988 = vld [vmem:[%s2524 + $0x32] sm:$0xff]
      %v2989 = vld [vmem:[%s2524 + $0x42] sm:$0xff]
      %v2990 = vld [vmem:[%s2524 + $0x52] sm:$0xff]
      %v2991 = vld [vmem:[%s2524 + $0x62] sm:$0xff]
      %v2992 = vld [vmem:[%s2524 + $0x72] sm:$0xff]
      %v2993 = vld [vmem:[%s1082 + $0x2] sm:$0xff]
      %v2994 = vld [vmem:[%s1082 + $0x12] sm:$0xff]
      %v2995 = vld [vmem:[%s1082 + $0x22] sm:$0xff]
      %v2996 = vld [vmem:[%s1082 + $0x32] sm:$0xff]
      %v2997 = vld [vmem:[%s1082 + $0x42] sm:$0xff]
      %v2998 = vld [vmem:[%s1082 + $0x52] sm:$0xff]
      %v2999 = vld [vmem:[%s1082 + $0x62] sm:$0xff]
      %v3000 = vld [vmem:[%s1082 + $0x72] sm:$0xff]
      %v3001 = vld [vmem:[%s2032 + $0x2] sm:$0xff]
      %v3002 = vld [vmem:[%s2032 + $0x12] sm:$0xff]
      %v3003 = vld [vmem:[%s2032 + $0x22] sm:$0xff]
      %v3004 = vld [vmem:[%s2032 + $0x32] sm:$0xff]
      %v3005 = vld [vmem:[%s2032 + $0x42] sm:$0xff]
      %v3006 = vld [vmem:[%s2032 + $0x52] sm:$0xff]
      %v3007 = vld [vmem:[%s2032 + $0x62] sm:$0xff]
      %v3008 = vld [vmem:[%s2032 + $0x72] sm:$0xff]
      %3009 = vrot.lane.b32.xlu0 %v2533, 8
      %v3010 = vpop.permute.xlu0 %3009
      %3011 = vrot.lane.b32.xlu0 %v2534, 8
      %v3012 = vpop.permute.xlu0 %3011
      %3013 = vrot.lane.b32.xlu0 %v2535, 8
      %v3014 = vpop.permute.xlu0 %3013
      %3015 = vrot.lane.b32.xlu0 %v2536, 8
      %v3016 = vpop.permute.xlu0 %3015
      %3017 = vrot.lane.b32.xlu0 %v2537, 8
      %v3018 = vpop.permute.xlu0 %3017
      %3019 = vrot.lane.b32.xlu0 %v2538, 8
      %v3020 = vpop.permute.xlu0 %3019
      %3021 = vrot.lane.b32.xlu0 %v2539, 8
      %v3022 = vpop.permute.xlu0 %3021
      %3023 = vrot.lane.b32.xlu0 %v2540, 8
      %v3024 = vpop.permute.xlu0 %3023
      %3041 = vrot.lane.b32.xlu0 %v2985, 16
      %v3042 = vpop.permute.xlu0 %3041
      %3043 = vrot.lane.b32.xlu0 %v2986, 16
      %v3044 = vpop.permute.xlu0 %3043
      %3045 = vrot.lane.b32.xlu0 %v2987, 16
      %v3046 = vpop.permute.xlu0 %3045
      %3047 = vrot.lane.b32.xlu0 %v2988, 16
      %v3048 = vpop.permute.xlu0 %3047
      %3049 = vrot.lane.b32.xlu0 %v2989, 16
      %v3050 = vpop.permute.xlu0 %3049
      %3051 = vrot.lane.b32.xlu0 %v2990, 16
      %v3052 = vpop.permute.xlu0 %3051
      %3053 = vrot.lane.b32.xlu0 %v2991, 16
      %v3054 = vpop.permute.xlu0 %3053
      %3055 = vrot.lane.b32.xlu0 %v2992, 16
      %v3056 = vpop.permute.xlu0 %3055
      %3065 = vrot.lane.b32.xlu0 %v2549, 24
      %v3066 = vpop.permute.xlu0 %3065
      %3067 = vrot.lane.b32.xlu0 %v2550, 24
      %v3068 = vpop.permute.xlu0 %3067
      %3069 = vrot.lane.b32.xlu0 %v2551, 24
      %v3070 = vpop.permute.xlu0 %3069
      %3071 = vrot.lane.b32.xlu0 %v2552, 24
      %v3072 = vpop.permute.xlu0 %3071
      %3073 = vrot.lane.b32.xlu0 %v2553, 24
      %v3074 = vpop.permute.xlu0 %3073
      %3075 = vrot.lane.b32.xlu0 %v2554, 24
      %v3076 = vpop.permute.xlu0 %3075
      %3077 = vrot.lane.b32.xlu0 %v2555, 24
      %v3078 = vpop.permute.xlu0 %3077
      %3079 = vrot.lane.b32.xlu0 %v2556, 24
      %v3080 = vpop.permute.xlu0 %3079
      %3089 = vrot.lane.b32.xlu0 %v2557, 32
      %v3090 = vpop.permute.xlu0 %3089
      %3091 = vrot.lane.b32.xlu0 %v2558, 32
      %v3092 = vpop.permute.xlu0 %3091
      %3093 = vrot.lane.b32.xlu0 %v2559, 32
      %v3094 = vpop.permute.xlu0 %3093
      %3095 = vrot.lane.b32.xlu0 %v2560, 32
      %v3096 = vpop.permute.xlu0 %3095
      %3097 = vrot.lane.b32.xlu0 %v2561, 32
      %v3098 = vpop.permute.xlu0 %3097
      %3099 = vrot.lane.b32.xlu0 %v2562, 32
      %v3100 = vpop.permute.xlu0 %3099
      %3101 = vrot.lane.b32.xlu0 %v2563, 32
      %v3102 = vpop.permute.xlu0 %3101
      %3103 = vrot.lane.b32.xlu0 %v2564, 32
      %v3104 = vpop.permute.xlu0 %3103
      %3121 = vrot.lane.b32.xlu0 %v2993, 40
      %v3122 = vpop.permute.xlu0 %3121
      %3123 = vrot.lane.b32.xlu0 %v2994, 40
      %v3124 = vpop.permute.xlu0 %3123
      %3125 = vrot.lane.b32.xlu0 %v2995, 40
      %v3126 = vpop.permute.xlu0 %3125
      %3127 = vrot.lane.b32.xlu0 %v2996, 40
      %v3128 = vpop.permute.xlu0 %3127
      %3129 = vrot.lane.b32.xlu0 %v2997, 40
      %v3130 = vpop.permute.xlu0 %3129
      %3131 = vrot.lane.b32.xlu0 %v2998, 40
      %v3132 = vpop.permute.xlu0 %3131
      %3133 = vrot.lane.b32.xlu0 %v2999, 40
      %v3134 = vpop.permute.xlu0 %3133
      %3135 = vrot.lane.b32.xlu0 %v3000, 40
      %v3136 = vpop.permute.xlu0 %3135
      %3145 = vrot.lane.b32.xlu0 %v2573, 48
      %v3146 = vpop.permute.xlu0 %3145
      %3147 = vrot.lane.b32.xlu0 %v2574, 48
      %v3148 = vpop.permute.xlu0 %3147
      %3149 = vrot.lane.b32.xlu0 %v2575, 48
      %v3150 = vpop.permute.xlu0 %3149
      %3151 = vrot.lane.b32.xlu0 %v2576, 48
      %v3152 = vpop.permute.xlu0 %3151
      %3153 = vrot.lane.b32.xlu0 %v2577, 48
      %v3154 = vpop.permute.xlu0 %3153
      %3155 = vrot.lane.b32.xlu0 %v2578, 48
      %v3156 = vpop.permute.xlu0 %3155
      %3157 = vrot.lane.b32.xlu0 %v2579, 48
      %v3158 = vpop.permute.xlu0 %3157
      %3159 = vrot.lane.b32.xlu0 %v2580, 48
      %v3160 = vpop.permute.xlu0 %3159
      %3169 = vrot.lane.b32.xlu0 %v2581, 56
      %v3170 = vpop.permute.xlu0 %3169
      %3171 = vrot.lane.b32.xlu0 %v2582, 56
      %v3172 = vpop.permute.xlu0 %3171
      %3173 = vrot.lane.b32.xlu0 %v2583, 56
      %v3174 = vpop.permute.xlu0 %3173
      %3175 = vrot.lane.b32.xlu0 %v2584, 56
      %v3176 = vpop.permute.xlu0 %3175
      %3177 = vrot.lane.b32.xlu0 %v2585, 56
      %v3178 = vpop.permute.xlu0 %3177
      %3179 = vrot.lane.b32.xlu0 %v2586, 56
      %v3180 = vpop.permute.xlu0 %3179
      %3181 = vrot.lane.b32.xlu0 %v2587, 56
      %v3182 = vpop.permute.xlu0 %3181
      %3183 = vrot.lane.b32.xlu0 %v2588, 56
      %v3184 = vpop.permute.xlu0 %3183
      %3201 = vrot.lane.b32.xlu0 %v3001, 64
      %v3202 = vpop.permute.xlu0 %3201
      %3203 = vrot.lane.b32.xlu0 %v3002, 64
      %v3204 = vpop.permute.xlu0 %3203
      %3205 = vrot.lane.b32.xlu0 %v3003, 64
      %v3206 = vpop.permute.xlu0 %3205
      %3207 = vrot.lane.b32.xlu0 %v3004, 64
      %v3208 = vpop.permute.xlu0 %3207
      %3209 = vrot.lane.b32.xlu0 %v3005, 64
      %v3210 = vpop.permute.xlu0 %3209
      %3211 = vrot.lane.b32.xlu0 %v3006, 64
      %v3212 = vpop.permute.xlu0 %3211
      %3213 = vrot.lane.b32.xlu0 %v3007, 64
      %v3214 = vpop.permute.xlu0 %3213
      %3215 = vrot.lane.b32.xlu0 %v3008, 64
      %v3216 = vpop.permute.xlu0 %3215
      %v3225 = vsel %vm292, %v2525, %v3010
      %v3226 = vsel %vm292, %v2526, %v3012
      %v3227 = vsel %vm292, %v2527, %v3014
      %v3228 = vsel %vm292, %v2528, %v3016
      %v3229 = vsel %vm292, %v2529, %v3018
      %v3230 = vsel %vm292, %v2530, %v3020
      %v3231 = vsel %vm292, %v2531, %v3022
      %v3232 = vsel %vm292, %v2532, %v3024
      %v3233 = vsel %vm942, %v3225, %v3042
      %v3234 = vsel %vm942, %v3226, %v3044
      %v3235 = vsel %vm942, %v3227, %v3046
      %v3236 = vsel %vm942, %v3228, %v3048
      %v3237 = vsel %vm942, %v3229, %v3050
      %v3238 = vsel %vm942, %v3230, %v3052
      %v3239 = vsel %vm942, %v3231, %v3054
      %v3240 = vsel %vm942, %v3232, %v3056
      %v3241 = vsel %vm951, %v3233, %v3066
      %v3242 = vsel %vm951, %v3234, %v3068
      %v3243 = vsel %vm951, %v3235, %v3070
      %v3244 = vsel %vm951, %v3236, %v3072
      %v3245 = vsel %vm951, %v3237, %v3074
      %v3246 = vsel %vm951, %v3238, %v3076
      %v3247 = vsel %vm951, %v3239, %v3078
      %v3248 = vsel %vm951, %v3240, %v3080
      %v3249 = vsel %vm960, %v3241, %v3090
      %v3250 = vsel %vm960, %v3242, %v3092
      %v3251 = vsel %vm960, %v3243, %v3094
      %v3252 = vsel %vm960, %v3244, %v3096
      %v3253 = vsel %vm960, %v3245, %v3098
      %v3254 = vsel %vm960, %v3246, %v3100
      %v3255 = vsel %vm960, %v3247, %v3102
      %v3256 = vsel %vm960, %v3248, %v3104
      %v3257 = vsel %vm969, %v3249, %v3122
      %v3258 = vsel %vm969, %v3250, %v3124
      %v3259 = vsel %vm969, %v3251, %v3126
      %v3260 = vsel %vm969, %v3252, %v3128
      %v3261 = vsel %vm969, %v3253, %v3130
      %v3262 = vsel %vm969, %v3254, %v3132
      %v3263 = vsel %vm969, %v3255, %v3134
      %v3264 = vsel %vm969, %v3256, %v3136
      %v3265 = vsel %vm978, %v3257, %v3146
      %v3266 = vsel %vm978, %v3258, %v3148
      %v3267 = vsel %vm978, %v3259, %v3150
      %v3268 = vsel %vm978, %v3260, %v3152
      %v3269 = vsel %vm978, %v3261, %v3154
      %v3270 = vsel %vm978, %v3262, %v3156
      %v3271 = vsel %vm978, %v3263, %v3158
      %v3272 = vsel %vm978, %v3264, %v3160
      %v3273 = vsel %vm987, %v3265, %v3170
      %v3274 = vsel %vm987, %v3266, %v3172
      %v3275 = vsel %vm987, %v3267, %v3174
      %v3276 = vsel %vm987, %v3268, %v3176
      %v3277 = vsel %vm987, %v3269, %v3178
      %v3278 = vsel %vm987, %v3270, %v3180
      %v3279 = vsel %vm987, %v3271, %v3182
      %v3280 = vsel %vm987, %v3272, %v3184
      %v3281 = vsel %vm996, %v3273, %v3202
      %v3282 = vsel %vm996, %v3274, %v3204
      %v3283 = vsel %vm996, %v3275, %v3206
      %v3284 = vsel %vm996, %v3276, %v3208
      %v3285 = vsel %vm996, %v3277, %v3210
      %v3286 = vsel %vm996, %v3278, %v3212
      %v3287 = vsel %vm996, %v3279, %v3214
      %v3288 = vsel %vm996, %v3280, %v3216
      %v3290 = vsel %vm1008, %v3281, 0
      %v3293 = vsel %vm1008, %v3282, 0
      %v3296 = vsel %vm1008, %v3283, 0
      %v3299 = vsel %vm1008, %v3284, 0
      %v3302 = vsel %vm1008, %v3285, 0
      %v3305 = vsel %vm1008, %v3286, 0
      %v3308 = vsel %vm1008, %v3287, 0
      %v3311 = vsel %vm1008, %v3288, 0
      %3313 = vmatpush.msra.mxu0 0.0
      %3314 = vmatpush.msra.mxu0 0.0
      %3315 = vmatpush.msra.mxu0 0.0
      %3316 = vmatpush.msra.mxu0 0.0
      %3317 = vmatpush.msra.mxu0 0.0
      %3318 = vmatpush.msra.mxu0 0.0
      %3319 = vmatpush.msra.mxu0 0.0
      %3320 = vmatpush.msra.mxu0 %v290
      %3321 = vmatpush.msra.mxu0 %v289
      %3322 = vmatpush.msra.mxu0 %v288
      %3323 = vmatpush.msra.mxu0 %v287
      %3324 = vmatpush.msra.mxu0 %v286
      %3325 = vmatpush.msra.mxu0 %v285
      %3326 = vmatpush.msra.mxu0 %v284
      %3327 = vmatpush.msra.mxu0 %v283
      %3328 = vmatpush.msra.mxu0 %v282
      %3329 = vmatmul.f32.gmra.mxu0 %v3290
      %v3330 = vpop.f32.mrf.mxu0
      %v3331 = vadd.f32 %v2910, %v3330
      %3332 = vmatmul.f32.gmra.mxu0 %v3293
      %v3333 = vpop.f32.mrf.mxu0
      %v3334 = vadd.f32 %v2910, %v3333
      %3335 = vmatmul.f32.gmra.mxu0 %v3296
      %v3336 = vpop.f32.mrf.mxu0
      %v3337 = vadd.f32 %v2910, %v3336
      %3338 = vmatmul.f32.gmra.mxu0 %v3299
      %v3339 = vpop.f32.mrf.mxu0
      %v3340 = vadd.f32 %v2910, %v3339
      %3341 = vmatmul.f32.gmra.mxu0 %v3302
      %v3342 = vpop.f32.mrf.mxu0
      %v3343 = vadd.f32 %v2910, %v3342
      %3344 = vmatmul.f32.gmra.mxu0 %v3305
      %v3345 = vpop.f32.mrf.mxu0
      %v3346 = vadd.f32 %v2910, %v3345
      %3347 = vmatmul.f32.gmra.mxu0 %v3308
      %v3348 = vpop.f32.mrf.mxu0
      %v3349 = vadd.f32 %v2910, %v3348
      %3350 = vmatmul.f32.gmra.mxu0 %v3311
      %v3351 = vpop.f32.mrf.mxu0
      %v3352 = vadd.f32 %v2910, %v3351
      %3353 = vdwg.mxu0
      %v3354 = vmax.f32 %v3331, 0.0
      %v3355 = vmax.f32 %v3334, 0.0
      %v3356 = vmax.f32 %v3337, 0.0
      %v3357 = vmax.f32 %v3340, 0.0
      %v3358 = vmax.f32 %v3343, 0.0
      %v3359 = vmax.f32 %v3346, 0.0
      %v3360 = vmax.f32 %v3349, 0.0
      %v3361 = vmax.f32 %v3352, 0.0
      %3370 = vrot.lane.b32.xlu0 %v3354, 4
      %v3371 = vpop.permute.xlu0 %3370
      %3372 = vrot.lane.b32.xlu0 %v3355, 4
      %v3373 = vpop.permute.xlu0 %3372
      %3374 = vrot.lane.b32.xlu0 %v3356, 4
      %v3375 = vpop.permute.xlu0 %3374
      %3376 = vrot.lane.b32.xlu0 %v3357, 4
      %v3377 = vpop.permute.xlu0 %3376
      %3378 = vrot.lane.b32.xlu0 %v3358, 4
      %v3379 = vpop.permute.xlu0 %3378
      %3380 = vrot.lane.b32.xlu0 %v3359, 4
      %v3381 = vpop.permute.xlu0 %3380
      %3382 = vrot.lane.b32.xlu0 %v3360, 4
      %v3383 = vpop.permute.xlu0 %3382
      %3384 = vrot.lane.b32.xlu0 %v3361, 4
      %v3385 = vpop.permute.xlu0 %3384
      %vm3394 = vcmask 31744
      %v3395 = vsel %vm3394, %v2977, %v3371
      %v3396 = vsel %vm3394, %v2978, %v3373
      %v3397 = vsel %vm3394, %v2979, %v3375
      %v3398 = vsel %vm3394, %v2980, %v3377
      %v3399 = vsel %vm3394, %v2981, %v3379
      %v3400 = vsel %vm3394, %v2982, %v3381
      %v3401 = vsel %vm3394, %v2983, %v3383
      %v3402 = vsel %vm3394, %v2984, %v3385
      %3403 = vst.msk [vmem:[%s271] sm:$0xff] %vm292, %v3395
      %3404 = vst.msk [vmem:[%s271 + $0x10] sm:$0xff] %vm292, %v3396
      %3405 = vst.msk [vmem:[%s271 + $0x20] sm:$0xff] %vm292, %v3397
      %3406 = vst.msk [vmem:[%s271 + $0x30] sm:$0xff] %vm292, %v3398
      %3407 = vst.msk [vmem:[%s271 + $0x40] sm:$0xff] %vm292, %v3399
      %3408 = vst.msk [vmem:[%s271 + $0x50] sm:$0xff] %vm292, %v3400
      %3409 = vst.msk [vmem:[%s271 + $0x60] sm:$0xff] %vm292, %v3401
      %3410 = vst.msk [vmem:[%s271 + $0x70] sm:$0xff] %vm292, %v3402
      %v3411 = vld [vmem:[%s1556] sm:$0xff]
      %v3412 = vld [vmem:[%s1556 + $0x10] sm:$0xff]
      %v3413 = vld [vmem:[%s1556 + $0x20] sm:$0xff]
      %v3414 = vld [vmem:[%s1556 + $0x30] sm:$0xff]
      %v3415 = vld [vmem:[%s1556 + $0x40] sm:$0xff]
      %v3416 = vld [vmem:[%s1556 + $0x50] sm:$0xff]
      %v3417 = vld [vmem:[%s1556 + $0x60] sm:$0xff]
      %v3418 = vld [vmem:[%s1556 + $0x70] sm:$0xff]
      %v3419 = vld [vmem:[%s1082 + $0x1] sm:$0xff]
      %v3420 = vld [vmem:[%s1082 + $0x11] sm:$0xff]
      %v3421 = vld [vmem:[%s1082 + $0x21] sm:$0xff]
      %v3422 = vld [vmem:[%s1082 + $0x31] sm:$0xff]
      %v3423 = vld [vmem:[%s1082 + $0x41] sm:$0xff]
      %v3424 = vld [vmem:[%s1082 + $0x51] sm:$0xff]
      %v3425 = vld [vmem:[%s1082 + $0x61] sm:$0xff]
      %v3426 = vld [vmem:[%s1082 + $0x71] sm:$0xff]
      %v3427 = vld [vmem:[%s1556 + $0x1] sm:$0xff]
      %v3428 = vld [vmem:[%s1556 + $0x11] sm:$0xff]
      %v3429 = vld [vmem:[%s1556 + $0x21] sm:$0xff]
      %v3430 = vld [vmem:[%s1556 + $0x31] sm:$0xff]
      %v3431 = vld [vmem:[%s1556 + $0x41] sm:$0xff]
      %v3432 = vld [vmem:[%s1556 + $0x51] sm:$0xff]
      %v3433 = vld [vmem:[%s1556 + $0x61] sm:$0xff]
      %v3434 = vld [vmem:[%s1556 + $0x71] sm:$0xff]
      %v3435 = vld [vmem:[%s2506] sm:$0xff]
      %v3436 = vld [vmem:[%s2506 + $0x10] sm:$0xff]
      %v3437 = vld [vmem:[%s2506 + $0x20] sm:$0xff]
      %v3438 = vld [vmem:[%s2506 + $0x30] sm:$0xff]
      %v3439 = vld [vmem:[%s2506 + $0x40] sm:$0xff]
      %v3440 = vld [vmem:[%s2506 + $0x50] sm:$0xff]
      %v3441 = vld [vmem:[%s2506 + $0x60] sm:$0xff]
      %v3442 = vld [vmem:[%s2506 + $0x70] sm:$0xff]
      %v3443 = vld [vmem:[%s2032 + $0x1] sm:$0xff]
      %v3444 = vld [vmem:[%s2032 + $0x11] sm:$0xff]
      %v3445 = vld [vmem:[%s2032 + $0x21] sm:$0xff]
      %v3446 = vld [vmem:[%s2032 + $0x31] sm:$0xff]
      %v3447 = vld [vmem:[%s2032 + $0x41] sm:$0xff]
      %v3448 = vld [vmem:[%s2032 + $0x51] sm:$0xff]
      %v3449 = vld [vmem:[%s2032 + $0x61] sm:$0xff]
      %v3450 = vld [vmem:[%s2032 + $0x71] sm:$0xff]
      %v3451 = vld [vmem:[%s2506 + $0x1] sm:$0xff]
      %v3452 = vld [vmem:[%s2506 + $0x11] sm:$0xff]
      %v3453 = vld [vmem:[%s2506 + $0x21] sm:$0xff]
      %v3454 = vld [vmem:[%s2506 + $0x31] sm:$0xff]
      %v3455 = vld [vmem:[%s2506 + $0x41] sm:$0xff]
      %v3456 = vld [vmem:[%s2506 + $0x51] sm:$0xff]
      %v3457 = vld [vmem:[%s2506 + $0x61] sm:$0xff]
      %v3458 = vld [vmem:[%s2506 + $0x71] sm:$0xff]
      %s3459 = scalar_lea.vmem [#allocation3], 192
      %v3460 = vld [vmem:[%s3459] sm:$0xff]
      %v3461 = vld [vmem:[%s3459 + $0x10] sm:$0xff]
      %v3462 = vld [vmem:[%s3459 + $0x20] sm:$0xff]
      %v3463 = vld [vmem:[%s3459 + $0x30] sm:$0xff]
      %v3464 = vld [vmem:[%s3459 + $0x40] sm:$0xff]
      %v3465 = vld [vmem:[%s3459 + $0x50] sm:$0xff]
      %v3466 = vld [vmem:[%s3459 + $0x60] sm:$0xff]
      %v3467 = vld [vmem:[%s3459 + $0x70] sm:$0xff]
      %s3468 = scalar_lea.vmem [#allocation3], 32
      %v3469 = vld [vmem:[%s3468 + $0x1] sm:$0xff]
      %v3470 = vld [vmem:[%s3468 + $0x11] sm:$0xff]
      %v3471 = vld [vmem:[%s3468 + $0x21] sm:$0xff]
      %v3472 = vld [vmem:[%s3468 + $0x31] sm:$0xff]
      %v3473 = vld [vmem:[%s3468 + $0x41] sm:$0xff]
      %v3474 = vld [vmem:[%s3468 + $0x51] sm:$0xff]
      %v3475 = vld [vmem:[%s3468 + $0x61] sm:$0xff]
      %v3476 = vld [vmem:[%s3468 + $0x71] sm:$0xff]
      %v3477 = vld [vmem:[%s3459 + $0x1] sm:$0xff]
      %v3478 = vld [vmem:[%s3459 + $0x11] sm:$0xff]
      %v3479 = vld [vmem:[%s3459 + $0x21] sm:$0xff]
      %v3480 = vld [vmem:[%s3459 + $0x31] sm:$0xff]
      %v3481 = vld [vmem:[%s3459 + $0x41] sm:$0xff]
      %v3482 = vld [vmem:[%s3459 + $0x51] sm:$0xff]
      %v3483 = vld [vmem:[%s3459 + $0x61] sm:$0xff]
      %v3484 = vld [vmem:[%s3459 + $0x71] sm:$0xff]
      %3493 = vrot.lane.b32.xlu0 %v3419, 8
      %v3494 = vpop.permute.xlu0 %3493
      %3495 = vrot.lane.b32.xlu0 %v3420, 8
      %v3496 = vpop.permute.xlu0 %3495
      %3497 = vrot.lane.b32.xlu0 %v3421, 8
      %v3498 = vpop.permute.xlu0 %3497
      %3499 = vrot.lane.b32.xlu0 %v3422, 8
      %v3500 = vpop.permute.xlu0 %3499
      %3501 = vrot.lane.b32.xlu0 %v3423, 8
      %v3502 = vpop.permute.xlu0 %3501
      %3503 = vrot.lane.b32.xlu0 %v3424, 8
      %v3504 = vpop.permute.xlu0 %3503
      %3505 = vrot.lane.b32.xlu0 %v3425, 8
      %v3506 = vpop.permute.xlu0 %3505
      %3507 = vrot.lane.b32.xlu0 %v3426, 8
      %v3508 = vpop.permute.xlu0 %3507
      %3525 = vrot.lane.b32.xlu0 %v3427, 16
      %v3526 = vpop.permute.xlu0 %3525
      %3527 = vrot.lane.b32.xlu0 %v3428, 16
      %v3528 = vpop.permute.xlu0 %3527
      %3529 = vrot.lane.b32.xlu0 %v3429, 16
      %v3530 = vpop.permute.xlu0 %3529
      %3531 = vrot.lane.b32.xlu0 %v3430, 16
      %v3532 = vpop.permute.xlu0 %3531
      %3533 = vrot.lane.b32.xlu0 %v3431, 16
      %v3534 = vpop.permute.xlu0 %3533
      %3535 = vrot.lane.b32.xlu0 %v3432, 16
      %v3536 = vpop.permute.xlu0 %3535
      %3537 = vrot.lane.b32.xlu0 %v3433, 16
      %v3538 = vpop.permute.xlu0 %3537
      %3539 = vrot.lane.b32.xlu0 %v3434, 16
      %v3540 = vpop.permute.xlu0 %3539
      %3557 = vrot.lane.b32.xlu0 %v3435, 24
      %v3558 = vpop.permute.xlu0 %3557
      %3559 = vrot.lane.b32.xlu0 %v3436, 24
      %v3560 = vpop.permute.xlu0 %3559
      %3561 = vrot.lane.b32.xlu0 %v3437, 24
      %v3562 = vpop.permute.xlu0 %3561
      %3563 = vrot.lane.b32.xlu0 %v3438, 24
      %v3564 = vpop.permute.xlu0 %3563
      %3565 = vrot.lane.b32.xlu0 %v3439, 24
      %v3566 = vpop.permute.xlu0 %3565
      %3567 = vrot.lane.b32.xlu0 %v3440, 24
      %v3568 = vpop.permute.xlu0 %3567
      %3569 = vrot.lane.b32.xlu0 %v3441, 24
      %v3570 = vpop.permute.xlu0 %3569
      %3571 = vrot.lane.b32.xlu0 %v3442, 24
      %v3572 = vpop.permute.xlu0 %3571
      %3589 = vrot.lane.b32.xlu0 %v3443, 32
      %v3590 = vpop.permute.xlu0 %3589
      %3591 = vrot.lane.b32.xlu0 %v3444, 32
      %v3592 = vpop.permute.xlu0 %3591
      %3593 = vrot.lane.b32.xlu0 %v3445, 32
      %v3594 = vpop.permute.xlu0 %3593
      %3595 = vrot.lane.b32.xlu0 %v3446, 32
      %v3596 = vpop.permute.xlu0 %3595
      %3597 = vrot.lane.b32.xlu0 %v3447, 32
      %v3598 = vpop.permute.xlu0 %3597
      %3599 = vrot.lane.b32.xlu0 %v3448, 32
      %v3600 = vpop.permute.xlu0 %3599
      %3601 = vrot.lane.b32.xlu0 %v3449, 32
      %v3602 = vpop.permute.xlu0 %3601
      %3603 = vrot.lane.b32.xlu0 %v3450, 32
      %v3604 = vpop.permute.xlu0 %3603
      %3621 = vrot.lane.b32.xlu0 %v3451, 40
      %v3622 = vpop.permute.xlu0 %3621
      %3623 = vrot.lane.b32.xlu0 %v3452, 40
      %v3624 = vpop.permute.xlu0 %3623
      %3625 = vrot.lane.b32.xlu0 %v3453, 40
      %v3626 = vpop.permute.xlu0 %3625
      %3627 = vrot.lane.b32.xlu0 %v3454, 40
      %v3628 = vpop.permute.xlu0 %3627
      %3629 = vrot.lane.b32.xlu0 %v3455, 40
      %v3630 = vpop.permute.xlu0 %3629
      %3631 = vrot.lane.b32.xlu0 %v3456, 40
      %v3632 = vpop.permute.xlu0 %3631
      %3633 = vrot.lane.b32.xlu0 %v3457, 40
      %v3634 = vpop.permute.xlu0 %3633
      %3635 = vrot.lane.b32.xlu0 %v3458, 40
      %v3636 = vpop.permute.xlu0 %3635
      %3653 = vrot.lane.b32.xlu0 %v3460, 48
      %v3654 = vpop.permute.xlu0 %3653
      %3655 = vrot.lane.b32.xlu0 %v3461, 48
      %v3656 = vpop.permute.xlu0 %3655
      %3657 = vrot.lane.b32.xlu0 %v3462, 48
      %v3658 = vpop.permute.xlu0 %3657
      %3659 = vrot.lane.b32.xlu0 %v3463, 48
      %v3660 = vpop.permute.xlu0 %3659
      %3661 = vrot.lane.b32.xlu0 %v3464, 48
      %v3662 = vpop.permute.xlu0 %3661
      %3663 = vrot.lane.b32.xlu0 %v3465, 48
      %v3664 = vpop.permute.xlu0 %3663
      %3665 = vrot.lane.b32.xlu0 %v3466, 48
      %v3666 = vpop.permute.xlu0 %3665
      %3667 = vrot.lane.b32.xlu0 %v3467, 48
      %v3668 = vpop.permute.xlu0 %3667
      %3685 = vrot.lane.b32.xlu0 %v3469, 56
      %v3686 = vpop.permute.xlu0 %3685
      %3687 = vrot.lane.b32.xlu0 %v3470, 56
      %v3688 = vpop.permute.xlu0 %3687
      %3689 = vrot.lane.b32.xlu0 %v3471, 56
      %v3690 = vpop.permute.xlu0 %3689
      %3691 = vrot.lane.b32.xlu0 %v3472, 56
      %v3692 = vpop.permute.xlu0 %3691
      %3693 = vrot.lane.b32.xlu0 %v3473, 56
      %v3694 = vpop.permute.xlu0 %3693
      %3695 = vrot.lane.b32.xlu0 %v3474, 56
      %v3696 = vpop.permute.xlu0 %3695
      %3697 = vrot.lane.b32.xlu0 %v3475, 56
      %v3698 = vpop.permute.xlu0 %3697
      %3699 = vrot.lane.b32.xlu0 %v3476, 56
      %v3700 = vpop.permute.xlu0 %3699
      %3717 = vrot.lane.b32.xlu0 %v3477, 64
      %v3718 = vpop.permute.xlu0 %3717
      %3719 = vrot.lane.b32.xlu0 %v3478, 64
      %v3720 = vpop.permute.xlu0 %3719
      %3721 = vrot.lane.b32.xlu0 %v3479, 64
      %v3722 = vpop.permute.xlu0 %3721
      %3723 = vrot.lane.b32.xlu0 %v3480, 64
      %v3724 = vpop.permute.xlu0 %3723
      %3725 = vrot.lane.b32.xlu0 %v3481, 64
      %v3726 = vpop.permute.xlu0 %3725
      %3727 = vrot.lane.b32.xlu0 %v3482, 64
      %v3728 = vpop.permute.xlu0 %3727
      %3729 = vrot.lane.b32.xlu0 %v3483, 64
      %v3730 = vpop.permute.xlu0 %3729
      %3731 = vrot.lane.b32.xlu0 %v3484, 64
      %v3732 = vpop.permute.xlu0 %3731
      %v3741 = vsel %vm292, %v3411, %v3494
      %v3742 = vsel %vm292, %v3412, %v3496
      %v3743 = vsel %vm292, %v3413, %v3498
      %v3744 = vsel %vm292, %v3414, %v3500
      %v3745 = vsel %vm292, %v3415, %v3502
      %v3746 = vsel %vm292, %v3416, %v3504
      %v3747 = vsel %vm292, %v3417, %v3506
      %v3748 = vsel %vm292, %v3418, %v3508
      %v3749 = vsel %vm942, %v3741, %v3526
      %v3750 = vsel %vm942, %v3742, %v3528
      %v3751 = vsel %vm942, %v3743, %v3530
      %v3752 = vsel %vm942, %v3744, %v3532
      %v3753 = vsel %vm942, %v3745, %v3534
      %v3754 = vsel %vm942, %v3746, %v3536
      %v3755 = vsel %vm942, %v3747, %v3538
      %v3756 = vsel %vm942, %v3748, %v3540
      %v3757 = vsel %vm951, %v3749, %v3558
      %v3758 = vsel %vm951, %v3750, %v3560
      %v3759 = vsel %vm951, %v3751, %v3562
      %v3760 = vsel %vm951, %v3752, %v3564
      %v3761 = vsel %vm951, %v3753, %v3566
      %v3762 = vsel %vm951, %v3754, %v3568
      %v3763 = vsel %vm951, %v3755, %v3570
      %v3764 = vsel %vm951, %v3756, %v3572
      %v3765 = vsel %vm960, %v3757, %v3590
      %v3766 = vsel %vm960, %v3758, %v3592
      %v3767 = vsel %vm960, %v3759, %v3594
      %v3768 = vsel %vm960, %v3760, %v3596
      %v3769 = vsel %vm960, %v3761, %v3598
      %v3770 = vsel %vm960, %v3762, %v3600
      %v3771 = vsel %vm960, %v3763, %v3602
      %v3772 = vsel %vm960, %v3764, %v3604
      %v3773 = vsel %vm969, %v3765, %v3622
      %v3774 = vsel %vm969, %v3766, %v3624
      %v3775 = vsel %vm969, %v3767, %v3626
      %v3776 = vsel %vm969, %v3768, %v3628
      %v3777 = vsel %vm969, %v3769, %v3630
      %v3778 = vsel %vm969, %v3770, %v3632
      %v3779 = vsel %vm969, %v3771, %v3634
      %v3780 = vsel %vm969, %v3772, %v3636
      %v3781 = vsel %vm978, %v3773, %v3654
      %v3782 = vsel %vm978, %v3774, %v3656
      %v3783 = vsel %vm978, %v3775, %v3658
      %v3784 = vsel %vm978, %v3776, %v3660
      %v3785 = vsel %vm978, %v3777, %v3662
      %v3786 = vsel %vm978, %v3778, %v3664
      %v3787 = vsel %vm978, %v3779, %v3666
      %v3788 = vsel %vm978, %v3780, %v3668
      %v3789 = vsel %vm987, %v3781, %v3686
      %v3790 = vsel %vm987, %v3782, %v3688
      %v3791 = vsel %vm987, %v3783, %v3690
      %v3792 = vsel %vm987, %v3784, %v3692
      %v3793 = vsel %vm987, %v3785, %v3694
      %v3794 = vsel %vm987, %v3786, %v3696
      %v3795 = vsel %vm987, %v3787, %v3698
      %v3796 = vsel %vm987, %v3788, %v3700
      %v3797 = vsel %vm996, %v3789, %v3718
      %v3798 = vsel %vm996, %v3790, %v3720
      %v3799 = vsel %vm996, %v3791, %v3722
      %v3800 = vsel %vm996, %v3792, %v3724
      %v3801 = vsel %vm996, %v3793, %v3726
      %v3802 = vsel %vm996, %v3794, %v3728
      %v3803 = vsel %vm996, %v3795, %v3730
      %v3804 = vsel %vm996, %v3796, %v3732
      %v3806 = vsel %vm1008, %v3797, 0
      %v3809 = vsel %vm1008, %v3798, 0
      %v3812 = vsel %vm1008, %v3799, 0
      %v3815 = vsel %vm1008, %v3800, 0
      %v3818 = vsel %vm1008, %v3801, 0
      %v3821 = vsel %vm1008, %v3802, 0
      %v3824 = vsel %vm1008, %v3803, 0
      %v3827 = vsel %vm1008, %v3804, 0
      %3829 = vmatpush.msra.mxu0 0.0
      %3830 = vmatpush.msra.mxu0 0.0
      %3831 = vmatpush.msra.mxu0 0.0
      %3832 = vmatpush.msra.mxu0 0.0
      %3833 = vmatpush.msra.mxu0 0.0
      %3834 = vmatpush.msra.mxu0 0.0
      %3835 = vmatpush.msra.mxu0 0.0
      %3836 = vmatpush.msra.mxu0 %v290
      %3837 = vmatpush.msra.mxu0 %v289
      %3838 = vmatpush.msra.mxu0 %v288
      %3839 = vmatpush.msra.mxu0 %v287
      %3840 = vmatpush.msra.mxu0 %v286
      %3841 = vmatpush.msra.mxu0 %v285
      %3842 = vmatpush.msra.mxu0 %v284
      %3843 = vmatpush.msra.mxu0 %v283
      %3844 = vmatpush.msra.mxu0 %v282
      %3845 = vmatmul.f32.gmra.mxu0 %v3806
      %v3846 = vpop.f32.mrf.mxu0
      %v3847 = vadd.f32 %v2910, %v3846
      %3848 = vmatmul.f32.gmra.mxu0 %v3809
      %v3849 = vpop.f32.mrf.mxu0
      %v3850 = vadd.f32 %v2910, %v3849
      %3851 = vmatmul.f32.gmra.mxu0 %v3812
      %v3852 = vpop.f32.mrf.mxu0
      %v3853 = vadd.f32 %v2910, %v3852
      %3854 = vmatmul.f32.gmra.mxu0 %v3815
      %v3855 = vpop.f32.mrf.mxu0
      %v3856 = vadd.f32 %v2910, %v3855
      %3857 = vmatmul.f32.gmra.mxu0 %v3818
      %v3858 = vpop.f32.mrf.mxu0
      %v3859 = vadd.f32 %v2910, %v3858
      %3860 = vmatmul.f32.gmra.mxu0 %v3821
      %v3861 = vpop.f32.mrf.mxu0
      %v3862 = vadd.f32 %v2910, %v3861
      %3863 = vmatmul.f32.gmra.mxu0 %v3824
      %v3864 = vpop.f32.mrf.mxu0
      %v3865 = vadd.f32 %v2910, %v3864
      %3866 = vmatmul.f32.gmra.mxu0 %v3827
      %v3867 = vpop.f32.mrf.mxu0
      %v3868 = vadd.f32 %v2910, %v3867
      %3869 = vdwg.mxu0
      %v3870 = vmax.f32 %v3847, 0.0
      %v3871 = vmax.f32 %v3850, 0.0
      %v3872 = vmax.f32 %v3853, 0.0
      %v3873 = vmax.f32 %v3856, 0.0
      %v3874 = vmax.f32 %v3859, 0.0
      %v3875 = vmax.f32 %v3862, 0.0
      %v3876 = vmax.f32 %v3865, 0.0
      %v3877 = vmax.f32 %v3868, 0.0
      %v3878 = vld [vmem:[%s1082 + $0x2] sm:$0xff]
      %v3879 = vld [vmem:[%s1082 + $0x12] sm:$0xff]
      %v3880 = vld [vmem:[%s1082 + $0x22] sm:$0xff]
      %v3881 = vld [vmem:[%s1082 + $0x32] sm:$0xff]
      %v3882 = vld [vmem:[%s1082 + $0x42] sm:$0xff]
      %v3883 = vld [vmem:[%s1082 + $0x52] sm:$0xff]
      %v3884 = vld [vmem:[%s1082 + $0x62] sm:$0xff]
      %v3885 = vld [vmem:[%s1082 + $0x72] sm:$0xff]
      %v3886 = vld [vmem:[%s2032 + $0x2] sm:$0xff]
      %v3887 = vld [vmem:[%s2032 + $0x12] sm:$0xff]
      %v3888 = vld [vmem:[%s2032 + $0x22] sm:$0xff]
      %v3889 = vld [vmem:[%s2032 + $0x32] sm:$0xff]
      %v3890 = vld [vmem:[%s2032 + $0x42] sm:$0xff]
      %v3891 = vld [vmem:[%s2032 + $0x52] sm:$0xff]
      %v3892 = vld [vmem:[%s2032 + $0x62] sm:$0xff]
      %v3893 = vld [vmem:[%s2032 + $0x72] sm:$0xff]
      %v3894 = vld [vmem:[%s3468 + $0x2] sm:$0xff]
      %v3895 = vld [vmem:[%s3468 + $0x12] sm:$0xff]
      %v3896 = vld [vmem:[%s3468 + $0x22] sm:$0xff]
      %v3897 = vld [vmem:[%s3468 + $0x32] sm:$0xff]
      %v3898 = vld [vmem:[%s3468 + $0x42] sm:$0xff]
      %v3899 = vld [vmem:[%s3468 + $0x52] sm:$0xff]
      %v3900 = vld [vmem:[%s3468 + $0x62] sm:$0xff]
      %v3901 = vld [vmem:[%s3468 + $0x72] sm:$0xff]
      %3902 = vrot.lane.b32.xlu0 %v3427, 8
      %v3903 = vpop.permute.xlu0 %3902
      %3904 = vrot.lane.b32.xlu0 %v3428, 8
      %v3905 = vpop.permute.xlu0 %3904
      %3906 = vrot.lane.b32.xlu0 %v3429, 8
      %v3907 = vpop.permute.xlu0 %3906
      %3908 = vrot.lane.b32.xlu0 %v3430, 8
      %v3909 = vpop.permute.xlu0 %3908
      %3910 = vrot.lane.b32.xlu0 %v3431, 8
      %v3911 = vpop.permute.xlu0 %3910
      %3912 = vrot.lane.b32.xlu0 %v3432, 8
      %v3913 = vpop.permute.xlu0 %3912
      %3914 = vrot.lane.b32.xlu0 %v3433, 8
      %v3915 = vpop.permute.xlu0 %3914
      %3916 = vrot.lane.b32.xlu0 %v3434, 8
      %v3917 = vpop.permute.xlu0 %3916
      %3934 = vrot.lane.b32.xlu0 %v3878, 16
      %v3935 = vpop.permute.xlu0 %3934
      %3936 = vrot.lane.b32.xlu0 %v3879, 16
      %v3937 = vpop.permute.xlu0 %3936
      %3938 = vrot.lane.b32.xlu0 %v3880, 16
      %v3939 = vpop.permute.xlu0 %3938
      %3940 = vrot.lane.b32.xlu0 %v3881, 16
      %v3941 = vpop.permute.xlu0 %3940
      %3942 = vrot.lane.b32.xlu0 %v3882, 16
      %v3943 = vpop.permute.xlu0 %3942
      %3944 = vrot.lane.b32.xlu0 %v3883, 16
      %v3945 = vpop.permute.xlu0 %3944
      %3946 = vrot.lane.b32.xlu0 %v3884, 16
      %v3947 = vpop.permute.xlu0 %3946
      %3948 = vrot.lane.b32.xlu0 %v3885, 16
      %v3949 = vpop.permute.xlu0 %3948
      %3958 = vrot.lane.b32.xlu0 %v3443, 24
      %v3959 = vpop.permute.xlu0 %3958
      %3960 = vrot.lane.b32.xlu0 %v3444, 24
      %v3961 = vpop.permute.xlu0 %3960
      %3962 = vrot.lane.b32.xlu0 %v3445, 24
      %v3963 = vpop.permute.xlu0 %3962
      %3964 = vrot.lane.b32.xlu0 %v3446, 24
      %v3965 = vpop.permute.xlu0 %3964
      %3966 = vrot.lane.b32.xlu0 %v3447, 24
      %v3967 = vpop.permute.xlu0 %3966
      %3968 = vrot.lane.b32.xlu0 %v3448, 24
      %v3969 = vpop.permute.xlu0 %3968
      %3970 = vrot.lane.b32.xlu0 %v3449, 24
      %v3971 = vpop.permute.xlu0 %3970
      %3972 = vrot.lane.b32.xlu0 %v3450, 24
      %v3973 = vpop.permute.xlu0 %3972
      %3982 = vrot.lane.b32.xlu0 %v3451, 32
      %v3983 = vpop.permute.xlu0 %3982
      %3984 = vrot.lane.b32.xlu0 %v3452, 32
      %v3985 = vpop.permute.xlu0 %3984
      %3986 = vrot.lane.b32.xlu0 %v3453, 32
      %v3987 = vpop.permute.xlu0 %3986
      %3988 = vrot.lane.b32.xlu0 %v3454, 32
      %v3989 = vpop.permute.xlu0 %3988
      %3990 = vrot.lane.b32.xlu0 %v3455, 32
      %v3991 = vpop.permute.xlu0 %3990
      %3992 = vrot.lane.b32.xlu0 %v3456, 32
      %v3993 = vpop.permute.xlu0 %3992
      %3994 = vrot.lane.b32.xlu0 %v3457, 32
      %v3995 = vpop.permute.xlu0 %3994
      %3996 = vrot.lane.b32.xlu0 %v3458, 32
      %v3997 = vpop.permute.xlu0 %3996
      %4014 = vrot.lane.b32.xlu0 %v3886, 40
      %v4015 = vpop.permute.xlu0 %4014
      %4016 = vrot.lane.b32.xlu0 %v3887, 40
      %v4017 = vpop.permute.xlu0 %4016
      %4018 = vrot.lane.b32.xlu0 %v3888, 40
      %v4019 = vpop.permute.xlu0 %4018
      %4020 = vrot.lane.b32.xlu0 %v3889, 40
      %v4021 = vpop.permute.xlu0 %4020
      %4022 = vrot.lane.b32.xlu0 %v3890, 40
      %v4023 = vpop.permute.xlu0 %4022
      %4024 = vrot.lane.b32.xlu0 %v3891, 40
      %v4025 = vpop.permute.xlu0 %4024
      %4026 = vrot.lane.b32.xlu0 %v3892, 40
      %v4027 = vpop.permute.xlu0 %4026
      %4028 = vrot.lane.b32.xlu0 %v3893, 40
      %v4029 = vpop.permute.xlu0 %4028
      %4038 = vrot.lane.b32.xlu0 %v3469, 48
      %v4039 = vpop.permute.xlu0 %4038
      %4040 = vrot.lane.b32.xlu0 %v3470, 48
      %v4041 = vpop.permute.xlu0 %4040
      %4042 = vrot.lane.b32.xlu0 %v3471, 48
      %v4043 = vpop.permute.xlu0 %4042
      %4044 = vrot.lane.b32.xlu0 %v3472, 48
      %v4045 = vpop.permute.xlu0 %4044
      %4046 = vrot.lane.b32.xlu0 %v3473, 48
      %v4047 = vpop.permute.xlu0 %4046
      %4048 = vrot.lane.b32.xlu0 %v3474, 48
      %v4049 = vpop.permute.xlu0 %4048
      %4050 = vrot.lane.b32.xlu0 %v3475, 48
      %v4051 = vpop.permute.xlu0 %4050
      %4052 = vrot.lane.b32.xlu0 %v3476, 48
      %v4053 = vpop.permute.xlu0 %4052
      %4062 = vrot.lane.b32.xlu0 %v3477, 56
      %v4063 = vpop.permute.xlu0 %4062
      %4064 = vrot.lane.b32.xlu0 %v3478, 56
      %v4065 = vpop.permute.xlu0 %4064
      %4066 = vrot.lane.b32.xlu0 %v3479, 56
      %v4067 = vpop.permute.xlu0 %4066
      %4068 = vrot.lane.b32.xlu0 %v3480, 56
      %v4069 = vpop.permute.xlu0 %4068
      %4070 = vrot.lane.b32.xlu0 %v3481, 56
      %v4071 = vpop.permute.xlu0 %4070
      %4072 = vrot.lane.b32.xlu0 %v3482, 56
      %v4073 = vpop.permute.xlu0 %4072
      %4074 = vrot.lane.b32.xlu0 %v3483, 56
      %v4075 = vpop.permute.xlu0 %4074
      %4076 = vrot.lane.b32.xlu0 %v3484, 56
      %v4077 = vpop.permute.xlu0 %4076
      %4094 = vrot.lane.b32.xlu0 %v3894, 64
      %v4095 = vpop.permute.xlu0 %4094
      %4096 = vrot.lane.b32.xlu0 %v3895, 64
      %v4097 = vpop.permute.xlu0 %4096
      %4098 = vrot.lane.b32.xlu0 %v3896, 64
      %v4099 = vpop.permute.xlu0 %4098
      %4100 = vrot.lane.b32.xlu0 %v3897, 64
      %v4101 = vpop.permute.xlu0 %4100
      %4102 = vrot.lane.b32.xlu0 %v3898, 64
      %v4103 = vpop.permute.xlu0 %4102
      %4104 = vrot.lane.b32.xlu0 %v3899, 64
      %v4105 = vpop.permute.xlu0 %4104
      %4106 = vrot.lane.b32.xlu0 %v3900, 64
      %v4107 = vpop.permute.xlu0 %4106
      %4108 = vrot.lane.b32.xlu0 %v3901, 64
      %v4109 = vpop.permute.xlu0 %4108
      %v4118 = vsel %vm292, %v3419, %v3903
      %v4119 = vsel %vm292, %v3420, %v3905
      %v4120 = vsel %vm292, %v3421, %v3907
      %v4121 = vsel %vm292, %v3422, %v3909
      %v4122 = vsel %vm292, %v3423, %v3911
      %v4123 = vsel %vm292, %v3424, %v3913
      %v4124 = vsel %vm292, %v3425, %v3915
      %v4125 = vsel %vm292, %v3426, %v3917
      %v4126 = vsel %vm942, %v4118, %v3935
      %v4127 = vsel %vm942, %v4119, %v3937
      %v4128 = vsel %vm942, %v4120, %v3939
      %v4129 = vsel %vm942, %v4121, %v3941
      %v4130 = vsel %vm942, %v4122, %v3943
      %v4131 = vsel %vm942, %v4123, %v3945
      %v4132 = vsel %vm942, %v4124, %v3947
      %v4133 = vsel %vm942, %v4125, %v3949
      %v4134 = vsel %vm951, %v4126, %v3959
      %v4135 = vsel %vm951, %v4127, %v3961
      %v4136 = vsel %vm951, %v4128, %v3963
      %v4137 = vsel %vm951, %v4129, %v3965
      %v4138 = vsel %vm951, %v4130, %v3967
      %v4139 = vsel %vm951, %v4131, %v3969
      %v4140 = vsel %vm951, %v4132, %v3971
      %v4141 = vsel %vm951, %v4133, %v3973
      %v4142 = vsel %vm960, %v4134, %v3983
      %v4143 = vsel %vm960, %v4135, %v3985
      %v4144 = vsel %vm960, %v4136, %v3987
      %v4145 = vsel %vm960, %v4137, %v3989
      %v4146 = vsel %vm960, %v4138, %v3991
      %v4147 = vsel %vm960, %v4139, %v3993
      %v4148 = vsel %vm960, %v4140, %v3995
      %v4149 = vsel %vm960, %v4141, %v3997
      %v4150 = vsel %vm969, %v4142, %v4015
      %v4151 = vsel %vm969, %v4143, %v4017
      %v4152 = vsel %vm969, %v4144, %v4019
      %v4153 = vsel %vm969, %v4145, %v4021
      %v4154 = vsel %vm969, %v4146, %v4023
      %v4155 = vsel %vm969, %v4147, %v4025
      %v4156 = vsel %vm969, %v4148, %v4027
      %v4157 = vsel %vm969, %v4149, %v4029
      %v4158 = vsel %vm978, %v4150, %v4039
      %v4159 = vsel %vm978, %v4151, %v4041
      %v4160 = vsel %vm978, %v4152, %v4043
      %v4161 = vsel %vm978, %v4153, %v4045
      %v4162 = vsel %vm978, %v4154, %v4047
      %v4163 = vsel %vm978, %v4155, %v4049
      %v4164 = vsel %vm978, %v4156, %v4051
      %v4165 = vsel %vm978, %v4157, %v4053
      %v4166 = vsel %vm987, %v4158, %v4063
      %v4167 = vsel %vm987, %v4159, %v4065
      %v4168 = vsel %vm987, %v4160, %v4067
      %v4169 = vsel %vm987, %v4161, %v4069
      %v4170 = vsel %vm987, %v4162, %v4071
      %v4171 = vsel %vm987, %v4163, %v4073
      %v4172 = vsel %vm987, %v4164, %v4075
      %v4173 = vsel %vm987, %v4165, %v4077
      %v4174 = vsel %vm996, %v4166, %v4095
      %v4175 = vsel %vm996, %v4167, %v4097
      %v4176 = vsel %vm996, %v4168, %v4099
      %v4177 = vsel %vm996, %v4169, %v4101
      %v4178 = vsel %vm996, %v4170, %v4103
      %v4179 = vsel %vm996, %v4171, %v4105
      %v4180 = vsel %vm996, %v4172, %v4107
      %v4181 = vsel %vm996, %v4173, %v4109
      %v4183 = vsel %vm1008, %v4174, 0
      %v4186 = vsel %vm1008, %v4175, 0
      %v4189 = vsel %vm1008, %v4176, 0
      %v4192 = vsel %vm1008, %v4177, 0
      %v4195 = vsel %vm1008, %v4178, 0
      %v4198 = vsel %vm1008, %v4179, 0
      %v4201 = vsel %vm1008, %v4180, 0
      %v4204 = vsel %vm1008, %v4181, 0
      %4206 = vmatpush.msra.mxu0 0.0
      %4207 = vmatpush.msra.mxu0 0.0
      %4208 = vmatpush.msra.mxu0 0.0
      %4209 = vmatpush.msra.mxu0 0.0
      %4210 = vmatpush.msra.mxu0 0.0
      %4211 = vmatpush.msra.mxu0 0.0
      %4212 = vmatpush.msra.mxu0 0.0
      %4213 = vmatpush.msra.mxu0 %v290
      %4214 = vmatpush.msra.mxu0 %v289
      %4215 = vmatpush.msra.mxu0 %v288
      %4216 = vmatpush.msra.mxu0 %v287
      %4217 = vmatpush.msra.mxu0 %v286
      %4218 = vmatpush.msra.mxu0 %v285
      %4219 = vmatpush.msra.mxu0 %v284
      %4220 = vmatpush.msra.mxu0 %v283
      %4221 = vmatpush.msra.mxu0 %v282
      %4222 = vmatmul.f32.gmra.mxu0 %v4183
      %v4223 = vpop.f32.mrf.mxu0
      %v4224 = vadd.f32 %v2910, %v4223
      %4225 = vmatmul.f32.gmra.mxu0 %v4186
      %v4226 = vpop.f32.mrf.mxu0
      %v4227 = vadd.f32 %v2910, %v4226
      %4228 = vmatmul.f32.gmra.mxu0 %v4189
      %v4229 = vpop.f32.mrf.mxu0
      %v4230 = vadd.f32 %v2910, %v4229
      %4231 = vmatmul.f32.gmra.mxu0 %v4192
      %v4232 = vpop.f32.mrf.mxu0
      %v4233 = vadd.f32 %v2910, %v4232
      %4234 = vmatmul.f32.gmra.mxu0 %v4195
      %v4235 = vpop.f32.mrf.mxu0
      %v4236 = vadd.f32 %v2910, %v4235
      %4237 = vmatmul.f32.gmra.mxu0 %v4198
      %v4238 = vpop.f32.mrf.mxu0
      %v4239 = vadd.f32 %v2910, %v4238
      %4240 = vmatmul.f32.gmra.mxu0 %v4201
      %v4241 = vpop.f32.mrf.mxu0
      %v4242 = vadd.f32 %v2910, %v4241
      %4243 = vmatmul.f32.gmra.mxu0 %v4204
      %v4244 = vpop.f32.mrf.mxu0
      %v4245 = vadd.f32 %v2910, %v4244
      %4246 = vdwg.mxu0
      %v4247 = vmax.f32 %v4224, 0.0
      %v4248 = vmax.f32 %v4227, 0.0
      %v4249 = vmax.f32 %v4230, 0.0
      %v4250 = vmax.f32 %v4233, 0.0
      %v4251 = vmax.f32 %v4236, 0.0
      %v4252 = vmax.f32 %v4239, 0.0
      %v4253 = vmax.f32 %v4242, 0.0
      %v4254 = vmax.f32 %v4245, 0.0
      %4263 = vrot.lane.b32.xlu0 %v4247, 4
      %v4264 = vpop.permute.xlu0 %4263
      %4265 = vrot.lane.b32.xlu0 %v4248, 4
      %v4266 = vpop.permute.xlu0 %4265
      %4267 = vrot.lane.b32.xlu0 %v4249, 4
      %v4268 = vpop.permute.xlu0 %4267
      %4269 = vrot.lane.b32.xlu0 %v4250, 4
      %v4270 = vpop.permute.xlu0 %4269
      %4271 = vrot.lane.b32.xlu0 %v4251, 4
      %v4272 = vpop.permute.xlu0 %4271
      %4273 = vrot.lane.b32.xlu0 %v4252, 4
      %v4274 = vpop.permute.xlu0 %4273
      %4275 = vrot.lane.b32.xlu0 %v4253, 4
      %v4276 = vpop.permute.xlu0 %4275
      %4277 = vrot.lane.b32.xlu0 %v4254, 4
      %v4278 = vpop.permute.xlu0 %4277
      %v4287 = vsel %vm3394, %v3870, %v4264
      %v4288 = vsel %vm3394, %v3871, %v4266
      %v4289 = vsel %vm3394, %v3872, %v4268
      %v4290 = vsel %vm3394, %v3873, %v4270
      %v4291 = vsel %vm3394, %v3874, %v4272
      %v4292 = vsel %vm3394, %v3875, %v4274
      %v4293 = vsel %vm3394, %v3876, %v4276
      %v4294 = vsel %vm3394, %v3877, %v4278
      %s4295 = scalar_lea.vmem %s271, 8
      %4296 = vst.msk [vmem:[%s4295] sm:$0xff] %vm292, %v4287
      %4297 = vst.msk [vmem:[%s4295 + $0x10] sm:$0xff] %vm292, %v4288
      %4298 = vst.msk [vmem:[%s4295 + $0x20] sm:$0xff] %vm292, %v4289
      %4299 = vst.msk [vmem:[%s4295 + $0x30] sm:$0xff] %vm292, %v4290
      %4300 = vst.msk [vmem:[%s4295 + $0x40] sm:$0xff] %vm292, %v4291
      %4301 = vst.msk [vmem:[%s4295 + $0x50] sm:$0xff] %vm292, %v4292
      %4302 = vst.msk [vmem:[%s4295 + $0x60] sm:$0xff] %vm292, %v4293
      %4303 = vst.msk [vmem:[%s4295 + $0x70] sm:$0xff] %vm292, %v4294
      %p4304 = scmp.lt.s32.totalorder %s17, 1
      %s4305 = scalar_select %p4304, %s17, 1
      %s4306 = smul.addr %s4305, 16
      %s4307 = smul.addr %s4306, 8
      %s4308 = scalar_lea.vmem %s6, %s4307
      // Predicated region
      $region45: #{decoder_forward.1} parent=43 // pred_check
        %p4309 = pneg %p171
      $region46: #{decoder_forward.1} parent=43 // pred_check_branch
        %4311 = sbr.rel (%p4309) target = $region48
      $region47: #{decoder_forward.1} parent=43 // pred_region
        _
      $region48: #{decoder_forward.1} parent=43 // pred_fallthru
        _
    $region44: #{decoder_forward.1} parent=5 // pred_fallthru
      _
    %p4312 = scmp.le.s32.totalorder 2, %s12
    // Predicated region
    $region49: #{decoder_forward.1} parent=5 // pred_check
      %p4313 = pneg %p4312
    $region50: #{decoder_forward.1} parent=5 // pred_check_branch
      %4315 = sbr.rel (%p4313) target = $region52
    $region51: #{decoder_forward.1} parent=5 // pred_region
      %s4316 = ssub.s32 %s12, 2
      // Predicated region
      $region53: #{decoder_forward.1} parent=51 // pred_check
        %p4317 = pneg %p177
      $region54: #{decoder_forward.1} parent=51 // pred_check_branch
        %4319 = sbr.rel (%p4317) target = $region56
      $region55: #{decoder_forward.1} parent=51 // pred_region
        %p4320 = scmp.lt.s32.totalorder %s18, 1
        %s4321 = scalar_select %p4320, %s18, 1
        %s4322 = smul.addr %s4321, 16
        %s4323 = smul.addr %s4322, 8
        %s4324 = scalar_lea.vmem %s6, %s4323
      $region56: #{decoder_forward.1} parent=51 // pred_fallthru
        _
    $region52: #{decoder_forward.1} parent=5 // pred_fallthru
      _
  $region6: #{decoder_forward.1} parent=0 // loop_footer
    %s16 = sadd.s32 1, %s12
  $region7: #{decoder_forward.1} parent=0 // loop_footer_branch
    %11 = sbr.rel target = $region3
  $region8: #{decoder_forward.1} parent=0 // loop_exit
    _

</llo_original>
